<compile_context>
chip_gen: v7x
topology: tpu7x:2x2x1
jax: 0.10.0
libtpu: 0.0.40
codegen_flags: <defaults>
</compile_context>

<pallas_src>
import math
import functools

import jax
import jax.numpy as jnp
from jax.experimental import pallas as pl
from jax.experimental.pallas import tpu as pltpu


# ----------------------------- config (small) -----------------------------
CFG = dict(
    vocab=64,
    max_pos=16,
    type_vocab=2,
    hidden=32,
    heads=4,
    head_dim=8,          # hidden // heads
    intermediate=64,
    layers=2,
    ln_eps=1e-12,
)

H       = CFG["hidden"]
NH      = CFG["heads"]
D       = CFG["head_dim"]
FF      = CFG["intermediate"]
L       = CFG["layers"]
VOCAB   = CFG["vocab"]
MAXPOS  = CFG["max_pos"]
NTYPES  = CFG["type_vocab"]
EPS     = CFG["ln_eps"]

# ---- packed weight slab layout (rows; width = 3*H = 96, all offsets %8==0) ----
LAYER_W_ROWS = 3 * H + FF            # qkv(32) + ao(32) + ffn1(32) + ffn2(64) = 160
W_POOLER_ROW = L * LAYER_W_ROWS      # 320
W_WORD_ROW   = W_POOLER_ROW + H      # 352
W_POS_ROW    = W_WORD_ROW + VOCAB    # 416
W_TYPE_ROW   = W_POS_ROW + MAXPOS    # 432
W_ROWS       = W_TYPE_ROW + NTYPES   # 434
W_COLS       = 3 * H                 # 96

# ---- packed bias/LN slab layout (one param per row; width = 96) ----
LAYER_B_ROWS = 8
B_POOLB_ROW  = 2 + L * LAYER_B_ROWS  # 18
B_OUTW_ROW   = B_POOLB_ROW + 1       # 19
B_OUTB_ROW   = B_OUTW_ROW + 1        # 20
B_ROWS       = B_OUTB_ROW + 1        # 21
B_COLS       = 3 * H                 # 96

VMEM_SPEC = pl.BlockSpec(memory_space=pltpu.MemorySpace.VMEM)

_INV_SQRT2 = 1.0 / math.sqrt(2.0)


# ----------------------------- in-kernel math helpers -----------------------------
def _erf(z):
    # Abramowitz & Stegun 7.1.26 (max abs err 1.5e-7).  Only mul/add/div/exp,
    # so it is guaranteed to lower in Mosaic (no lax.erf primitive needed).
    p = 0.3275911
    a1, a2, a3, a4, a5 = 0.254829592, -0.284496736, 1.421413741, -1.453152027, 1.061405429
    az = jnp.abs(z)
    t = 1.0 / (1.0 + p * az)
    poly = t * (a1 + t * (a2 + t * (a3 + t * (a4 + t * a5))))
    r = 1.0 - poly * jnp.exp(-az * az)
    return jnp.where(z >= 0.0, r, -r)


def _gelu(x):
    # exact (erf) GELU, matching HF BertConfig default hidden_act="gelu"
    return 0.5 * x * (1.0 + _erf(x * _INV_SQRT2))


def _sigmoid(x):
    # exact identity; keeps everything on tanh (EUP), avoids lax.logistic
    return 0.5 * (1.0 + jnp.tanh(0.5 * x))


# ----------------------------- fused Pallas kernel -----------------------------
def _bert_forward_kernel(B, S, ids_ref, mask_ref, w_ref, b_ref, o_ref):
    """Entire BERTRegressor forward, fully VMEM-resident (4 input DMAs)."""

    # bias/LN slab is tiny (3 vregs) -> load once, slice values statically
    ball = b_ref[...]                                        # [21, 96]

    def brow(r, n):
        return ball[r:r + 1, 0:n]                            # [1, n]

    def ln(x, g, bta):
        mean = jnp.mean(x, axis=-1, keepdims=True)
        cent = x - mean
        var = jnp.mean(cent * cent, axis=-1, keepdims=True)
        return cent * jax.lax.rsqrt(var + EPS) * g + bta

    # --- embeddings: one-hot word lookup on the MXU + pos/type rows, in-kernel ---
    ids = ids_ref[...]                                       # [B*S, 1] int32
    onehot = (jax.lax.broadcasted_iota(jnp.int32, (B * S, VOCAB), 1)
              == ids).astype(jnp.float32)                    # [B*S, VOCAB]
    word = jnp.dot(onehot, w_ref[W_WORD_ROW:W_WORD_ROW + VOCAB, 0:H],
                   preferred_element_type=jnp.float32)       # [B*S, H]
    pos = w_ref[W_POS_ROW:W_POS_ROW + S, 0:H]                # [S, H]
    # TODO(synk): token_type_ids hard-coded to 0 (only type_emb[0] is added).
    typ = w_ref[W_TYPE_ROW:W_TYPE_ROW + 1, 0:H]              # [1, H]
    emb = (word.reshape(B, S, H) + pos[None, :, :] + typ[None, :, :]).reshape(B * S, H)
    x = ln(emb, brow(0, H), brow(1, H))                      # [B*S, H]

    # --- additive attention mask, broadcast ONCE (hoisted out of the layer loop) ---
    mask_f = mask_ref[...].astype(jnp.float32)               # [B, S]
    addm = (1.0 - mask_f) * -10000.0                         # [B, S]
    addm_hb = jnp.broadcast_to(addm[None, :, :], (NH, B, S)).reshape(NH * B, 1, S)

    # --- transformer encoder layers (statically unrolled) ---
    for l in range(L):
        wb = l * LAYER_W_ROWS
        bb = 2 + l * LAYER_B_ROWS

        # fused QKV projection (1/sqrt(D) already folded into the Q columns)
        qkv = jnp.dot(x, w_ref[wb:wb + H, 0:3 * H],
                      preferred_element_type=jnp.float32) + brow(bb + 0, 3 * H)  # [B*S,3H]

        def split_heads(off):
            # heads -> leading batch axis (order h-major, then b), no 4-D transpose
            cols = [qkv[:, off + h * D: off + (h + 1) * D] for h in range(NH)]
            return jnp.concatenate(cols, axis=0).reshape(NH * B, S, D)

        q = split_heads(0)
        k = split_heads(H)
        v = split_heads(2 * H)

        # ONE score einsum / ONE softmax / ONE context einsum per layer
        s = jnp.einsum("bqd,bkd->bqk", q, k,
                       preferred_element_type=jnp.float32)                # [B*NH,S,S]
        s = s + addm_hb
        s = s - jnp.max(s, axis=-1, keepdims=True)
        p = jnp.exp(s)
        p = p * pl.reciprocal(jnp.sum(p, axis=-1, keepdims=True), approx=True)
        ctx = jnp.einsum("bqk,bkd->bqd", p, v,
                         preferred_element_type=jnp.float32)              # [B*NH,S,D]
        ctx = ctx.reshape(NH, B * S, D)
        ctx = jnp.concatenate([ctx[h] for h in range(NH)], axis=-1)       # [B*S, H]

        attn_out = jnp.dot(ctx, w_ref[wb + H:wb + 2 * H, 0:H],
                           preferred_element_type=jnp.float32) + brow(bb + 1, H)
        # TODO(synk): attention/hidden dropout omitted (eval-mode identity).
        x = ln(attn_out + x, brow(bb + 2, H), brow(bb + 3, H))

        ffn = jnp.dot(x, w_ref[wb + 2 * H:wb + 3 * H, 0:FF],
                      preferred_element_type=jnp.float32) + brow(bb + 4, FF)
        ffn = _gelu(ffn)
        ffn = jnp.dot(ffn, w_ref[wb + 3 * H:wb + 3 * H + FF, 0:H],
                      preferred_element_type=jnp.float32) + brow(bb + 5, H)
        x = ln(ffn + x, brow(bb + 6, H), brow(bb + 7, H))

    # --- pooler + regression head (data already in VMEM) ---
    cls = x.reshape(B, S, H)[:, 0, :]                                     # [B, H]
    pooled = jnp.tanh(jnp.dot(cls, w_ref[W_POOLER_ROW:W_POOLER_ROW + H, 0:H],
                              preferred_element_type=jnp.float32)
                      + brow(B_POOLB_ROW, H))
    # TODO(synk): nn.Dropout(p=0.3) before the head is identity at inference.
    logit = jnp.sum(pooled * brow(B_OUTW_ROW, H), axis=-1, keepdims=True) \
        + ball[B_OUTB_ROW:B_OUTB_ROW + 1, 0:1]
    o_ref[...] = _sigmoid(logit) * 10.0                                   # [B, 1]


# ----------------------------- parameters -----------------------------
def init_params(key):
    keys = iter(jax.random.split(key, 64))

    def nrm(shape):
        return jax.random.normal(next(keys), shape, jnp.float32) * 0.02

    params = {
        "word_emb": nrm((VOCAB, H)),
        "pos_emb": nrm((MAXPOS, H)),
        "type_emb": nrm((NTYPES, H)),
        "emb_ln_g": jnp.ones((H,), jnp.float32),
        "emb_ln_b": jnp.zeros((H,), jnp.float32),
        "pooler_w": nrm((H, H)),
        "pooler_b": jnp.zeros((H,), jnp.float32),
        "out_w": nrm((H, 1)),
        "out_b": jnp.zeros((1,), jnp.float32),
        "layers": [],
    }
    for _ in range(L):
        params["layers"].append({
            # Q/K/V weights pre-fused: [H, 3H] = [q | k | v], stored [in, out]
            "qkv_w": nrm((H, 3 * H)), "qkv_b": jnp.zeros((3 * H,), jnp.float32),
            "ao_w": nrm((H, H)), "ao_b": jnp.zeros((H,), jnp.float32),
            "attn_ln_g": jnp.ones((H,), jnp.float32),
            "attn_ln_b": jnp.zeros((H,), jnp.float32),
            "ffn_w1": nrm((H, FF)), "ffn_b1": jnp.zeros((FF,), jnp.float32),
            "ffn_w2": nrm((FF, H)), "ffn_b2": jnp.zeros((H,), jnp.float32),
            "ffn_ln_g": jnp.ones((H,), jnp.float32),
            "ffn_ln_b": jnp.zeros((H,), jnp.float32),
        })
    return params


def pack_params(params):
    """Pack all weights/biases into two contiguous f32 slabs (done once, off the hot path)."""
    scale = 1.0 / math.sqrt(D)
    w = jnp.zeros((W_ROWS, W_COLS), jnp.float32)
    b = jnp.zeros((B_ROWS, B_COLS), jnp.float32)

    def put_w(slab, row, mat):
        r, c = mat.shape
        return slab.at[row:row + r, 0:c].set(mat)

    def put_b(slab, row, vec):
        return slab.at[row, 0:vec.shape[0]].set(vec)

    for l, lyr in enumerate(params["layers"]):
        wb = l * LAYER_W_ROWS
        bb = 2 + l * LAYER_B_ROWS
        qkv_w = lyr["qkv_w"].at[:, :H].multiply(scale)     # fold 1/sqrt(D) into Q
        qkv_b = lyr["qkv_b"].at[:H].multiply(scale)
        w = put_w(w, wb, qkv_w)
        w = put_w(w, wb + H, lyr["ao_w"])
        w = put_w(w, wb + 2 * H, lyr["ffn_w1"])
        w = put_w(w, wb + 3 * H, lyr["ffn_w2"])
        b = put_b(b, bb + 0, qkv_b)
        b = put_b(b, bb + 1, lyr["ao_b"])
        b = put_b(b, bb + 2, lyr["attn_ln_g"])
        b = put_b(b, bb + 3, lyr["attn_ln_b"])
        b = put_b(b, bb + 4, lyr["ffn_b1"])
        b = put_b(b, bb + 5, lyr["ffn_b2"])
        b = put_b(b, bb + 6, lyr["ffn_ln_g"])
        b = put_b(b, bb + 7, lyr["ffn_ln_b"])
    w = put_w(w, W_POOLER_ROW, params["pooler_w"])
    w = put_w(w, W_WORD_ROW, params["word_emb"])
    w = put_w(w, W_POS_ROW, params["pos_emb"])
    w = put_w(w, W_TYPE_ROW, params["type_emb"])
    b = put_b(b, 0, params["emb_ln_g"])
    b = put_b(b, 1, params["emb_ln_b"])
    b = put_b(b, B_POOLB_ROW, params["pooler_b"])
    b = put_b(b, B_OUTW_ROW, params["out_w"].reshape(H))
    b = put_b(b, B_OUTB_ROW, params["out_b"])
    return w, b


# ----------------------------- forward pass (single pallas_call) -----------------------------
def bert_regressor_forward(w_slab, b_slab, input_ids, attention_mask):
    """input_ids: [B, S] int32, attention_mask: [B, S] (1 = keep, 0 = pad)."""
    B, S = input_ids.shape
    ids = input_ids.reshape(B * S, 1).astype(jnp.int32)      # layout-only reshape
    mask = attention_mask.astype(jnp.int32)

    kernel = functools.partial(_bert_forward_kernel, B, S)
    # TODO(synk): when B*S / hidden grow toward real BERT sizes, add a
    # ("parallel",) row-tile grid axis (v7x 2-TC sharding), bf16 matmul operands
    # (v6e/v7x MXU), 128-multiple hidden dims for lane-dense stores, and
    # re-derive the resident-VMEM budget against v7x's 64 MiB.
    scores = pl.pallas_call(
        kernel,
        out_shape=jax.ShapeDtypeStruct((B, 1), jnp.float32),
        in_specs=[VMEM_SPEC] * 4,
        out_specs=VMEM_SPEC,
    )(ids, mask, w_slab, b_slab)
    return scores.reshape(B)                                 # [B]


# ----------------------------- main -----------------------------
if __name__ == "__main__":
    B, S = 2, 8
    key = jax.random.PRNGKey(0)
    k_ids, k_params = jax.random.split(key)

    input_ids = jax.random.randint(k_ids, (B, S), 0, VOCAB, jnp.int32)
    attention_mask = jnp.array(
        [[1, 1, 1, 1, 1, 1, 1, 1],
         [1, 1, 1, 1, 1, 0, 0, 0]], dtype=jnp.int32)

    params = init_params(k_params)
    w_slab, b_slab = pack_params(params)          # packed once, outside the hot path

    fwd = jax.jit(bert_regressor_forward)
    scores = fwd(w_slab, b_slab, input_ids, attention_mask)
    jax.block_until_ready(scores)

    assert scores.shape == (B,)
    assert bool(jnp.all(jnp.isfinite(scores)))
    assert bool(jnp.all((scores >= 0.0) & (scores <= 10.0)))
    print("KERNEL_OK")
</pallas_src>

<mosaic_0001>
module attributes {stable_mosaic.version = 11 : i64} {
  func.func @_bert_forward_kernel(%arg0: memref<16x1xi32, #tpu.memory_space<vmem>>, %arg1: memref<2x8xi32, #tpu.memory_space<vmem>>, %arg2: memref<434x96xf32, #tpu.memory_space<vmem>>, %arg3: memref<21x96xf32, #tpu.memory_space<vmem>>, %arg4: memref<2x1xf32, #tpu.memory_space<vmem>>) attributes {dimension_semantics = [], scalar_prefetch = 0 : i64, scratch_operands = 0 : i64, tpu.core_type = #tpu.core_type<tc>} {
    %c0 = arith.constant 0 : index
    %c0_0 = arith.constant 0 : index
    %0 = vector.load %arg3[%c0, %c0_0] : memref<21x96xf32, #tpu.memory_space<vmem>>, vector<21x96xf32>
    %c0_1 = arith.constant 0 : index
    %c0_2 = arith.constant 0 : index
    %1 = vector.load %arg0[%c0_1, %c0_2] : memref<16x1xi32, #tpu.memory_space<vmem>>, vector<16x1xi32>
    %2 = tpu.iota {dimensions = array<i32: 1>} : vector<16x64xi32>
    %3 = vector.broadcast %1 : vector<16x1xi32> to vector<16x64xi32>
    %4 = arith.cmpi eq, %2, %3 : vector<16x64xi32>
    %5 = arith.extui %4 : vector<16x64xi1> to vector<16x64xi32>
    %6 = arith.sitofp %5 : vector<16x64xi32> to vector<16x64xf32>
    %c352 = arith.constant 352 : index
    %c0_3 = arith.constant 0 : index
    %7 = vector.load %arg2[%c352, %c0_3] : memref<434x96xf32, #tpu.memory_space<vmem>>, vector<64x32xf32>
    %cst = arith.constant dense<0.000000e+00> : vector<16x32xf32>
    %8 = tpu.matmul %6, %7, %cst {dimension_numbers = #tpu.dot_dimension_numbers<[1], [0], [0], [1], [0, 0, 1, 1], [], []>} : vector<16x64xf32>, vector<64x32xf32>, vector<16x32xf32> -> vector<16x32xf32>
    %c416 = arith.constant 416 : index
    %c0_4 = arith.constant 0 : index
    %9 = vector.load %arg2[%c416, %c0_4] : memref<434x96xf32, #tpu.memory_space<vmem>>, vector<8x32xf32>
    %c432 = arith.constant 432 : index
    %c0_5 = arith.constant 0 : index
    %10 = vector.load %arg2[%c432, %c0_5] : memref<434x96xf32, #tpu.memory_space<vmem>>, vector<1x32xf32>
    %11 = vector.shape_cast %8 : vector<16x32xf32> to vector<2x8x32xf32>
    %12 = vector.shape_cast %9 : vector<8x32xf32> to vector<1x8x32xf32>
    %13 = vector.broadcast %12 : vector<1x8x32xf32> to vector<2x8x32xf32>
    %14 = arith.addf %11, %13 : vector<2x8x32xf32>
    %15 = vector.shape_cast %10 : vector<1x32xf32> to vector<1x1x32xf32>
    %16 = vector.broadcast %15 : vector<1x1x32xf32> to vector<2x8x32xf32>
    %17 = arith.addf %14, %16 : vector<2x8x32xf32>
    %18 = vector.shape_cast %17 : vector<2x8x32xf32> to vector<16x32xf32>
    %19 = vector.extract_strided_slice %0 {offsets = [0, 0], sizes = [1, 32], strides = [1, 1]} : vector<21x96xf32> to vector<1x32xf32>
    %20 = vector.extract_strided_slice %0 {offsets = [1, 0], sizes = [1, 32], strides = [1, 1]} : vector<21x96xf32> to vector<1x32xf32>
    %cst_6 = arith.constant dense<0.000000e+00> : vector<16xf32>
    %21 = vector.multi_reduction <add>, %18, %cst_6 [1] : vector<16x32xf32> to vector<16xf32>
    %22 = vector.shape_cast %21 : vector<16xf32> to vector<16x1xf32>
    %cst_7 = arith.constant 3.200000e+01 : f32
    %23 = vector.broadcast %cst_7 : f32 to vector<16x1xf32>
    %24 = arith.divf %22, %23 : vector<16x1xf32>
    %25 = vector.broadcast %24 : vector<16x1xf32> to vector<16x32xf32>
    %26 = arith.subf %18, %25 : vector<16x32xf32>
    %27 = arith.mulf %26, %26 : vector<16x32xf32>
    %cst_8 = arith.constant dense<0.000000e+00> : vector<16xf32>
    %28 = vector.multi_reduction <add>, %27, %cst_8 [1] : vector<16x32xf32> to vector<16xf32>
    %29 = vector.shape_cast %28 : vector<16xf32> to vector<16x1xf32>
    %cst_9 = arith.constant 3.200000e+01 : f32
    %30 = vector.broadcast %cst_9 : f32 to vector<16x1xf32>
    %31 = arith.divf %29, %30 : vector<16x1xf32>
    %cst_10 = arith.constant 9.99999996E-13 : f32
    %32 = vector.broadcast %cst_10 : f32 to vector<16x1xf32>
    %33 = arith.addf %31, %32 : vector<16x1xf32>
    %34 = math.rsqrt %33 : vector<16x1xf32>
    %35 = vector.broadcast %34 : vector<16x1xf32> to vector<16x32xf32>
    %36 = arith.mulf %26, %35 : vector<16x32xf32>
    %37 = vector.broadcast %19 : vector<1x32xf32> to vector<16x32xf32>
    %38 = arith.mulf %36, %37 : vector<16x32xf32>
    %39 = vector.broadcast %20 : vector<1x32xf32> to vector<16x32xf32>
    %40 = arith.addf %38, %39 : vector<16x32xf32>
    %c0_11 = arith.constant 0 : index
    %c0_12 = arith.constant 0 : index
    %41 = vector.load %arg1[%c0_11, %c0_12] : memref<2x8xi32, #tpu.memory_space<vmem>>, vector<2x8xi32>
    %42 = arith.sitofp %41 : vector<2x8xi32> to vector<2x8xf32>
    %cst_13 = arith.constant 1.000000e+00 : f32
    %43 = vector.broadcast %cst_13 : f32 to vector<2x8xf32>
    %44 = arith.subf %43, %42 : vector<2x8xf32>
    %cst_14 = arith.constant -1.000000e+04 : f32
    %45 = vector.broadcast %cst_14 : f32 to vector<2x8xf32>
    %46 = arith.mulf %44, %45 : vector<2x8xf32>
    %47 = vector.shape_cast %46 : vector<2x8xf32> to vector<1x2x8xf32>
    %48 = vector.shape_cast %47 : vector<1x2x8xf32> to vector<1x2x8xf32>
    %49 = vector.broadcast %48 : vector<1x2x8xf32> to vector<4x2x8xf32>
    %50 = vector.shape_cast %49 : vector<4x2x8xf32> to vector<8x1x8xf32>
    %c0_15 = arith.constant 0 : index
    %c0_16 = arith.constant 0 : index
    %51 = vector.load %arg2[%c0_15, %c0_16] : memref<434x96xf32, #tpu.memory_space<vmem>>, vector<32x96xf32>
    %cst_17 = arith.constant dense<0.000000e+00> : vector<16x96xf32>
    %52 = tpu.matmul %40, %51, %cst_17 {dimension_numbers = #tpu.dot_dimension_numbers<[1], [0], [0], [1], [0, 0, 1, 1], [], []>} : vector<16x32xf32>, vector<32x96xf32>, vector<16x96xf32> -> vector<16x96xf32>
    %53 = vector.extract_strided_slice %0 {offsets = [2, 0], sizes = [1, 96], strides = [1, 1]} : vector<21x96xf32> to vector<1x96xf32>
    %54 = vector.broadcast %53 : vector<1x96xf32> to vector<16x96xf32>
    %55 = arith.addf %52, %54 : vector<16x96xf32>
    %56 = vector.extract_strided_slice %55 {offsets = [0, 0], sizes = [16, 8], strides = [1, 1]} : vector<16x96xf32> to vector<16x8xf32>
    %57 = vector.extract_strided_slice %55 {offsets = [0, 8], sizes = [16, 8], strides = [1, 1]} : vector<16x96xf32> to vector<16x8xf32>
    %58 = vector.extract_strided_slice %55 {offsets = [0, 16], sizes = [16, 8], strides = [1, 1]} : vector<16x96xf32> to vector<16x8xf32>
    %59 = vector.extract_strided_slice %55 {offsets = [0, 24], sizes = [16, 8], strides = [1, 1]} : vector<16x96xf32> to vector<16x8xf32>
    %60 = tpu.concatenate %56, %57, %58, %59 in 0 : vector<16x8xf32>, vector<16x8xf32>, vector<16x8xf32>, vector<16x8xf32> -> vector<64x8xf32>
    %61 = vector.shape_cast %60 : vector<64x8xf32> to vector<8x8x8xf32>
    %62 = vector.extract_strided_slice %55 {offsets = [0, 32], sizes = [16, 8], strides = [1, 1]} : vector<16x96xf32> to vector<16x8xf32>
    %63 = vector.extract_strided_slice %55 {offsets = [0, 40], sizes = [16, 8], strides = [1, 1]} : vector<16x96xf32> to vector<16x8xf32>
    %64 = vector.extract_strided_slice %55 {offsets = [0, 48], sizes = [16, 8], strides = [1, 1]} : vector<16x96xf32> to vector<16x8xf32>
    %65 = vector.extract_strided_slice %55 {offsets = [0, 56], sizes = [16, 8], strides = [1, 1]} : vector<16x96xf32> to vector<16x8xf32>
    %66 = tpu.concatenate %62, %63, %64, %65 in 0 : vector<16x8xf32>, vector<16x8xf32>, vector<16x8xf32>, vector<16x8xf32> -> vector<64x8xf32>
    %67 = vector.shape_cast %66 : vector<64x8xf32> to vector<8x8x8xf32>
    %68 = vector.extract_strided_slice %55 {offsets = [0, 64], sizes = [16, 8], strides = [1, 1]} : vector<16x96xf32> to vector<16x8xf32>
    %69 = vector.extract_strided_slice %55 {offsets = [0, 72], sizes = [16, 8], strides = [1, 1]} : vector<16x96xf32> to vector<16x8xf32>
    %70 = vector.extract_strided_slice %55 {offsets = [0, 80], sizes = [16, 8], strides = [1, 1]} : vector<16x96xf32> to vector<16x8xf32>
    %71 = vector.extract_strided_slice %55 {offsets = [0, 88], sizes = [16, 8], strides = [1, 1]} : vector<16x96xf32> to vector<16x8xf32>
    %72 = tpu.concatenate %68, %69, %70, %71 in 0 : vector<16x8xf32>, vector<16x8xf32>, vector<16x8xf32>, vector<16x8xf32> -> vector<64x8xf32>
    %73 = vector.shape_cast %72 : vector<64x8xf32> to vector<8x8x8xf32>
    "tpu.trace_start"() <{level = 10 : i32, message = "bqd,bkd->bqk"}> : () -> ()
    %cst_18 = arith.constant dense<0.000000e+00> : vector<8x8x8xf32>
    %74 = tpu.matmul %61, %67, %cst_18 {dimension_numbers = #tpu.dot_dimension_numbers<[2], [2], [1], [1], [0, 0, 0, 1, 1, 1], [0], [0]>} : vector<8x8x8xf32>, vector<8x8x8xf32>, vector<8x8x8xf32> -> vector<8x8x8xf32>
    "tpu.trace_stop"() : () -> ()
    %75 = vector.broadcast %50 : vector<8x1x8xf32> to vector<8x8x8xf32>
    %76 = arith.addf %74, %75 : vector<8x8x8xf32>
    %cst_19 = arith.constant dense<0xFF800000> : vector<8x8xf32>
    %77 = vector.multi_reduction <maximumf>, %76, %cst_19 [2] : vector<8x8x8xf32> to vector<8x8xf32>
    %78 = vector.shape_cast %77 : vector<8x8xf32> to vector<8x8x1xf32>
    %79 = vector.broadcast %78 : vector<8x8x1xf32> to vector<8x8x8xf32>
    %80 = arith.subf %76, %79 : vector<8x8x8xf32>
    %81 = math.exp %80 : vector<8x8x8xf32>
    %cst_20 = arith.constant dense<0.000000e+00> : vector<8x8xf32>
    %82 = vector.multi_reduction <add>, %81, %cst_20 [2] : vector<8x8x8xf32> to vector<8x8xf32>
    %83 = vector.shape_cast %82 : vector<8x8xf32> to vector<8x8x1xf32>
    %84 = tpu.reciprocal %83 {approx = true} : vector<8x8x1xf32> -> vector<8x8x1xf32>
    %85 = vector.broadcast %84 : vector<8x8x1xf32> to vector<8x8x8xf32>
    %86 = arith.mulf %81, %85 : vector<8x8x8xf32>
    "tpu.trace_start"() <{level = 10 : i32, message = "bqk,bkd->bqd"}> : () -> ()
    %cst_21 = arith.constant dense<0.000000e+00> : vector<8x8x8xf32>
    %87 = tpu.matmul %86, %73, %cst_21 {dimension_numbers = #tpu.dot_dimension_numbers<[2], [1], [1], [2], [0, 0, 0, 1, 1, 2], [0], [0]>} : vector<8x8x8xf32>, vector<8x8x8xf32>, vector<8x8x8xf32> -> vector<8x8x8xf32>
    "tpu.trace_stop"() : () -> ()
    %88 = vector.shape_cast %87 : vector<8x8x8xf32> to vector<4x16x8xf32>
    %89 = vector.extract_strided_slice %88 {offsets = [0, 0, 0], sizes = [1, 16, 8], strides = [1, 1, 1]} : vector<4x16x8xf32> to vector<1x16x8xf32>
    %90 = vector.shape_cast %89 : vector<1x16x8xf32> to vector<16x8xf32>
    %91 = vector.extract_strided_slice %88 {offsets = [1, 0, 0], sizes = [1, 16, 8], strides = [1, 1, 1]} : vector<4x16x8xf32> to vector<1x16x8xf32>
    %92 = vector.shape_cast %91 : vector<1x16x8xf32> to vector<16x8xf32>
    %93 = vector.extract_strided_slice %88 {offsets = [2, 0, 0], sizes = [1, 16, 8], strides = [1, 1, 1]} : vector<4x16x8xf32> to vector<1x16x8xf32>
    %94 = vector.shape_cast %93 : vector<1x16x8xf32> to vector<16x8xf32>
    %95 = vector.extract_strided_slice %88 {offsets = [3, 0, 0], sizes = [1, 16, 8], strides = [1, 1, 1]} : vector<4x16x8xf32> to vector<1x16x8xf32>
    %96 = vector.shape_cast %95 : vector<1x16x8xf32> to vector<16x8xf32>
    %97 = tpu.concatenate %90, %92, %94, %96 in 1 : vector<16x8xf32>, vector<16x8xf32>, vector<16x8xf32>, vector<16x8xf32> -> vector<16x32xf32>
    %c32 = arith.constant 32 : index
    %c0_22 = arith.constant 0 : index
    %98 = vector.load %arg2[%c32, %c0_22] : memref<434x96xf32, #tpu.memory_space<vmem>>, vector<32x32xf32>
    %cst_23 = arith.constant dense<0.000000e+00> : vector<16x32xf32>
    %99 = tpu.matmul %97, %98, %cst_23 {dimension_numbers = #tpu.dot_dimension_numbers<[1], [0], [0], [1], [0, 0, 1, 1], [], []>} : vector<16x32xf32>, vector<32x32xf32>, vector<16x32xf32> -> vector<16x32xf32>
    %100 = vector.extract_strided_slice %0 {offsets = [3, 0], sizes = [1, 32], strides = [1, 1]} : vector<21x96xf32> to vector<1x32xf32>
    %101 = vector.broadcast %100 : vector<1x32xf32> to vector<16x32xf32>
    %102 = arith.addf %99, %101 : vector<16x32xf32>
    %103 = arith.addf %102, %40 : vector<16x32xf32>
    %104 = vector.extract_strided_slice %0 {offsets = [4, 0], sizes = [1, 32], strides = [1, 1]} : vector<21x96xf32> to vector<1x32xf32>
    %105 = vector.extract_strided_slice %0 {offsets = [5, 0], sizes = [1, 32], strides = [1, 1]} : vector<21x96xf32> to vector<1x32xf32>
    %cst_24 = arith.constant dense<0.000000e+00> : vector<16xf32>
    %106 = vector.multi_reduction <add>, %103, %cst_24 [1] : vector<16x32xf32> to vector<16xf32>
    %107 = vector.shape_cast %106 : vector<16xf32> to vector<16x1xf32>
    %cst_25 = arith.constant 3.200000e+01 : f32
    %108 = vector.broadcast %cst_25 : f32 to vector<16x1xf32>
    %109 = arith.divf %107, %108 : vector<16x1xf32>
    %110 = vector.broadcast %109 : vector<16x1xf32> to vector<16x32xf32>
    %111 = arith.subf %103, %110 : vector<16x32xf32>
    %112 = arith.mulf %111, %111 : vector<16x32xf32>
    %cst_26 = arith.constant dense<0.000000e+00> : vector<16xf32>
    %113 = vector.multi_reduction <add>, %112, %cst_26 [1] : vector<16x32xf32> to vector<16xf32>
    %114 = vector.shape_cast %113 : vector<16xf32> to vector<16x1xf32>
    %cst_27 = arith.constant 3.200000e+01 : f32
    %115 = vector.broadcast %cst_27 : f32 to vector<16x1xf32>
    %116 = arith.divf %114, %115 : vector<16x1xf32>
    %cst_28 = arith.constant 9.99999996E-13 : f32
    %117 = vector.broadcast %cst_28 : f32 to vector<16x1xf32>
    %118 = arith.addf %116, %117 : vector<16x1xf32>
    %119 = math.rsqrt %118 : vector<16x1xf32>
    %120 = vector.broadcast %119 : vector<16x1xf32> to vector<16x32xf32>
    %121 = arith.mulf %111, %120 : vector<16x32xf32>
    %122 = vector.broadcast %104 : vector<1x32xf32> to vector<16x32xf32>
    %123 = arith.mulf %121, %122 : vector<16x32xf32>
    %124 = vector.broadcast %105 : vector<1x32xf32> to vector<16x32xf32>
    %125 = arith.addf %123, %124 : vector<16x32xf32>
    %c64 = arith.constant 64 : index
    %c0_29 = arith.constant 0 : index
    %126 = vector.load %arg2[%c64, %c0_29] : memref<434x96xf32, #tpu.memory_space<vmem>>, vector<32x64xf32>
    %cst_30 = arith.constant dense<0.000000e+00> : vector<16x64xf32>
    %127 = tpu.matmul %125, %126, %cst_30 {dimension_numbers = #tpu.dot_dimension_numbers<[1], [0], [0], [1], [0, 0, 1, 1], [], []>} : vector<16x32xf32>, vector<32x64xf32>, vector<16x64xf32> -> vector<16x64xf32>
    %128 = vector.extract_strided_slice %0 {offsets = [6, 0], sizes = [1, 64], strides = [1, 1]} : vector<21x96xf32> to vector<1x64xf32>
    %129 = vector.broadcast %128 : vector<1x64xf32> to vector<16x64xf32>
    %130 = arith.addf %127, %129 : vector<16x64xf32>
    %cst_31 = arith.constant 5.000000e-01 : f32
    %131 = vector.broadcast %cst_31 : f32 to vector<16x64xf32>
    %132 = arith.mulf %131, %130 : vector<16x64xf32>
    %cst_32 = arith.constant 0.707106769 : f32
    %133 = vector.broadcast %cst_32 : f32 to vector<16x64xf32>
    %134 = arith.mulf %130, %133 : vector<16x64xf32>
    %135 = math.absf %134 : vector<16x64xf32>
    %cst_33 = arith.constant 0.327591091 : f32
    %136 = vector.broadcast %cst_33 : f32 to vector<16x64xf32>
    %137 = arith.mulf %136, %135 : vector<16x64xf32>
    %cst_34 = arith.constant 1.000000e+00 : f32
    %138 = vector.broadcast %cst_34 : f32 to vector<16x64xf32>
    %139 = arith.addf %138, %137 : vector<16x64xf32>
    %cst_35 = arith.constant 1.000000e+00 : f32
    %140 = vector.broadcast %cst_35 : f32 to vector<16x64xf32>
    %141 = arith.divf %140, %139 : vector<16x64xf32>
    %cst_36 = arith.constant 1.06140542 : f32
    %142 = vector.broadcast %cst_36 : f32 to vector<16x64xf32>
    %143 = arith.mulf %141, %142 : vector<16x64xf32>
    %cst_37 = arith.constant -1.45315206 : f32
    %144 = vector.broadcast %cst_37 : f32 to vector<16x64xf32>
    %145 = arith.addf %144, %143 : vector<16x64xf32>
    %146 = arith.mulf %141, %145 : vector<16x64xf32>
    %cst_38 = arith.constant 1.42141378 : f32
    %147 = vector.broadcast %cst_38 : f32 to vector<16x64xf32>
    %148 = arith.addf %147, %146 : vector<16x64xf32>
    %149 = arith.mulf %141, %148 : vector<16x64xf32>
    %cst_39 = arith.constant -0.284496725 : f32
    %150 = vector.broadcast %cst_39 : f32 to vector<16x64xf32>
    %151 = arith.addf %150, %149 : vector<16x64xf32>
    %152 = arith.mulf %141, %151 : vector<16x64xf32>
    %cst_40 = arith.constant 0.254829586 : f32
    %153 = vector.broadcast %cst_40 : f32 to vector<16x64xf32>
    %154 = arith.addf %153, %152 : vector<16x64xf32>
    %155 = arith.mulf %141, %154 : vector<16x64xf32>
    %cst_41 = arith.constant 0.000000e+00 : f32
    %156 = vector.broadcast %cst_41 : f32 to vector<16x64xf32>
    %157 = arith.subf %156, %135 : vector<16x64xf32>
    %158 = arith.mulf %157, %135 : vector<16x64xf32>
    %159 = math.exp %158 : vector<16x64xf32>
    %160 = arith.mulf %155, %159 : vector<16x64xf32>
    %cst_42 = arith.constant 1.000000e+00 : f32
    %161 = vector.broadcast %cst_42 : f32 to vector<16x64xf32>
    %162 = arith.subf %161, %160 : vector<16x64xf32>
    %cst_43 = arith.constant 0.000000e+00 : f32
    %163 = vector.broadcast %cst_43 : f32 to vector<16x64xf32>
    %164 = arith.cmpf oge, %134, %163 : vector<16x64xf32>
    %cst_44 = arith.constant 0.000000e+00 : f32
    %165 = vector.broadcast %cst_44 : f32 to vector<16x64xf32>
    %166 = arith.subf %165, %162 : vector<16x64xf32>
    %167 = arith.select %164, %162, %166 : vector<16x64xi1>, vector<16x64xf32>
    %cst_45 = arith.constant 1.000000e+00 : f32
    %168 = vector.broadcast %cst_45 : f32 to vector<16x64xf32>
    %169 = arith.addf %168, %167 : vector<16x64xf32>
    %170 = arith.mulf %132, %169 : vector<16x64xf32>
    %c96 = arith.constant 96 : index
    %c0_46 = arith.constant 0 : index
    %171 = vector.load %arg2[%c96, %c0_46] : memref<434x96xf32, #tpu.memory_space<vmem>>, vector<64x32xf32>
    %cst_47 = arith.constant dense<0.000000e+00> : vector<16x32xf32>
    %172 = tpu.matmul %170, %171, %cst_47 {dimension_numbers = #tpu.dot_dimension_numbers<[1], [0], [0], [1], [0, 0, 1, 1], [], []>} : vector<16x64xf32>, vector<64x32xf32>, vector<16x32xf32> -> vector<16x32xf32>
    %173 = vector.extract_strided_slice %0 {offsets = [7, 0], sizes = [1, 32], strides = [1, 1]} : vector<21x96xf32> to vector<1x32xf32>
    %174 = vector.broadcast %173 : vector<1x32xf32> to vector<16x32xf32>
    %175 = arith.addf %172, %174 : vector<16x32xf32>
    %176 = arith.addf %175, %125 : vector<16x32xf32>
    %177 = vector.extract_strided_slice %0 {offsets = [8, 0], sizes = [1, 32], strides = [1, 1]} : vector<21x96xf32> to vector<1x32xf32>
    %178 = vector.extract_strided_slice %0 {offsets = [9, 0], sizes = [1, 32], strides = [1, 1]} : vector<21x96xf32> to vector<1x32xf32>
    %cst_48 = arith.constant dense<0.000000e+00> : vector<16xf32>
    %179 = vector.multi_reduction <add>, %176, %cst_48 [1] : vector<16x32xf32> to vector<16xf32>
    %180 = vector.shape_cast %179 : vector<16xf32> to vector<16x1xf32>
    %cst_49 = arith.constant 3.200000e+01 : f32
    %181 = vector.broadcast %cst_49 : f32 to vector<16x1xf32>
    %182 = arith.divf %180, %181 : vector<16x1xf32>
    %183 = vector.broadcast %182 : vector<16x1xf32> to vector<16x32xf32>
    %184 = arith.subf %176, %183 : vector<16x32xf32>
    %185 = arith.mulf %184, %184 : vector<16x32xf32>
    %cst_50 = arith.constant dense<0.000000e+00> : vector<16xf32>
    %186 = vector.multi_reduction <add>, %185, %cst_50 [1] : vector<16x32xf32> to vector<16xf32>
    %187 = vector.shape_cast %186 : vector<16xf32> to vector<16x1xf32>
    %cst_51 = arith.constant 3.200000e+01 : f32
    %188 = vector.broadcast %cst_51 : f32 to vector<16x1xf32>
    %189 = arith.divf %187, %188 : vector<16x1xf32>
    %cst_52 = arith.constant 9.99999996E-13 : f32
    %190 = vector.broadcast %cst_52 : f32 to vector<16x1xf32>
    %191 = arith.addf %189, %190 : vector<16x1xf32>
    %192 = math.rsqrt %191 : vector<16x1xf32>
    %193 = vector.broadcast %192 : vector<16x1xf32> to vector<16x32xf32>
    %194 = arith.mulf %184, %193 : vector<16x32xf32>
    %195 = vector.broadcast %177 : vector<1x32xf32> to vector<16x32xf32>
    %196 = arith.mulf %194, %195 : vector<16x32xf32>
    %197 = vector.broadcast %178 : vector<1x32xf32> to vector<16x32xf32>
    %198 = arith.addf %196, %197 : vector<16x32xf32>
    %c160 = arith.constant 160 : index
    %c0_53 = arith.constant 0 : index
    %199 = vector.load %arg2[%c160, %c0_53] : memref<434x96xf32, #tpu.memory_space<vmem>>, vector<32x96xf32>
    %cst_54 = arith.constant dense<0.000000e+00> : vector<16x96xf32>
    %200 = tpu.matmul %198, %199, %cst_54 {dimension_numbers = #tpu.dot_dimension_numbers<[1], [0], [0], [1], [0, 0, 1, 1], [], []>} : vector<16x32xf32>, vector<32x96xf32>, vector<16x96xf32> -> vector<16x96xf32>
    %201 = vector.extract_strided_slice %0 {offsets = [10, 0], sizes = [1, 96], strides = [1, 1]} : vector<21x96xf32> to vector<1x96xf32>
    %202 = vector.broadcast %201 : vector<1x96xf32> to vector<16x96xf32>
    %203 = arith.addf %200, %202 : vector<16x96xf32>
    %204 = vector.extract_strided_slice %203 {offsets = [0, 0], sizes = [16, 8], strides = [1, 1]} : vector<16x96xf32> to vector<16x8xf32>
    %205 = vector.extract_strided_slice %203 {offsets = [0, 8], sizes = [16, 8], strides = [1, 1]} : vector<16x96xf32> to vector<16x8xf32>
    %206 = vector.extract_strided_slice %203 {offsets = [0, 16], sizes = [16, 8], strides = [1, 1]} : vector<16x96xf32> to vector<16x8xf32>
    %207 = vector.extract_strided_slice %203 {offsets = [0, 24], sizes = [16, 8], strides = [1, 1]} : vector<16x96xf32> to vector<16x8xf32>
    %208 = tpu.concatenate %204, %205, %206, %207 in 0 : vector<16x8xf32>, vector<16x8xf32>, vector<16x8xf32>, vector<16x8xf32> -> vector<64x8xf32>
    %209 = vector.shape_cast %208 : vector<64x8xf32> to vector<8x8x8xf32>
    %210 = vector.extract_strided_slice %203 {offsets = [0, 32], sizes = [16, 8], strides = [1, 1]} : vector<16x96xf32> to vector<16x8xf32>
    %211 = vector.extract_strided_slice %203 {offsets = [0, 40], sizes = [16, 8], strides = [1, 1]} : vector<16x96xf32> to vector<16x8xf32>
    %212 = vector.extract_strided_slice %203 {offsets = [0, 48], sizes = [16, 8], strides = [1, 1]} : vector<16x96xf32> to vector<16x8xf32>
    %213 = vector.extract_strided_slice %203 {offsets = [0, 56], sizes = [16, 8], strides = [1, 1]} : vector<16x96xf32> to vector<16x8xf32>
    %214 = tpu.concatenate %210, %211, %212, %213 in 0 : vector<16x8xf32>, vector<16x8xf32>, vector<16x8xf32>, vector<16x8xf32> -> vector<64x8xf32>
    %215 = vector.shape_cast %214 : vector<64x8xf32> to vector<8x8x8xf32>
    %216 = vector.extract_strided_slice %203 {offsets = [0, 64], sizes = [16, 8], strides = [1, 1]} : vector<16x96xf32> to vector<16x8xf32>
    %217 = vector.extract_strided_slice %203 {offsets = [0, 72], sizes = [16, 8], strides = [1, 1]} : vector<16x96xf32> to vector<16x8xf32>
    %218 = vector.extract_strided_slice %203 {offsets = [0, 80], sizes = [16, 8], strides = [1, 1]} : vector<16x96xf32> to vector<16x8xf32>
    %219 = vector.extract_strided_slice %203 {offsets = [0, 88], sizes = [16, 8], strides = [1, 1]} : vector<16x96xf32> to vector<16x8xf32>
    %220 = tpu.concatenate %216, %217, %218, %219 in 0 : vector<16x8xf32>, vector<16x8xf32>, vector<16x8xf32>, vector<16x8xf32> -> vector<64x8xf32>
    %221 = vector.shape_cast %220 : vector<64x8xf32> to vector<8x8x8xf32>
    "tpu.trace_start"() <{level = 10 : i32, message = "bqd,bkd->bqk"}> : () -> ()
    %cst_55 = arith.constant dense<0.000000e+00> : vector<8x8x8xf32>
    %222 = tpu.matmul %209, %215, %cst_55 {dimension_numbers = #tpu.dot_dimension_numbers<[2], [2], [1], [1], [0, 0, 0, 1, 1, 1], [0], [0]>} : vector<8x8x8xf32>, vector<8x8x8xf32>, vector<8x8x8xf32> -> vector<8x8x8xf32>
    "tpu.trace_stop"() : () -> ()
    %223 = vector.broadcast %50 : vector<8x1x8xf32> to vector<8x8x8xf32>
    %224 = arith.addf %222, %223 : vector<8x8x8xf32>
    %cst_56 = arith.constant dense<0xFF800000> : vector<8x8xf32>
    %225 = vector.multi_reduction <maximumf>, %224, %cst_56 [2] : vector<8x8x8xf32> to vector<8x8xf32>
    %226 = vector.shape_cast %225 : vector<8x8xf32> to vector<8x8x1xf32>
    %227 = vector.broadcast %226 : vector<8x8x1xf32> to vector<8x8x8xf32>
    %228 = arith.subf %224, %227 : vector<8x8x8xf32>
    %229 = math.exp %228 : vector<8x8x8xf32>
    %cst_57 = arith.constant dense<0.000000e+00> : vector<8x8xf32>
    %230 = vector.multi_reduction <add>, %229, %cst_57 [2] : vector<8x8x8xf32> to vector<8x8xf32>
    %231 = vector.shape_cast %230 : vector<8x8xf32> to vector<8x8x1xf32>
    %232 = tpu.reciprocal %231 {approx = true} : vector<8x8x1xf32> -> vector<8x8x1xf32>
    %233 = vector.broadcast %232 : vector<8x8x1xf32> to vector<8x8x8xf32>
    %234 = arith.mulf %229, %233 : vector<8x8x8xf32>
    "tpu.trace_start"() <{level = 10 : i32, message = "bqk,bkd->bqd"}> : () -> ()
    %cst_58 = arith.constant dense<0.000000e+00> : vector<8x8x8xf32>
    %235 = tpu.matmul %234, %221, %cst_58 {dimension_numbers = #tpu.dot_dimension_numbers<[2], [1], [1], [2], [0, 0, 0, 1, 1, 2], [0], [0]>} : vector<8x8x8xf32>, vector<8x8x8xf32>, vector<8x8x8xf32> -> vector<8x8x8xf32>
    "tpu.trace_stop"() : () -> ()
    %236 = vector.shape_cast %235 : vector<8x8x8xf32> to vector<4x16x8xf32>
    %237 = vector.extract_strided_slice %236 {offsets = [0, 0, 0], sizes = [1, 16, 8], strides = [1, 1, 1]} : vector<4x16x8xf32> to vector<1x16x8xf32>
    %238 = vector.shape_cast %237 : vector<1x16x8xf32> to vector<16x8xf32>
    %239 = vector.extract_strided_slice %236 {offsets = [1, 0, 0], sizes = [1, 16, 8], strides = [1, 1, 1]} : vector<4x16x8xf32> to vector<1x16x8xf32>
    %240 = vector.shape_cast %239 : vector<1x16x8xf32> to vector<16x8xf32>
    %241 = vector.extract_strided_slice %236 {offsets = [2, 0, 0], sizes = [1, 16, 8], strides = [1, 1, 1]} : vector<4x16x8xf32> to vector<1x16x8xf32>
    %242 = vector.shape_cast %241 : vector<1x16x8xf32> to vector<16x8xf32>
    %243 = vector.extract_strided_slice %236 {offsets = [3, 0, 0], sizes = [1, 16, 8], strides = [1, 1, 1]} : vector<4x16x8xf32> to vector<1x16x8xf32>
    %244 = vector.shape_cast %243 : vector<1x16x8xf32> to vector<16x8xf32>
    %245 = tpu.concatenate %238, %240, %242, %244 in 1 : vector<16x8xf32>, vector<16x8xf32>, vector<16x8xf32>, vector<16x8xf32> -> vector<16x32xf32>
    %c192 = arith.constant 192 : index
    %c0_59 = arith.constant 0 : index
    %246 = vector.load %arg2[%c192, %c0_59] : memref<434x96xf32, #tpu.memory_space<vmem>>, vector<32x32xf32>
    %cst_60 = arith.constant dense<0.000000e+00> : vector<16x32xf32>
    %247 = tpu.matmul %245, %246, %cst_60 {dimension_numbers = #tpu.dot_dimension_numbers<[1], [0], [0], [1], [0, 0, 1, 1], [], []>} : vector<16x32xf32>, vector<32x32xf32>, vector<16x32xf32> -> vector<16x32xf32>
    %248 = vector.extract_strided_slice %0 {offsets = [11, 0], sizes = [1, 32], strides = [1, 1]} : vector<21x96xf32> to vector<1x32xf32>
    %249 = vector.broadcast %248 : vector<1x32xf32> to vector<16x32xf32>
    %250 = arith.addf %247, %249 : vector<16x32xf32>
    %251 = arith.addf %250, %198 : vector<16x32xf32>
    %252 = vector.extract_strided_slice %0 {offsets = [12, 0], sizes = [1, 32], strides = [1, 1]} : vector<21x96xf32> to vector<1x32xf32>
    %253 = vector.extract_strided_slice %0 {offsets = [13, 0], sizes = [1, 32], strides = [1, 1]} : vector<21x96xf32> to vector<1x32xf32>
    %cst_61 = arith.constant dense<0.000000e+00> : vector<16xf32>
    %254 = vector.multi_reduction <add>, %251, %cst_61 [1] : vector<16x32xf32> to vector<16xf32>
    %255 = vector.shape_cast %254 : vector<16xf32> to vector<16x1xf32>
    %cst_62 = arith.constant 3.200000e+01 : f32
    %256 = vector.broadcast %cst_62 : f32 to vector<16x1xf32>
    %257 = arith.divf %255, %256 : vector<16x1xf32>
    %258 = vector.broadcast %257 : vector<16x1xf32> to vector<16x32xf32>
    %259 = arith.subf %251, %258 : vector<16x32xf32>
    %260 = arith.mulf %259, %259 : vector<16x32xf32>
    %cst_63 = arith.constant dense<0.000000e+00> : vector<16xf32>
    %261 = vector.multi_reduction <add>, %260, %cst_63 [1] : vector<16x32xf32> to vector<16xf32>
    %262 = vector.shape_cast %261 : vector<16xf32> to vector<16x1xf32>
    %cst_64 = arith.constant 3.200000e+01 : f32
    %263 = vector.broadcast %cst_64 : f32 to vector<16x1xf32>
    %264 = arith.divf %262, %263 : vector<16x1xf32>
    %cst_65 = arith.constant 9.99999996E-13 : f32
    %265 = vector.broadcast %cst_65 : f32 to vector<16x1xf32>
    %266 = arith.addf %264, %265 : vector<16x1xf32>
    %267 = math.rsqrt %266 : vector<16x1xf32>
    %268 = vector.broadcast %267 : vector<16x1xf32> to vector<16x32xf32>
    %269 = arith.mulf %259, %268 : vector<16x32xf32>
    %270 = vector.broadcast %252 : vector<1x32xf32> to vector<16x32xf32>
    %271 = arith.mulf %269, %270 : vector<16x32xf32>
    %272 = vector.broadcast %253 : vector<1x32xf32> to vector<16x32xf32>
    %273 = arith.addf %271, %272 : vector<16x32xf32>
    %c224 = arith.constant 224 : index
    %c0_66 = arith.constant 0 : index
    %274 = vector.load %arg2[%c224, %c0_66] : memref<434x96xf32, #tpu.memory_space<vmem>>, vector<32x64xf32>
    %cst_67 = arith.constant dense<0.000000e+00> : vector<16x64xf32>
    %275 = tpu.matmul %273, %274, %cst_67 {dimension_numbers = #tpu.dot_dimension_numbers<[1], [0], [0], [1], [0, 0, 1, 1], [], []>} : vector<16x32xf32>, vector<32x64xf32>, vector<16x64xf32> -> vector<16x64xf32>
    %276 = vector.extract_strided_slice %0 {offsets = [14, 0], sizes = [1, 64], strides = [1, 1]} : vector<21x96xf32> to vector<1x64xf32>
    %277 = vector.broadcast %276 : vector<1x64xf32> to vector<16x64xf32>
    %278 = arith.addf %275, %277 : vector<16x64xf32>
    %cst_68 = arith.constant 5.000000e-01 : f32
    %279 = vector.broadcast %cst_68 : f32 to vector<16x64xf32>
    %280 = arith.mulf %279, %278 : vector<16x64xf32>
    %cst_69 = arith.constant 0.707106769 : f32
    %281 = vector.broadcast %cst_69 : f32 to vector<16x64xf32>
    %282 = arith.mulf %278, %281 : vector<16x64xf32>
    %283 = math.absf %282 : vector<16x64xf32>
    %cst_70 = arith.constant 0.327591091 : f32
    %284 = vector.broadcast %cst_70 : f32 to vector<16x64xf32>
    %285 = arith.mulf %284, %283 : vector<16x64xf32>
    %cst_71 = arith.constant 1.000000e+00 : f32
    %286 = vector.broadcast %cst_71 : f32 to vector<16x64xf32>
    %287 = arith.addf %286, %285 : vector<16x64xf32>
    %cst_72 = arith.constant 1.000000e+00 : f32
    %288 = vector.broadcast %cst_72 : f32 to vector<16x64xf32>
    %289 = arith.divf %288, %287 : vector<16x64xf32>
    %cst_73 = arith.constant 1.06140542 : f32
    %290 = vector.broadcast %cst_73 : f32 to vector<16x64xf32>
    %291 = arith.mulf %289, %290 : vector<16x64xf32>
    %cst_74 = arith.constant -1.45315206 : f32
    %292 = vector.broadcast %cst_74 : f32 to vector<16x64xf32>
    %293 = arith.addf %292, %291 : vector<16x64xf32>
    %294 = arith.mulf %289, %293 : vector<16x64xf32>
    %cst_75 = arith.constant 1.42141378 : f32
    %295 = vector.broadcast %cst_75 : f32 to vector<16x64xf32>
    %296 = arith.addf %295, %294 : vector<16x64xf32>
    %297 = arith.mulf %289, %296 : vector<16x64xf32>
    %cst_76 = arith.constant -0.284496725 : f32
    %298 = vector.broadcast %cst_76 : f32 to vector<16x64xf32>
    %299 = arith.addf %298, %297 : vector<16x64xf32>
    %300 = arith.mulf %289, %299 : vector<16x64xf32>
    %cst_77 = arith.constant 0.254829586 : f32
    %301 = vector.broadcast %cst_77 : f32 to vector<16x64xf32>
    %302 = arith.addf %301, %300 : vector<16x64xf32>
    %303 = arith.mulf %289, %302 : vector<16x64xf32>
    %cst_78 = arith.constant 0.000000e+00 : f32
    %304 = vector.broadcast %cst_78 : f32 to vector<16x64xf32>
    %305 = arith.subf %304, %283 : vector<16x64xf32>
    %306 = arith.mulf %305, %283 : vector<16x64xf32>
    %307 = math.exp %306 : vector<16x64xf32>
    %308 = arith.mulf %303, %307 : vector<16x64xf32>
    %cst_79 = arith.constant 1.000000e+00 : f32
    %309 = vector.broadcast %cst_79 : f32 to vector<16x64xf32>
    %310 = arith.subf %309, %308 : vector<16x64xf32>
    %cst_80 = arith.constant 0.000000e+00 : f32
    %311 = vector.broadcast %cst_80 : f32 to vector<16x64xf32>
    %312 = arith.cmpf oge, %282, %311 : vector<16x64xf32>
    %cst_81 = arith.constant 0.000000e+00 : f32
    %313 = vector.broadcast %cst_81 : f32 to vector<16x64xf32>
    %314 = arith.subf %313, %310 : vector<16x64xf32>
    %315 = arith.select %312, %310, %314 : vector<16x64xi1>, vector<16x64xf32>
    %cst_82 = arith.constant 1.000000e+00 : f32
    %316 = vector.broadcast %cst_82 : f32 to vector<16x64xf32>
    %317 = arith.addf %316, %315 : vector<16x64xf32>
    %318 = arith.mulf %280, %317 : vector<16x64xf32>
    %c256 = arith.constant 256 : index
    %c0_83 = arith.constant 0 : index
    %319 = vector.load %arg2[%c256, %c0_83] : memref<434x96xf32, #tpu.memory_space<vmem>>, vector<64x32xf32>
    %cst_84 = arith.constant dense<0.000000e+00> : vector<16x32xf32>
    %320 = tpu.matmul %318, %319, %cst_84 {dimension_numbers = #tpu.dot_dimension_numbers<[1], [0], [0], [1], [0, 0, 1, 1], [], []>} : vector<16x64xf32>, vector<64x32xf32>, vector<16x32xf32> -> vector<16x32xf32>
    %321 = vector.extract_strided_slice %0 {offsets = [15, 0], sizes = [1, 32], strides = [1, 1]} : vector<21x96xf32> to vector<1x32xf32>
    %322 = vector.broadcast %321 : vector<1x32xf32> to vector<16x32xf32>
    %323 = arith.addf %320, %322 : vector<16x32xf32>
    %324 = arith.addf %323, %273 : vector<16x32xf32>
    %325 = vector.extract_strided_slice %0 {offsets = [16, 0], sizes = [1, 32], strides = [1, 1]} : vector<21x96xf32> to vector<1x32xf32>
    %326 = vector.extract_strided_slice %0 {offsets = [17, 0], sizes = [1, 32], strides = [1, 1]} : vector<21x96xf32> to vector<1x32xf32>
    %cst_85 = arith.constant dense<0.000000e+00> : vector<16xf32>
    %327 = vector.multi_reduction <add>, %324, %cst_85 [1] : vector<16x32xf32> to vector<16xf32>
    %328 = vector.shape_cast %327 : vector<16xf32> to vector<16x1xf32>
    %cst_86 = arith.constant 3.200000e+01 : f32
    %329 = vector.broadcast %cst_86 : f32 to vector<16x1xf32>
    %330 = arith.divf %328, %329 : vector<16x1xf32>
    %331 = vector.broadcast %330 : vector<16x1xf32> to vector<16x32xf32>
    %332 = arith.subf %324, %331 : vector<16x32xf32>
    %333 = arith.mulf %332, %332 : vector<16x32xf32>
    %cst_87 = arith.constant dense<0.000000e+00> : vector<16xf32>
    %334 = vector.multi_reduction <add>, %333, %cst_87 [1] : vector<16x32xf32> to vector<16xf32>
    %335 = vector.shape_cast %334 : vector<16xf32> to vector<16x1xf32>
    %cst_88 = arith.constant 3.200000e+01 : f32
    %336 = vector.broadcast %cst_88 : f32 to vector<16x1xf32>
    %337 = arith.divf %335, %336 : vector<16x1xf32>
    %cst_89 = arith.constant 9.99999996E-13 : f32
    %338 = vector.broadcast %cst_89 : f32 to vector<16x1xf32>
    %339 = arith.addf %337, %338 : vector<16x1xf32>
    %340 = math.rsqrt %339 : vector<16x1xf32>
    %341 = vector.broadcast %340 : vector<16x1xf32> to vector<16x32xf32>
    %342 = arith.mulf %332, %341 : vector<16x32xf32>
    %343 = vector.broadcast %325 : vector<1x32xf32> to vector<16x32xf32>
    %344 = arith.mulf %342, %343 : vector<16x32xf32>
    %345 = vector.broadcast %326 : vector<1x32xf32> to vector<16x32xf32>
    %346 = arith.addf %344, %345 : vector<16x32xf32>
    %347 = vector.shape_cast %346 : vector<16x32xf32> to vector<2x8x32xf32>
    %348 = vector.extract_strided_slice %347 {offsets = [0, 0, 0], sizes = [2, 1, 32], strides = [1, 1, 1]} : vector<2x8x32xf32> to vector<2x1x32xf32>
    %349 = vector.shape_cast %348 : vector<2x1x32xf32> to vector<2x32xf32>
    %c320 = arith.constant 320 : index
    %c0_90 = arith.constant 0 : index
    %350 = vector.load %arg2[%c320, %c0_90] : memref<434x96xf32, #tpu.memory_space<vmem>>, vector<32x32xf32>
    %cst_91 = arith.constant dense<0.000000e+00> : vector<2x32xf32>
    %351 = tpu.matmul %349, %350, %cst_91 {dimension_numbers = #tpu.dot_dimension_numbers<[1], [0], [0], [1], [0, 0, 1, 1], [], []>} : vector<2x32xf32>, vector<32x32xf32>, vector<2x32xf32> -> vector<2x32xf32>
    %352 = vector.extract_strided_slice %0 {offsets = [18, 0], sizes = [1, 32], strides = [1, 1]} : vector<21x96xf32> to vector<1x32xf32>
    %353 = vector.broadcast %352 : vector<1x32xf32> to vector<2x32xf32>
    %354 = arith.addf %351, %353 : vector<2x32xf32>
    %355 = math.tanh %354 : vector<2x32xf32>
    %356 = vector.extract_strided_slice %0 {offsets = [19, 0], sizes = [1, 32], strides = [1, 1]} : vector<21x96xf32> to vector<1x32xf32>
    %357 = vector.broadcast %356 : vector<1x32xf32> to vector<2x32xf32>
    %358 = arith.mulf %355, %357 : vector<2x32xf32>
    %cst_92 = arith.constant dense<0.000000e+00> : vector<2xf32>
    %359 = vector.multi_reduction <add>, %358, %cst_92 [1] : vector<2x32xf32> to vector<2xf32>
    %360 = vector.shape_cast %359 : vector<2xf32> to vector<2x1xf32>
    %361 = vector.extract_strided_slice %0 {offsets = [20, 0], sizes = [1, 1], strides = [1, 1]} : vector<21x96xf32> to vector<1x1xf32>
    %362 = vector.broadcast %361 : vector<1x1xf32> to vector<2x1xf32>
    %363 = arith.addf %360, %362 : vector<2x1xf32>
    %cst_93 = arith.constant 5.000000e-01 : f32
    %364 = vector.broadcast %cst_93 : f32 to vector<2x1xf32>
    %365 = arith.mulf %364, %363 : vector<2x1xf32>
    %366 = math.tanh %365 : vector<2x1xf32>
    %cst_94 = arith.constant 1.000000e+00 : f32
    %367 = vector.broadcast %cst_94 : f32 to vector<2x1xf32>
    %368 = arith.addf %367, %366 : vector<2x1xf32>
    %cst_95 = arith.constant 5.000000e-01 : f32
    %369 = vector.broadcast %cst_95 : f32 to vector<2x1xf32>
    %370 = arith.mulf %369, %368 : vector<2x1xf32>
    %cst_96 = arith.constant 1.000000e+01 : f32
    %371 = vector.broadcast %cst_96 : f32 to vector<2x1xf32>
    %372 = arith.mulf %370, %371 : vector<2x1xf32>
    %c0_97 = arith.constant 0 : index
    %c0_98 = arith.constant 0 : index
    %373 = vector.load %arg4[%c0_97, %c0_98] : memref<2x1xf32, #tpu.memory_space<vmem>>, vector<2x1xf32>
    tpu.vector_store %arg4[%c0_97, %c0_98], %372 {strides = array<i32>} : memref<2x1xf32, #tpu.memory_space<vmem>>, vector<2x1xf32>,
    return
  }
}

</mosaic_0001>

<llo_original>
// kernel: bert_regressor_forward.1
$region0: #{bert_regressor_forward.1}
  #allocation0 [shape = 'u32[]', space=smem, size = 0x4, offset = 0x4, fixed_abs, tag = 'smem constant byte address 0x4 - core index']
  #allocation1 [shape = 'u32[144,128]{1,0:T(1,128)}', space=vmem, size = 0x12000, scoped, tag = 'internal scratch']
  %s0 = inlined_call_operand.vmem [shape: s32[16,1], index: 0, kind: input, shape index: {}]
  %s1 = inlined_call_operand.vmem [shape: s32[2,8], index: 1, kind: input, shape index: {}]
  %s2 = inlined_call_operand.vmem [shape: f32[434,96], index: 2, kind: input, shape index: {}]
  %s3 = inlined_call_operand.vmem [shape: f32[21,96], index: 3, kind: input, shape index: {}]
  %s4 = inlined_call_operand.vmem [shape: f32[2,1], index: 4, kind: output, shape index: {}]
  %s5 = sld [smem:[#allocation0]]
  $region26: #{bert_regressor_forward.1} parent=0
    _
  %s7 = ssub.s32 1, %s5
  %s8 = scalar_select 0, %s7, %s5
  // Predicated region
  $region2: #{bert_regressor_forward.1} parent=0 // pred_check
    _
  $region3: #{bert_regressor_forward.1} parent=0 // pred_check_branch
    %10 = sbr.rel (0) target = $region5
  $region4: #{bert_regressor_forward.1} parent=0 // pred_region
    _
  $region5: #{bert_regressor_forward.1} parent=0 // pred_fallthru
    _
  // Predicated region
  $region6: #{bert_regressor_forward.1} parent=0 // pred_check
    _
  $region7: #{bert_regressor_forward.1} parent=0 // pred_check_branch
    %12 = sbr.rel (0) target = $region9
  $region8: #{bert_regressor_forward.1} parent=0 // pred_region
    _
  $region9: #{bert_regressor_forward.1} parent=0 // pred_fallthru
    _
  // Predicated region
  $region10: #{bert_regressor_forward.1} parent=0 // pred_check
    _
  $region11: #{bert_regressor_forward.1} parent=0 // pred_check_branch
    %14 = sbr.rel (0) target = $region13
  $region12: #{bert_regressor_forward.1} parent=0 // pred_region
    _
  $region13: #{bert_regressor_forward.1} parent=0 // pred_fallthru
    _
  // Predicated region
  $region14: #{bert_regressor_forward.1} parent=0 // pred_check
    _
  $region15: #{bert_regressor_forward.1} parent=0 // pred_check_branch
    %16 = sbr.rel (0) target = $region17
  $region16: #{bert_regressor_forward.1} parent=0 // pred_region
    _
  $region17: #{bert_regressor_forward.1} parent=0 // pred_fallthru
    _
  %v17 = vld [vmem:[%s3] sm:$0xff]
  %v18 = vld [vmem:[%s3 + $0x8] sm:$0xff]
  %v19 = vld [vmem:[%s3 + $0x10] sm:$0x1f]
  %v20 = vld [vmem:[%s0] sm:$0xff]
  %v21 = vld [vmem:[%s0 + $0x8] sm:$0xff]
  %v22 = vlaneseq
  %v23 = vand.u32 %v22, 127
  %24 = vset.pattern.permute.xlu0 0
  %25 = vperm.xlu0 %24, %v20
  %v26 = vpop.permute.xlu0 %25
  %27 = vset.pattern.permute.xlu0 0
  %28 = vperm.xlu0 %27, %v21
  %v29 = vpop.permute.xlu0 %28
  %vm30 = vcmp.eq.s32.totalorder %v23, %v26
  %vm31 = vcmp.eq.s32.totalorder %v23, %v29
  %v32 = vsel %vm30, 1, 0
  %v33 = vsel %vm31, 1, 0
  %v34 = vcvt.s32.f32 %v32
  %v35 = vcvt.s32.f32 %v33
  %v36 = vld [vmem:[%s2 + $0x160] sm:$0xff]
  %v37 = vld [vmem:[%s2 + $0x168] sm:$0xff]
  %v38 = vld [vmem:[%s2 + $0x170] sm:$0xff]
  %v39 = vld [vmem:[%s2 + $0x178] sm:$0xff]
  %v40 = vld [vmem:[%s2 + $0x180] sm:$0xff]
  %v41 = vld [vmem:[%s2 + $0x188] sm:$0xff]
  %v42 = vld [vmem:[%s2 + $0x190] sm:$0xff]
  %v43 = vld [vmem:[%s2 + $0x198] sm:$0xff]
  %vm44 = vcmask 523264
  %v46 = vsel %vm44, %v34, 0
  %v49 = vsel %vm44, %v35, 0
  %51 = vmatprep.subr.mxu0 0.0
  %52 = vmatpush1.msra.mxu0 %v36
  %53 = vmatprep.subr.mxu0 0.0
  %54 = vmatpush1.msra.mxu0 %v37
  %55 = vmatprep.subr.mxu0 0.0
  %56 = vmatpush1.msra.mxu0 %v38
  %57 = vmatprep.subr.mxu0 0.0
  %58 = vmatpush1.msra.mxu0 %v39
  %59 = vmatprep.subr.mxu0 0.0
  %60 = vmatpush1.msra.mxu0 %v40
  %61 = vmatprep.subr.mxu0 0.0
  %62 = vmatpush1.msra.mxu0 %v41
  %63 = vmatprep.subr.mxu0 0.0
  %64 = vmatpush1.msra.mxu0 %v42
  %65 = vmatprep.subr.mxu0 0.0
  %66 = vmatpush1.msra.mxu0 %v43
  %67 = vmatprep.subr.mxu0 0.0
  %68 = vmatpush1.msra.mxu0 0.0
  %69 = vmatprep.subr.mxu0 0.0
  %70 = vmatpush1.msra.mxu0 0.0
  %71 = vmatprep.subr.mxu0 0.0
  %72 = vmatpush1.msra.mxu0 0.0
  %73 = vmatprep.subr.mxu0 0.0
  %74 = vmatpush1.msra.mxu0 0.0
  %75 = vmatprep.subr.mxu0 0.0
  %76 = vmatpush1.msra.mxu0 0.0
  %77 = vmatprep.subr.mxu0 0.0
  %78 = vmatpush1.msra.mxu0 0.0
  %79 = vmatprep.subr.mxu0 0.0
  %80 = vmatpush1.msra.mxu0 0.0
  %81 = vmatprep.subr.mxu0 0.0
  %82 = vmatpush1.msra.mxu0 0.0
  %83 = vmatprep.subr.mxu0 0.0
  %84 = vmatpush1.msra.mxu0 0.0
  %85 = vmatprep.subr.mxu0 0.0
  %86 = vmatpush1.msra.mxu0 0.0
  %87 = vmatprep.subr.mxu0 0.0
  %88 = vmatpush1.msra.mxu0 0.0
  %89 = vmatprep.subr.mxu0 0.0
  %90 = vmatpush1.msra.mxu0 0.0
  %91 = vmatprep.subr.mxu0 0.0
  %92 = vmatpush1.msra.mxu0 0.0
  %93 = vmatprep.subr.mxu0 0.0
  %94 = vmatpush1.msra.mxu0 0.0
  %95 = vmatprep.subr.mxu0 0.0
  %96 = vmatpush1.msra.mxu0 0.0
  %97 = vmatprep.subr.mxu0 0.0
  %98 = vmatpush1.msra.mxu0 0.0
  %99 = vmatprep.subr.mxu0 0.0
  %100 = vmatpush1.msra.mxu0 0.0
  %101 = vmatprep.subr.mxu0 0.0
  %102 = vmatpush1.msra.mxu0 0.0
  %103 = vmatprep.subr.mxu0 0.0
  %104 = vmatpush1.msra.mxu0 0.0
  %105 = vmatprep.subr.mxu0 0.0
  %106 = vmatpush1.msra.mxu0 0.0
  %107 = vmatprep.subr.mxu0 0.0
  %108 = vmatpush1.msra.mxu0 0.0
  %109 = vmatprep.subr.mxu0 0.0
  %110 = vmatpush1.msra.mxu0 0.0
  %111 = vmatprep.subr.mxu0 0.0
  %112 = vmatpush1.msra.mxu0 0.0
  %113 = vmatprep.subr.mxu0 0.0
  %114 = vmatpush1.msra.mxu0 0.0
  %115 = vmatprep.mubr.f32.mxu0 0.0
  %116 = vmatmul.mubr.f32.gmra.mrb[0].mxu0 %v46
  %v117 = vpop.f32.mrb[0].mxu0
  %v118 = vadd.f32 0.0, %v117
  %v119 = vpop.f32.mrb[0].mxu0
  %120 = vmatprep.mubr.f32.mxu0 0.0
  %121 = vmatmul.mubr.f32.gmra.mrb[0].mxu0 %v49
  %v122 = vpop.f32.mrb[0].mxu0
  %v123 = vadd.f32 0.0, %v122
  %v124 = vpop.f32.mrb[0].mxu0
  %125 = vdwg.mxu0
  %v126 = vld [vmem:[%s2 + $0x1a0] sm:$0xff]
  %v127 = vld [vmem:[%s2 + $0x1b0] sm:$0x1]
  %v128 = vadd.f32 %v118, %v126
  %v129 = vadd.f32 %v123, %v126
  %v130 = vlaneseq
  %v131 = vshrl.u32 %v130, 7
  %v132 = vsub.s32 0, %v131
  %v133 = vrot.slane %v127, %v132
  %v134 = vadd.f32 %v128, %v133
  %v135 = vadd.f32 %v129, %v133
  %vm136 = vcmask 261120
  %v137 = vsel %vm136, %v134, 0.0
  %138 = vadd.xlane.f32.xlu0 %v137
  %v139 = vpop.xlane.xlu0 %138
  %v140 = vsel %vm136, %v135, 0.0
  %141 = vadd.xlane.f32.xlu0 %v140
  %v142 = vpop.xlane.xlu0 %141
  %v143 = vrcp.pop 32.0
  %v144 = vmul.f32 %v139, %v143
  %v145 = vmul.f32 %v142, %v143
  %v146 = vsub.f32 %v134, %v144
  %v147 = vsub.f32 %v135, %v145
  %v148 = vmul.f32 %v146, %v146
  %v149 = vmul.f32 %v147, %v147
  %v150 = vsel %vm136, %v148, 0.0
  %151 = vadd.xlane.f32.xlu0 %v150
  %v152 = vpop.xlane.xlu0 %151
  %v153 = vsel %vm136, %v149, 0.0
  %154 = vadd.xlane.f32.xlu0 %v153
  %v155 = vpop.xlane.xlu0 %154
  %v156 = vmul.f32 %v152, %v143
  %v157 = vmul.f32 %v155, %v143
  %v158 = vadd.f32 %v156, 1e-12
  %v159 = vadd.f32 %v157, 1e-12
  %v160 = vrsqrt.pop %v158
  %v161 = vrsqrt.pop %v159
  %v162 = vmul.f32 %v146, %v160
  %v163 = vmul.f32 %v147, %v161
  %v164 = vlaneseq
  %v165 = vshrl.u32 %v164, 7
  %v166 = vsub.s32 0, %v165
  %v167 = vrot.slane %v17, %v166
  %v168 = vmul.f32 %v162, %v167
  %v169 = vmul.f32 %v163, %v167
  %v170 = vlaneseq
  %v171 = vshrl.u32 %v170, 7
  %v172 = vsub.s32 1, %v171
  %v173 = vrot.slane %v17, %v172
  %v174 = vadd.f32 %v168, %v173
  %v175 = vadd.f32 %v169, %v173
  %v176 = vld [vmem:[%s1] sm:$0x3]
  %v177 = vcvt.s32.f32 %v176
  %v178 = vsub.f32 1.0, %v177
  %v179 = vmul.f32 %v178, -10000.0
  %v182 = vunpack.c.l.s4 1966171168
  %v183 = vunpack.c.0.s8 %v182
  %v184 = vlaneseq
  %v185 = vshrl.u32 %v184, 7
  %v186 = vsub.s32 %v183, %v185
  %v187 = vrot.slane %v179, %v186
  %v188 = vcombine.high %v187, %v187
  %v190 = vunpack.c.l.s4 1966171168
  %v191 = vunpack.c.0.s8 %v190
  %v192 = vlaneseq
  %v193 = vshrl.u32 %v192, 7
  %v194 = vsub.s32 %v191, %v193
  %v195 = vrot.slane %v187, %v194
  %v197 = vunpack.c.l.s4 1966171168
  %v198 = vunpack.c.0.s8 %v197
  %v199 = vlaneseq
  %v200 = vshrl.u32 %v199, 7
  %v201 = vsub.s32 %v198, %v200
  %v202 = vrot.slane %v188, %v201
  %v203 = vld [vmem:[%s2] sm:$0xff]
  %v204 = vld [vmem:[%s2 + $0x8] sm:$0xff]
  %v205 = vld [vmem:[%s2 + $0x10] sm:$0xff]
  %v206 = vld [vmem:[%s2 + $0x18] sm:$0xff]
  %v207 = vlaneseq
  %v208 = vshrl.u32 %v207, 7
  %v209 = vsub.s32 2, %v208
  %v210 = vrot.slane %v17, %v209
  %v212 = vsel %vm136, %v174, 0
  %v215 = vsel %vm136, %v175, 0
  %217 = vmatprep.subr.mxu0 0.0
  %218 = vmatpush1.msra.mxu0 %v203
  %219 = vmatprep.subr.mxu0 0.0
  %220 = vmatpush1.msra.mxu0 %v204
  %221 = vmatprep.subr.mxu0 0.0
  %222 = vmatpush1.msra.mxu0 %v205
  %223 = vmatprep.subr.mxu0 0.0
  %224 = vmatpush1.msra.mxu0 %v206
  %225 = vmatprep.subr.mxu0 0.0
  %226 = vmatpush1.msra.mxu0 0.0
  %227 = vmatprep.subr.mxu0 0.0
  %228 = vmatpush1.msra.mxu0 0.0
  %229 = vmatprep.subr.mxu0 0.0
  %230 = vmatpush1.msra.mxu0 0.0
  %231 = vmatprep.subr.mxu0 0.0
  %232 = vmatpush1.msra.mxu0 0.0
  %233 = vmatprep.subr.mxu0 0.0
  %234 = vmatpush1.msra.mxu0 0.0
  %235 = vmatprep.subr.mxu0 0.0
  %236 = vmatpush1.msra.mxu0 0.0
  %237 = vmatprep.subr.mxu0 0.0
  %238 = vmatpush1.msra.mxu0 0.0
  %239 = vmatprep.subr.mxu0 0.0
  %240 = vmatpush1.msra.mxu0 0.0
  %241 = vmatprep.subr.mxu0 0.0
  %242 = vmatpush1.msra.mxu0 0.0
  %243 = vmatprep.subr.mxu0 0.0
  %244 = vmatpush1.msra.mxu0 0.0
  %245 = vmatprep.subr.mxu0 0.0
  %246 = vmatpush1.msra.mxu0 0.0
  %247 = vmatprep.subr.mxu0 0.0
  %248 = vmatpush1.msra.mxu0 0.0
  %249 = vmatprep.subr.mxu0 0.0
  %250 = vmatpush1.msra.mxu0 0.0
  %251 = vmatprep.subr.mxu0 0.0
  %252 = vmatpush1.msra.mxu0 0.0
  %253 = vmatprep.subr.mxu0 0.0
  %254 = vmatpush1.msra.mxu0 0.0
  %255 = vmatprep.subr.mxu0 0.0
  %256 = vmatpush1.msra.mxu0 0.0
  %257 = vmatprep.subr.mxu0 0.0
  %258 = vmatpush1.msra.mxu0 0.0
  %259 = vmatprep.subr.mxu0 0.0
  %260 = vmatpush1.msra.mxu0 0.0
  %261 = vmatprep.subr.mxu0 0.0
  %262 = vmatpush1.msra.mxu0 0.0
  %263 = vmatprep.subr.mxu0 0.0
  %264 = vmatpush1.msra.mxu0 0.0
  %265 = vmatprep.subr.mxu0 0.0
  %266 = vmatpush1.msra.mxu0 0.0
  %267 = vmatprep.subr.mxu0 0.0
  %268 = vmatpush1.msra.mxu0 0.0
  %269 = vmatprep.subr.mxu0 0.0
  %270 = vmatpush1.msra.mxu0 0.0
  %271 = vmatprep.subr.mxu0 0.0
  %272 = vmatpush1.msra.mxu0 0.0
  %273 = vmatprep.subr.mxu0 0.0
  %274 = vmatpush1.msra.mxu0 0.0
  %275 = vmatprep.subr.mxu0 0.0
  %276 = vmatpush1.msra.mxu0 0.0
  %277 = vmatprep.subr.mxu0 0.0
  %278 = vmatpush1.msra.mxu0 0.0
  %279 = vmatprep.subr.mxu0 0.0
  %280 = vmatpush1.msra.mxu0 0.0
  %281 = vmatprep.mubr.f32.mxu0 0.0
  %282 = vmatmul.mubr.f32.gmra.mrb[0].mxu0 %v212
  %v283 = vpop.f32.mrb[0].mxu0
  %v284 = vadd.f32 %v210, %v283
  %v285 = vpop.f32.mrb[0].mxu0
  %286 = vmatprep.mubr.f32.mxu0 0.0
  %287 = vmatmul.mubr.f32.gmra.mrb[0].mxu0 %v215
  %v288 = vpop.f32.mrb[0].mxu0
  %v289 = vadd.f32 %v210, %v288
  %v290 = vpop.f32.mrb[0].mxu0
  %291 = vdwg.mxu0
  %294 = vrot.lane.b32.xlu0 %v284, 120
  %v295 = vpop.permute.xlu0 %294
  %296 = vrot.lane.b32.xlu0 %v289, 120
  %v297 = vpop.permute.xlu0 %296
  %298 = vrot.lane.b32.xlu0 %v284, 112
  %v299 = vpop.permute.xlu0 %298
  %300 = vrot.lane.b32.xlu0 %v289, 112
  %v301 = vpop.permute.xlu0 %300
  %302 = vrot.lane.b32.xlu0 %v284, 104
  %v303 = vpop.permute.xlu0 %302
  %304 = vrot.lane.b32.xlu0 %v289, 104
  %v305 = vpop.permute.xlu0 %304
  %v306 = vlaneseq
  %v307 = vshrl.u32 %v306, 7
  %v308 = vsub.s32 0, %v307
  %v309 = vrot.slane %v195, %v308
  %v310 = vlaneseq
  %v311 = vshrl.u32 %v310, 7
  %v312 = vsub.s32 0, %v311
  %v313 = vrot.slane %v202, %v312
  %316 = vrot.lane.b32.xlu0 %v284, 96
  %v317 = vpop.permute.xlu0 %316
  %vm318 = vcmask 64512
  %v319 = vsel %vm318, %v284, 0
  %v321 = vsel %vm318, %v317, 0
  %323 = vmatprep.subr.mxu0 0.0
  %324 = vmatpush1.xpose.msra.mxu0 %v321
  %325 = vmatprep.subr.mxu0 0.0
  %326 = vmatpush1.xpose.msra.mxu0 0.0
  %327 = vmatprep.subr.mxu0 0.0
  %328 = vmatpush1.xpose.msra.mxu0 0.0
  %329 = vmatprep.subr.mxu0 0.0
  %330 = vmatpush1.xpose.msra.mxu0 0.0
  %331 = vmatprep.subr.mxu0 0.0
  %332 = vmatpush1.xpose.msra.mxu0 0.0
  %333 = vmatprep.subr.mxu0 0.0
  %334 = vmatpush1.xpose.msra.mxu0 0.0
  %335 = vmatprep.subr.mxu0 0.0
  %336 = vmatpush1.xpose.msra.mxu0 0.0
  %337 = vmatprep.subr.mxu0 0.0
  %338 = vmatpush1.xpose.msra.mxu0 0.0
  %339 = vmatprep.subr.mxu0 0.0
  %340 = vmatpush1.xpose.msra.mxu0 0.0
  %341 = vmatprep.subr.mxu0 0.0
  %342 = vmatpush1.xpose.msra.mxu0 0.0
  %343 = vmatprep.subr.mxu0 0.0
  %344 = vmatpush1.xpose.msra.mxu0 0.0
  %345 = vmatprep.subr.mxu0 0.0
  %346 = vmatpush1.xpose.msra.mxu0 0.0
  %347 = vmatprep.subr.mxu0 0.0
  %348 = vmatpush1.xpose.msra.mxu0 0.0
  %349 = vmatprep.subr.mxu0 0.0
  %350 = vmatpush1.xpose.msra.mxu0 0.0
  %351 = vmatprep.subr.mxu0 0.0
  %352 = vmatpush1.xpose.msra.mxu0 0.0
  %353 = vmatprep.subr.mxu0 0.0
  %354 = vmatpush1.xpose.msra.mxu0 0.0
  %355 = vmatprep.subr.mxu0 0.0
  %356 = vmatpush1.xpose.msra.mxu0 0.0
  %357 = vmatprep.subr.mxu0 0.0
  %358 = vmatpush1.xpose.msra.mxu0 0.0
  %359 = vmatprep.subr.mxu0 0.0
  %360 = vmatpush1.xpose.msra.mxu0 0.0
  %361 = vmatprep.subr.mxu0 0.0
  %362 = vmatpush1.xpose.msra.mxu0 0.0
  %363 = vmatprep.subr.mxu0 0.0
  %364 = vmatpush1.xpose.msra.mxu0 0.0
  %365 = vmatprep.subr.mxu0 0.0
  %366 = vmatpush1.xpose.msra.mxu0 0.0
  %367 = vmatprep.subr.mxu0 0.0
  %368 = vmatpush1.xpose.msra.mxu0 0.0
  %369 = vmatprep.subr.mxu0 0.0
  %370 = vmatpush1.xpose.msra.mxu0 0.0
  %371 = vmatprep.subr.mxu0 0.0
  %372 = vmatpush1.xpose.msra.mxu0 0.0
  %373 = vmatprep.subr.mxu0 0.0
  %374 = vmatpush1.xpose.msra.mxu0 0.0
  %375 = vmatprep.subr.mxu0 0.0
  %376 = vmatpush1.xpose.msra.mxu0 0.0
  %377 = vmatprep.subr.mxu0 0.0
  %378 = vmatpush1.xpose.msra.mxu0 0.0
  %379 = vmatprep.subr.mxu0 0.0
  %380 = vmatpush1.xpose.msra.mxu0 0.0
  %381 = vmatprep.subr.mxu0 0.0
  %382 = vmatpush1.xpose.msra.mxu0 0.0
  %383 = vmatprep.subr.mxu0 0.0
  %384 = vmatpush1.xpose.msra.mxu0 0.0
  %385 = vmatprep.subr.mxu0 0.0
  %386 = vmatpush1.xpose.msra.mxu0 0.0
  %387 = vmatprep.mubr.f32.mxu0 0.0
  %388 = vmatmul.mubr.f32.gmra.mrb[0].mxu0 %v319
  %v389 = vpop.f32.mrb[0].mxu0
  %v390 = vadd.f32 %v309, %v389
  %v391 = vpop.f32.mrb[0].mxu0
  %392 = vdwg.mxu0
  %393 = vrot.lane.b32.xlu0 %v289, 96
  %v394 = vpop.permute.xlu0 %393
  %v395 = vsel %vm318, %v289, 0
  %v397 = vsel %vm318, %v394, 0
  %399 = vmatprep.subr.mxu0 0.0
  %400 = vmatpush1.xpose.msra.mxu0 %v397
  %401 = vmatprep.subr.mxu0 0.0
  %402 = vmatpush1.xpose.msra.mxu0 0.0
  %403 = vmatprep.subr.mxu0 0.0
  %404 = vmatpush1.xpose.msra.mxu0 0.0
  %405 = vmatprep.subr.mxu0 0.0
  %406 = vmatpush1.xpose.msra.mxu0 0.0
  %407 = vmatprep.subr.mxu0 0.0
  %408 = vmatpush1.xpose.msra.mxu0 0.0
  %409 = vmatprep.subr.mxu0 0.0
  %410 = vmatpush1.xpose.msra.mxu0 0.0
  %411 = vmatprep.subr.mxu0 0.0
  %412 = vmatpush1.xpose.msra.mxu0 0.0
  %413 = vmatprep.subr.mxu0 0.0
  %414 = vmatpush1.xpose.msra.mxu0 0.0
  %415 = vmatprep.subr.mxu0 0.0
  %416 = vmatpush1.xpose.msra.mxu0 0.0
  %417 = vmatprep.subr.mxu0 0.0
  %418 = vmatpush1.xpose.msra.mxu0 0.0
  %419 = vmatprep.subr.mxu0 0.0
  %420 = vmatpush1.xpose.msra.mxu0 0.0
  %421 = vmatprep.subr.mxu0 0.0
  %422 = vmatpush1.xpose.msra.mxu0 0.0
  %423 = vmatprep.subr.mxu0 0.0
  %424 = vmatpush1.xpose.msra.mxu0 0.0
  %425 = vmatprep.subr.mxu0 0.0
  %426 = vmatpush1.xpose.msra.mxu0 0.0
  %427 = vmatprep.subr.mxu0 0.0
  %428 = vmatpush1.xpose.msra.mxu0 0.0
  %429 = vmatprep.subr.mxu0 0.0
  %430 = vmatpush1.xpose.msra.mxu0 0.0
  %431 = vmatprep.subr.mxu0 0.0
  %432 = vmatpush1.xpose.msra.mxu0 0.0
  %433 = vmatprep.subr.mxu0 0.0
  %434 = vmatpush1.xpose.msra.mxu0 0.0
  %435 = vmatprep.subr.mxu0 0.0
  %436 = vmatpush1.xpose.msra.mxu0 0.0
  %437 = vmatprep.subr.mxu0 0.0
  %438 = vmatpush1.xpose.msra.mxu0 0.0
  %439 = vmatprep.subr.mxu0 0.0
  %440 = vmatpush1.xpose.msra.mxu0 0.0
  %441 = vmatprep.subr.mxu0 0.0
  %442 = vmatpush1.xpose.msra.mxu0 0.0
  %443 = vmatprep.subr.mxu0 0.0
  %444 = vmatpush1.xpose.msra.mxu0 0.0
  %445 = vmatprep.subr.mxu0 0.0
  %446 = vmatpush1.xpose.msra.mxu0 0.0
  %447 = vmatprep.subr.mxu0 0.0
  %448 = vmatpush1.xpose.msra.mxu0 0.0
  %449 = vmatprep.subr.mxu0 0.0
  %450 = vmatpush1.xpose.msra.mxu0 0.0
  %451 = vmatprep.subr.mxu0 0.0
  %452 = vmatpush1.xpose.msra.mxu0 0.0
  %453 = vmatprep.subr.mxu0 0.0
  %454 = vmatpush1.xpose.msra.mxu0 0.0
  %455 = vmatprep.subr.mxu0 0.0
  %456 = vmatpush1.xpose.msra.mxu0 0.0
  %457 = vmatprep.subr.mxu0 0.0
  %458 = vmatpush1.xpose.msra.mxu0 0.0
  %459 = vmatprep.subr.mxu0 0.0
  %460 = vmatpush1.xpose.msra.mxu0 0.0
  %461 = vmatprep.subr.mxu0 0.0
  %462 = vmatpush1.xpose.msra.mxu0 0.0
  %463 = vmatprep.mubr.f32.mxu0 0.0
  %464 = vmatmul.mubr.f32.gmra.mrb[0].mxu0 %v395
  %v465 = vpop.f32.mrb[0].mxu0
  %v466 = vadd.f32 %v313, %v465
  %v467 = vpop.f32.mrb[0].mxu0
  %468 = vdwg.mxu0
  %469 = vrot.lane.b32.xlu0 %v295, 96
  %v470 = vpop.permute.xlu0 %469
  %v471 = vsel %vm318, %v295, 0
  %v473 = vsel %vm318, %v470, 0
  %475 = vmatprep.subr.mxu0 0.0
  %476 = vmatpush1.xpose.msra.mxu0 %v473
  %477 = vmatprep.subr.mxu0 0.0
  %478 = vmatpush1.xpose.msra.mxu0 0.0
  %479 = vmatprep.subr.mxu0 0.0
  %480 = vmatpush1.xpose.msra.mxu0 0.0
  %481 = vmatprep.subr.mxu0 0.0
  %482 = vmatpush1.xpose.msra.mxu0 0.0
  %483 = vmatprep.subr.mxu0 0.0
  %484 = vmatpush1.xpose.msra.mxu0 0.0
  %485 = vmatprep.subr.mxu0 0.0
  %486 = vmatpush1.xpose.msra.mxu0 0.0
  %487 = vmatprep.subr.mxu0 0.0
  %488 = vmatpush1.xpose.msra.mxu0 0.0
  %489 = vmatprep.subr.mxu0 0.0
  %490 = vmatpush1.xpose.msra.mxu0 0.0
  %491 = vmatprep.subr.mxu0 0.0
  %492 = vmatpush1.xpose.msra.mxu0 0.0
  %493 = vmatprep.subr.mxu0 0.0
  %494 = vmatpush1.xpose.msra.mxu0 0.0
  %495 = vmatprep.subr.mxu0 0.0
  %496 = vmatpush1.xpose.msra.mxu0 0.0
  %497 = vmatprep.subr.mxu0 0.0
  %498 = vmatpush1.xpose.msra.mxu0 0.0
  %499 = vmatprep.subr.mxu0 0.0
  %500 = vmatpush1.xpose.msra.mxu0 0.0
  %501 = vmatprep.subr.mxu0 0.0
  %502 = vmatpush1.xpose.msra.mxu0 0.0
  %503 = vmatprep.subr.mxu0 0.0
  %504 = vmatpush1.xpose.msra.mxu0 0.0
  %505 = vmatprep.subr.mxu0 0.0
  %506 = vmatpush1.xpose.msra.mxu0 0.0
  %507 = vmatprep.subr.mxu0 0.0
  %508 = vmatpush1.xpose.msra.mxu0 0.0
  %509 = vmatprep.subr.mxu0 0.0
  %510 = vmatpush1.xpose.msra.mxu0 0.0
  %511 = vmatprep.subr.mxu0 0.0
  %512 = vmatpush1.xpose.msra.mxu0 0.0
  %513 = vmatprep.subr.mxu0 0.0
  %514 = vmatpush1.xpose.msra.mxu0 0.0
  %515 = vmatprep.subr.mxu0 0.0
  %516 = vmatpush1.xpose.msra.mxu0 0.0
  %517 = vmatprep.subr.mxu0 0.0
  %518 = vmatpush1.xpose.msra.mxu0 0.0
  %519 = vmatprep.subr.mxu0 0.0
  %520 = vmatpush1.xpose.msra.mxu0 0.0
  %521 = vmatprep.subr.mxu0 0.0
  %522 = vmatpush1.xpose.msra.mxu0 0.0
  %523 = vmatprep.subr.mxu0 0.0
  %524 = vmatpush1.xpose.msra.mxu0 0.0
  %525 = vmatprep.subr.mxu0 0.0
  %526 = vmatpush1.xpose.msra.mxu0 0.0
  %527 = vmatprep.subr.mxu0 0.0
  %528 = vmatpush1.xpose.msra.mxu0 0.0
  %529 = vmatprep.subr.mxu0 0.0
  %530 = vmatpush1.xpose.msra.mxu0 0.0
  %531 = vmatprep.subr.mxu0 0.0
  %532 = vmatpush1.xpose.msra.mxu0 0.0
  %533 = vmatprep.subr.mxu0 0.0
  %534 = vmatpush1.xpose.msra.mxu0 0.0
  %535 = vmatprep.subr.mxu0 0.0
  %536 = vmatpush1.xpose.msra.mxu0 0.0
  %537 = vmatprep.subr.mxu0 0.0
  %538 = vmatpush1.xpose.msra.mxu0 0.0
  %539 = vmatprep.mubr.f32.mxu0 0.0
  %540 = vmatmul.mubr.f32.gmra.mrb[0].mxu0 %v471
  %v541 = vpop.f32.mrb[0].mxu0
  %v542 = vadd.f32 %v309, %v541
  %v543 = vpop.f32.mrb[0].mxu0
  %544 = vdwg.mxu0
  %545 = vrot.lane.b32.xlu0 %v297, 96
  %v546 = vpop.permute.xlu0 %545
  %v547 = vsel %vm318, %v297, 0
  %v549 = vsel %vm318, %v546, 0
  %551 = vmatprep.subr.mxu0 0.0
  %552 = vmatpush1.xpose.msra.mxu0 %v549
  %553 = vmatprep.subr.mxu0 0.0
  %554 = vmatpush1.xpose.msra.mxu0 0.0
  %555 = vmatprep.subr.mxu0 0.0
  %556 = vmatpush1.xpose.msra.mxu0 0.0
  %557 = vmatprep.subr.mxu0 0.0
  %558 = vmatpush1.xpose.msra.mxu0 0.0
  %559 = vmatprep.subr.mxu0 0.0
  %560 = vmatpush1.xpose.msra.mxu0 0.0
  %561 = vmatprep.subr.mxu0 0.0
  %562 = vmatpush1.xpose.msra.mxu0 0.0
  %563 = vmatprep.subr.mxu0 0.0
  %564 = vmatpush1.xpose.msra.mxu0 0.0
  %565 = vmatprep.subr.mxu0 0.0
  %566 = vmatpush1.xpose.msra.mxu0 0.0
  %567 = vmatprep.subr.mxu0 0.0
  %568 = vmatpush1.xpose.msra.mxu0 0.0
  %569 = vmatprep.subr.mxu0 0.0
  %570 = vmatpush1.xpose.msra.mxu0 0.0
  %571 = vmatprep.subr.mxu0 0.0
  %572 = vmatpush1.xpose.msra.mxu0 0.0
  %573 = vmatprep.subr.mxu0 0.0
  %574 = vmatpush1.xpose.msra.mxu0 0.0
  %575 = vmatprep.subr.mxu0 0.0
  %576 = vmatpush1.xpose.msra.mxu0 0.0
  %577 = vmatprep.subr.mxu0 0.0
  %578 = vmatpush1.xpose.msra.mxu0 0.0
  %579 = vmatprep.subr.mxu0 0.0
  %580 = vmatpush1.xpose.msra.mxu0 0.0
  %581 = vmatprep.subr.mxu0 0.0
  %582 = vmatpush1.xpose.msra.mxu0 0.0
  %583 = vmatprep.subr.mxu0 0.0
  %584 = vmatpush1.xpose.msra.mxu0 0.0
  %585 = vmatprep.subr.mxu0 0.0
  %586 = vmatpush1.xpose.msra.mxu0 0.0
  %587 = vmatprep.subr.mxu0 0.0
  %588 = vmatpush1.xpose.msra.mxu0 0.0
  %589 = vmatprep.subr.mxu0 0.0
  %590 = vmatpush1.xpose.msra.mxu0 0.0
  %591 = vmatprep.subr.mxu0 0.0
  %592 = vmatpush1.xpose.msra.mxu0 0.0
  %593 = vmatprep.subr.mxu0 0.0
  %594 = vmatpush1.xpose.msra.mxu0 0.0
  %595 = vmatprep.subr.mxu0 0.0
  %596 = vmatpush1.xpose.msra.mxu0 0.0
  %597 = vmatprep.subr.mxu0 0.0
  %598 = vmatpush1.xpose.msra.mxu0 0.0
  %599 = vmatprep.subr.mxu0 0.0
  %600 = vmatpush1.xpose.msra.mxu0 0.0
  %601 = vmatprep.subr.mxu0 0.0
  %602 = vmatpush1.xpose.msra.mxu0 0.0
  %603 = vmatprep.subr.mxu0 0.0
  %604 = vmatpush1.xpose.msra.mxu0 0.0
  %605 = vmatprep.subr.mxu0 0.0
  %606 = vmatpush1.xpose.msra.mxu0 0.0
  %607 = vmatprep.subr.mxu0 0.0
  %608 = vmatpush1.xpose.msra.mxu0 0.0
  %609 = vmatprep.subr.mxu0 0.0
  %610 = vmatpush1.xpose.msra.mxu0 0.0
  %611 = vmatprep.subr.mxu0 0.0
  %612 = vmatpush1.xpose.msra.mxu0 0.0
  %613 = vmatprep.subr.mxu0 0.0
  %614 = vmatpush1.xpose.msra.mxu0 0.0
  %615 = vmatprep.mubr.f32.mxu0 0.0
  %616 = vmatmul.mubr.f32.gmra.mrb[0].mxu0 %v547
  %v617 = vpop.f32.mrb[0].mxu0
  %v618 = vadd.f32 %v313, %v617
  %v619 = vpop.f32.mrb[0].mxu0
  %620 = vdwg.mxu0
  %621 = vrot.lane.b32.xlu0 %v299, 96
  %v622 = vpop.permute.xlu0 %621
  %v623 = vsel %vm318, %v299, 0
  %v625 = vsel %vm318, %v622, 0
  %627 = vmatprep.subr.mxu0 0.0
  %628 = vmatpush1.xpose.msra.mxu0 %v625
  %629 = vmatprep.subr.mxu0 0.0
  %630 = vmatpush1.xpose.msra.mxu0 0.0
  %631 = vmatprep.subr.mxu0 0.0
  %632 = vmatpush1.xpose.msra.mxu0 0.0
  %633 = vmatprep.subr.mxu0 0.0
  %634 = vmatpush1.xpose.msra.mxu0 0.0
  %635 = vmatprep.subr.mxu0 0.0
  %636 = vmatpush1.xpose.msra.mxu0 0.0
  %637 = vmatprep.subr.mxu0 0.0
  %638 = vmatpush1.xpose.msra.mxu0 0.0
  %639 = vmatprep.subr.mxu0 0.0
  %640 = vmatpush1.xpose.msra.mxu0 0.0
  %641 = vmatprep.subr.mxu0 0.0
  %642 = vmatpush1.xpose.msra.mxu0 0.0
  %643 = vmatprep.subr.mxu0 0.0
  %644 = vmatpush1.xpose.msra.mxu0 0.0
  %645 = vmatprep.subr.mxu0 0.0
  %646 = vmatpush1.xpose.msra.mxu0 0.0
  %647 = vmatprep.subr.mxu0 0.0
  %648 = vmatpush1.xpose.msra.mxu0 0.0
  %649 = vmatprep.subr.mxu0 0.0
  %650 = vmatpush1.xpose.msra.mxu0 0.0
  %651 = vmatprep.subr.mxu0 0.0
  %652 = vmatpush1.xpose.msra.mxu0 0.0
  %653 = vmatprep.subr.mxu0 0.0
  %654 = vmatpush1.xpose.msra.mxu0 0.0
  %655 = vmatprep.subr.mxu0 0.0
  %656 = vmatpush1.xpose.msra.mxu0 0.0
  %657 = vmatprep.subr.mxu0 0.0
  %658 = vmatpush1.xpose.msra.mxu0 0.0
  %659 = vmatprep.subr.mxu0 0.0
  %660 = vmatpush1.xpose.msra.mxu0 0.0
  %661 = vmatprep.subr.mxu0 0.0
  %662 = vmatpush1.xpose.msra.mxu0 0.0
  %663 = vmatprep.subr.mxu0 0.0
  %664 = vmatpush1.xpose.msra.mxu0 0.0
  %665 = vmatprep.subr.mxu0 0.0
  %666 = vmatpush1.xpose.msra.mxu0 0.0
  %667 = vmatprep.subr.mxu0 0.0
  %668 = vmatpush1.xpose.msra.mxu0 0.0
  %669 = vmatprep.subr.mxu0 0.0
  %670 = vmatpush1.xpose.msra.mxu0 0.0
  %671 = vmatprep.subr.mxu0 0.0
  %672 = vmatpush1.xpose.msra.mxu0 0.0
  %673 = vmatprep.subr.mxu0 0.0
  %674 = vmatpush1.xpose.msra.mxu0 0.0
  %675 = vmatprep.subr.mxu0 0.0
  %676 = vmatpush1.xpose.msra.mxu0 0.0
  %677 = vmatprep.subr.mxu0 0.0
  %678 = vmatpush1.xpose.msra.mxu0 0.0
  %679 = vmatprep.subr.mxu0 0.0
  %680 = vmatpush1.xpose.msra.mxu0 0.0
  %681 = vmatprep.subr.mxu0 0.0
  %682 = vmatpush1.xpose.msra.mxu0 0.0
  %683 = vmatprep.subr.mxu0 0.0
  %684 = vmatpush1.xpose.msra.mxu0 0.0
  %685 = vmatprep.subr.mxu0 0.0
  %686 = vmatpush1.xpose.msra.mxu0 0.0
  %687 = vmatprep.subr.mxu0 0.0
  %688 = vmatpush1.xpose.msra.mxu0 0.0
  %689 = vmatprep.subr.mxu0 0.0
  %690 = vmatpush1.xpose.msra.mxu0 0.0
  %691 = vmatprep.mubr.f32.mxu0 0.0
  %692 = vmatmul.mubr.f32.gmra.mrb[0].mxu0 %v623
  %v693 = vpop.f32.mrb[0].mxu0
  %v694 = vadd.f32 %v309, %v693
  %v695 = vpop.f32.mrb[0].mxu0
  %696 = vdwg.mxu0
  %697 = vrot.lane.b32.xlu0 %v301, 96
  %v698 = vpop.permute.xlu0 %697
  %v699 = vsel %vm318, %v301, 0
  %v701 = vsel %vm318, %v698, 0
  %703 = vmatprep.subr.mxu0 0.0
  %704 = vmatpush1.xpose.msra.mxu0 %v701
  %705 = vmatprep.subr.mxu0 0.0
  %706 = vmatpush1.xpose.msra.mxu0 0.0
  %707 = vmatprep.subr.mxu0 0.0
  %708 = vmatpush1.xpose.msra.mxu0 0.0
  %709 = vmatprep.subr.mxu0 0.0
  %710 = vmatpush1.xpose.msra.mxu0 0.0
  %711 = vmatprep.subr.mxu0 0.0
  %712 = vmatpush1.xpose.msra.mxu0 0.0
  %713 = vmatprep.subr.mxu0 0.0
  %714 = vmatpush1.xpose.msra.mxu0 0.0
  %715 = vmatprep.subr.mxu0 0.0
  %716 = vmatpush1.xpose.msra.mxu0 0.0
  %717 = vmatprep.subr.mxu0 0.0
  %718 = vmatpush1.xpose.msra.mxu0 0.0
  %719 = vmatprep.subr.mxu0 0.0
  %720 = vmatpush1.xpose.msra.mxu0 0.0
  %721 = vmatprep.subr.mxu0 0.0
  %722 = vmatpush1.xpose.msra.mxu0 0.0
  %723 = vmatprep.subr.mxu0 0.0
  %724 = vmatpush1.xpose.msra.mxu0 0.0
  %725 = vmatprep.subr.mxu0 0.0
  %726 = vmatpush1.xpose.msra.mxu0 0.0
  %727 = vmatprep.subr.mxu0 0.0
  %728 = vmatpush1.xpose.msra.mxu0 0.0
  %729 = vmatprep.subr.mxu0 0.0
  %730 = vmatpush1.xpose.msra.mxu0 0.0
  %731 = vmatprep.subr.mxu0 0.0
  %732 = vmatpush1.xpose.msra.mxu0 0.0
  %733 = vmatprep.subr.mxu0 0.0
  %734 = vmatpush1.xpose.msra.mxu0 0.0
  %735 = vmatprep.subr.mxu0 0.0
  %736 = vmatpush1.xpose.msra.mxu0 0.0
  %737 = vmatprep.subr.mxu0 0.0
  %738 = vmatpush1.xpose.msra.mxu0 0.0
  %739 = vmatprep.subr.mxu0 0.0
  %740 = vmatpush1.xpose.msra.mxu0 0.0
  %741 = vmatprep.subr.mxu0 0.0
  %742 = vmatpush1.xpose.msra.mxu0 0.0
  %743 = vmatprep.subr.mxu0 0.0
  %744 = vmatpush1.xpose.msra.mxu0 0.0
  %745 = vmatprep.subr.mxu0 0.0
  %746 = vmatpush1.xpose.msra.mxu0 0.0
  %747 = vmatprep.subr.mxu0 0.0
  %748 = vmatpush1.xpose.msra.mxu0 0.0
  %749 = vmatprep.subr.mxu0 0.0
  %750 = vmatpush1.xpose.msra.mxu0 0.0
  %751 = vmatprep.subr.mxu0 0.0
  %752 = vmatpush1.xpose.msra.mxu0 0.0
  %753 = vmatprep.subr.mxu0 0.0
  %754 = vmatpush1.xpose.msra.mxu0 0.0
  %755 = vmatprep.subr.mxu0 0.0
  %756 = vmatpush1.xpose.msra.mxu0 0.0
  %757 = vmatprep.subr.mxu0 0.0
  %758 = vmatpush1.xpose.msra.mxu0 0.0
  %759 = vmatprep.subr.mxu0 0.0
  %760 = vmatpush1.xpose.msra.mxu0 0.0
  %761 = vmatprep.subr.mxu0 0.0
  %762 = vmatpush1.xpose.msra.mxu0 0.0
  %763 = vmatprep.subr.mxu0 0.0
  %764 = vmatpush1.xpose.msra.mxu0 0.0
  %765 = vmatprep.subr.mxu0 0.0
  %766 = vmatpush1.xpose.msra.mxu0 0.0
  %767 = vmatprep.mubr.f32.mxu0 0.0
  %768 = vmatmul.mubr.f32.gmra.mrb[0].mxu0 %v699
  %v769 = vpop.f32.mrb[0].mxu0
  %v770 = vadd.f32 %v313, %v769
  %v771 = vpop.f32.mrb[0].mxu0
  %772 = vdwg.mxu0
  %773 = vrot.lane.b32.xlu0 %v303, 96
  %v774 = vpop.permute.xlu0 %773
  %v775 = vsel %vm318, %v303, 0
  %v777 = vsel %vm318, %v774, 0
  %779 = vmatprep.subr.mxu0 0.0
  %780 = vmatpush1.xpose.msra.mxu0 %v777
  %781 = vmatprep.subr.mxu0 0.0
  %782 = vmatpush1.xpose.msra.mxu0 0.0
  %783 = vmatprep.subr.mxu0 0.0
  %784 = vmatpush1.xpose.msra.mxu0 0.0
  %785 = vmatprep.subr.mxu0 0.0
  %786 = vmatpush1.xpose.msra.mxu0 0.0
  %787 = vmatprep.subr.mxu0 0.0
  %788 = vmatpush1.xpose.msra.mxu0 0.0
  %789 = vmatprep.subr.mxu0 0.0
  %790 = vmatpush1.xpose.msra.mxu0 0.0
  %791 = vmatprep.subr.mxu0 0.0
  %792 = vmatpush1.xpose.msra.mxu0 0.0
  %793 = vmatprep.subr.mxu0 0.0
  %794 = vmatpush1.xpose.msra.mxu0 0.0
  %795 = vmatprep.subr.mxu0 0.0
  %796 = vmatpush1.xpose.msra.mxu0 0.0
  %797 = vmatprep.subr.mxu0 0.0
  %798 = vmatpush1.xpose.msra.mxu0 0.0
  %799 = vmatprep.subr.mxu0 0.0
  %800 = vmatpush1.xpose.msra.mxu0 0.0
  %801 = vmatprep.subr.mxu0 0.0
  %802 = vmatpush1.xpose.msra.mxu0 0.0
  %803 = vmatprep.subr.mxu0 0.0
  %804 = vmatpush1.xpose.msra.mxu0 0.0
  %805 = vmatprep.subr.mxu0 0.0
  %806 = vmatpush1.xpose.msra.mxu0 0.0
  %807 = vmatprep.subr.mxu0 0.0
  %808 = vmatpush1.xpose.msra.mxu0 0.0
  %809 = vmatprep.subr.mxu0 0.0
  %810 = vmatpush1.xpose.msra.mxu0 0.0
  %811 = vmatprep.subr.mxu0 0.0
  %812 = vmatpush1.xpose.msra.mxu0 0.0
  %813 = vmatprep.subr.mxu0 0.0
  %814 = vmatpush1.xpose.msra.mxu0 0.0
  %815 = vmatprep.subr.mxu0 0.0
  %816 = vmatpush1.xpose.msra.mxu0 0.0
  %817 = vmatprep.subr.mxu0 0.0
  %818 = vmatpush1.xpose.msra.mxu0 0.0
  %819 = vmatprep.subr.mxu0 0.0
  %820 = vmatpush1.xpose.msra.mxu0 0.0
  %821 = vmatprep.subr.mxu0 0.0
  %822 = vmatpush1.xpose.msra.mxu0 0.0
  %823 = vmatprep.subr.mxu0 0.0
  %824 = vmatpush1.xpose.msra.mxu0 0.0
  %825 = vmatprep.subr.mxu0 0.0
  %826 = vmatpush1.xpose.msra.mxu0 0.0
  %827 = vmatprep.subr.mxu0 0.0
  %828 = vmatpush1.xpose.msra.mxu0 0.0
  %829 = vmatprep.subr.mxu0 0.0
  %830 = vmatpush1.xpose.msra.mxu0 0.0
  %831 = vmatprep.subr.mxu0 0.0
  %832 = vmatpush1.xpose.msra.mxu0 0.0
  %833 = vmatprep.subr.mxu0 0.0
  %834 = vmatpush1.xpose.msra.mxu0 0.0
  %835 = vmatprep.subr.mxu0 0.0
  %836 = vmatpush1.xpose.msra.mxu0 0.0
  %837 = vmatprep.subr.mxu0 0.0
  %838 = vmatpush1.xpose.msra.mxu0 0.0
  %839 = vmatprep.subr.mxu0 0.0
  %840 = vmatpush1.xpose.msra.mxu0 0.0
  %841 = vmatprep.subr.mxu0 0.0
  %842 = vmatpush1.xpose.msra.mxu0 0.0
  %843 = vmatprep.mubr.f32.mxu0 0.0
  %844 = vmatmul.mubr.f32.gmra.mrb[0].mxu0 %v775
  %v845 = vpop.f32.mrb[0].mxu0
  %v846 = vadd.f32 %v309, %v845
  %v847 = vpop.f32.mrb[0].mxu0
  %848 = vdwg.mxu0
  %849 = vrot.lane.b32.xlu0 %v305, 96
  %v850 = vpop.permute.xlu0 %849
  %v851 = vsel %vm318, %v305, 0
  %v853 = vsel %vm318, %v850, 0
  %855 = vmatprep.subr.mxu0 0.0
  %856 = vmatpush1.xpose.msra.mxu0 %v853
  %857 = vmatprep.subr.mxu0 0.0
  %858 = vmatpush1.xpose.msra.mxu0 0.0
  %859 = vmatprep.subr.mxu0 0.0
  %860 = vmatpush1.xpose.msra.mxu0 0.0
  %861 = vmatprep.subr.mxu0 0.0
  %862 = vmatpush1.xpose.msra.mxu0 0.0
  %863 = vmatprep.subr.mxu0 0.0
  %864 = vmatpush1.xpose.msra.mxu0 0.0
  %865 = vmatprep.subr.mxu0 0.0
  %866 = vmatpush1.xpose.msra.mxu0 0.0
  %867 = vmatprep.subr.mxu0 0.0
  %868 = vmatpush1.xpose.msra.mxu0 0.0
  %869 = vmatprep.subr.mxu0 0.0
  %870 = vmatpush1.xpose.msra.mxu0 0.0
  %871 = vmatprep.subr.mxu0 0.0
  %872 = vmatpush1.xpose.msra.mxu0 0.0
  %873 = vmatprep.subr.mxu0 0.0
  %874 = vmatpush1.xpose.msra.mxu0 0.0
  %875 = vmatprep.subr.mxu0 0.0
  %876 = vmatpush1.xpose.msra.mxu0 0.0
  %877 = vmatprep.subr.mxu0 0.0
  %878 = vmatpush1.xpose.msra.mxu0 0.0
  %879 = vmatprep.subr.mxu0 0.0
  %880 = vmatpush1.xpose.msra.mxu0 0.0
  %881 = vmatprep.subr.mxu0 0.0
  %882 = vmatpush1.xpose.msra.mxu0 0.0
  %883 = vmatprep.subr.mxu0 0.0
  %884 = vmatpush1.xpose.msra.mxu0 0.0
  %885 = vmatprep.subr.mxu0 0.0
  %886 = vmatpush1.xpose.msra.mxu0 0.0
  %887 = vmatprep.subr.mxu0 0.0
  %888 = vmatpush1.xpose.msra.mxu0 0.0
  %889 = vmatprep.subr.mxu0 0.0
  %890 = vmatpush1.xpose.msra.mxu0 0.0
  %891 = vmatprep.subr.mxu0 0.0
  %892 = vmatpush1.xpose.msra.mxu0 0.0
  %893 = vmatprep.subr.mxu0 0.0
  %894 = vmatpush1.xpose.msra.mxu0 0.0
  %895 = vmatprep.subr.mxu0 0.0
  %896 = vmatpush1.xpose.msra.mxu0 0.0
  %897 = vmatprep.subr.mxu0 0.0
  %898 = vmatpush1.xpose.msra.mxu0 0.0
  %899 = vmatprep.subr.mxu0 0.0
  %900 = vmatpush1.xpose.msra.mxu0 0.0
  %901 = vmatprep.subr.mxu0 0.0
  %902 = vmatpush1.xpose.msra.mxu0 0.0
  %903 = vmatprep.subr.mxu0 0.0
  %904 = vmatpush1.xpose.msra.mxu0 0.0
  %905 = vmatprep.subr.mxu0 0.0
  %906 = vmatpush1.xpose.msra.mxu0 0.0
  %907 = vmatprep.subr.mxu0 0.0
  %908 = vmatpush1.xpose.msra.mxu0 0.0
  %909 = vmatprep.subr.mxu0 0.0
  %910 = vmatpush1.xpose.msra.mxu0 0.0
  %911 = vmatprep.subr.mxu0 0.0
  %912 = vmatpush1.xpose.msra.mxu0 0.0
  %913 = vmatprep.subr.mxu0 0.0
  %914 = vmatpush1.xpose.msra.mxu0 0.0
  %915 = vmatprep.subr.mxu0 0.0
  %916 = vmatpush1.xpose.msra.mxu0 0.0
  %917 = vmatprep.subr.mxu0 0.0
  %918 = vmatpush1.xpose.msra.mxu0 0.0
  %919 = vmatprep.mubr.f32.mxu0 0.0
  %920 = vmatmul.mubr.f32.gmra.mrb[0].mxu0 %v851
  %v921 = vpop.f32.mrb[0].mxu0
  %v922 = vadd.f32 %v313, %v921
  %v923 = vpop.f32.mrb[0].mxu0
  %924 = vdwg.mxu0
  %v925 = vsel %vm318, %v390, -inf
  %926 = vmax.xlane.f32.xlu0 %v925
  %v927 = vpop.xlane.xlu0 %926
  %v928 = vsel %vm318, %v466, -inf
  %929 = vmax.xlane.f32.xlu0 %v928
  %v930 = vpop.xlane.xlu0 %929
  %v931 = vsel %vm318, %v542, -inf
  %932 = vmax.xlane.f32.xlu0 %v931
  %v933 = vpop.xlane.xlu0 %932
  %v934 = vsel %vm318, %v618, -inf
  %935 = vmax.xlane.f32.xlu0 %v934
  %v936 = vpop.xlane.xlu0 %935
  %v937 = vsel %vm318, %v694, -inf
  %938 = vmax.xlane.f32.xlu0 %v937
  %v939 = vpop.xlane.xlu0 %938
  %v940 = vsel %vm318, %v770, -inf
  %941 = vmax.xlane.f32.xlu0 %v940
  %v942 = vpop.xlane.xlu0 %941
  %v943 = vsel %vm318, %v846, -inf
  %944 = vmax.xlane.f32.xlu0 %v943
  %v945 = vpop.xlane.xlu0 %944
  %v946 = vsel %vm318, %v922, -inf
  %947 = vmax.xlane.f32.xlu0 %v946
  %v948 = vpop.xlane.xlu0 %947
  %v949 = vsub.f32 %v390, %v927
  %v950 = vsub.f32 %v466, %v930
  %v951 = vsub.f32 %v542, %v933
  %v952 = vsub.f32 %v618, %v936
  %v953 = vsub.f32 %v694, %v939
  %v954 = vsub.f32 %v770, %v942
  %v955 = vsub.f32 %v846, %v945
  %v956 = vsub.f32 %v922, %v948
  %v957 = vmul.f32 %v949, 1.442695
  %v958 = vpow.pop %v957
  %v959 = vmul.f32 %v950, 1.442695
  %v960 = vpow.pop %v959
  %v961 = vmul.f32 %v951, 1.442695
  %v962 = vpow.pop %v961
  %v963 = vmul.f32 %v952, 1.442695
  %v964 = vpow.pop %v963
  %v965 = vmul.f32 %v953, 1.442695
  %v966 = vpow.pop %v965
  %v967 = vmul.f32 %v954, 1.442695
  %v968 = vpow.pop %v967
  %v969 = vmul.f32 %v955, 1.442695
  %v970 = vpow.pop %v969
  %v971 = vmul.f32 %v956, 1.442695
  %v972 = vpow.pop %v971
  %v973 = vsel %vm318, %v958, 0.0
  %974 = vadd.xlane.f32.xlu0 %v973
  %v975 = vpop.xlane.xlu0 %974
  %v976 = vsel %vm318, %v960, 0.0
  %977 = vadd.xlane.f32.xlu0 %v976
  %v978 = vpop.xlane.xlu0 %977
  %v979 = vsel %vm318, %v962, 0.0
  %980 = vadd.xlane.f32.xlu0 %v979
  %v981 = vpop.xlane.xlu0 %980
  %v982 = vsel %vm318, %v964, 0.0
  %983 = vadd.xlane.f32.xlu0 %v982
  %v984 = vpop.xlane.xlu0 %983
  %v985 = vsel %vm318, %v966, 0.0
  %986 = vadd.xlane.f32.xlu0 %v985
  %v987 = vpop.xlane.xlu0 %986
  %v988 = vsel %vm318, %v968, 0.0
  %989 = vadd.xlane.f32.xlu0 %v988
  %v990 = vpop.xlane.xlu0 %989
  %v991 = vsel %vm318, %v970, 0.0
  %992 = vadd.xlane.f32.xlu0 %v991
  %v993 = vpop.xlane.xlu0 %992
  %v994 = vsel %vm318, %v972, 0.0
  %995 = vadd.xlane.f32.xlu0 %v994
  %v996 = vpop.xlane.xlu0 %995
  %v997 = vrcp.pop %v975
  %v998 = vrcp.pop %v978
  %v999 = vrcp.pop %v981
  %v1000 = vrcp.pop %v984
  %v1001 = vrcp.pop %v987
  %v1002 = vrcp.pop %v990
  %v1003 = vrcp.pop %v993
  %v1004 = vrcp.pop %v996
  %v1005 = vmul.f32 %v958, %v997
  %v1006 = vmul.f32 %v960, %v998
  %v1007 = vmul.f32 %v962, %v999
  %v1008 = vmul.f32 %v964, %v1000
  %v1009 = vmul.f32 %v966, %v1001
  %v1010 = vmul.f32 %v968, %v1002
  %v1011 = vmul.f32 %v970, %v1003
  %v1012 = vmul.f32 %v972, %v1004
  %1013 = vrot.lane.b32.xlu0 %v284, 64
  %v1014 = vpop.permute.xlu0 %1013
  %v1017 = vsel %vm318, %v1005, 0
  %1019 = vmatprep.subr.mxu0 0.0
  %1020 = vmatpush1.msra.mxu0 %v1014
  %1021 = vmatprep.subr.mxu0 0.0
  %1022 = vmatpush1.msra.mxu0 0.0
  %1023 = vmatprep.subr.mxu0 0.0
  %1024 = vmatpush1.msra.mxu0 0.0
  %1025 = vmatprep.subr.mxu0 0.0
  %1026 = vmatpush1.msra.mxu0 0.0
  %1027 = vmatprep.subr.mxu0 0.0
  %1028 = vmatpush1.msra.mxu0 0.0
  %1029 = vmatprep.subr.mxu0 0.0
  %1030 = vmatpush1.msra.mxu0 0.0
  %1031 = vmatprep.subr.mxu0 0.0
  %1032 = vmatpush1.msra.mxu0 0.0
  %1033 = vmatprep.subr.mxu0 0.0
  %1034 = vmatpush1.msra.mxu0 0.0
  %1035 = vmatprep.subr.mxu0 0.0
  %1036 = vmatpush1.msra.mxu0 0.0
  %1037 = vmatprep.subr.mxu0 0.0
  %1038 = vmatpush1.msra.mxu0 0.0
  %1039 = vmatprep.subr.mxu0 0.0
  %1040 = vmatpush1.msra.mxu0 0.0
  %1041 = vmatprep.subr.mxu0 0.0
  %1042 = vmatpush1.msra.mxu0 0.0
  %1043 = vmatprep.subr.mxu0 0.0
  %1044 = vmatpush1.msra.mxu0 0.0
  %1045 = vmatprep.subr.mxu0 0.0
  %1046 = vmatpush1.msra.mxu0 0.0
  %1047 = vmatprep.subr.mxu0 0.0
  %1048 = vmatpush1.msra.mxu0 0.0
  %1049 = vmatprep.subr.mxu0 0.0
  %1050 = vmatpush1.msra.mxu0 0.0
  %1051 = vmatprep.subr.mxu0 0.0
  %1052 = vmatpush1.msra.mxu0 0.0
  %1053 = vmatprep.subr.mxu0 0.0
  %1054 = vmatpush1.msra.mxu0 0.0
  %1055 = vmatprep.subr.mxu0 0.0
  %1056 = vmatpush1.msra.mxu0 0.0
  %1057 = vmatprep.subr.mxu0 0.0
  %1058 = vmatpush1.msra.mxu0 0.0
  %1059 = vmatprep.subr.mxu0 0.0
  %1060 = vmatpush1.msra.mxu0 0.0
  %1061 = vmatprep.subr.mxu0 0.0
  %1062 = vmatpush1.msra.mxu0 0.0
  %1063 = vmatprep.subr.mxu0 0.0
  %1064 = vmatpush1.msra.mxu0 0.0
  %1065 = vmatprep.subr.mxu0 0.0
  %1066 = vmatpush1.msra.mxu0 0.0
  %1067 = vmatprep.subr.mxu0 0.0
  %1068 = vmatpush1.msra.mxu0 0.0
  %1069 = vmatprep.subr.mxu0 0.0
  %1070 = vmatpush1.msra.mxu0 0.0
  %1071 = vmatprep.subr.mxu0 0.0
  %1072 = vmatpush1.msra.mxu0 0.0
  %1073 = vmatprep.subr.mxu0 0.0
  %1074 = vmatpush1.msra.mxu0 0.0
  %1075 = vmatprep.subr.mxu0 0.0
  %1076 = vmatpush1.msra.mxu0 0.0
  %1077 = vmatprep.subr.mxu0 0.0
  %1078 = vmatpush1.msra.mxu0 0.0
  %1079 = vmatprep.subr.mxu0 0.0
  %1080 = vmatpush1.msra.mxu0 0.0
  %1081 = vmatprep.subr.mxu0 0.0
  %1082 = vmatpush1.msra.mxu0 0.0
  %1083 = vmatprep.mubr.f32.mxu0 0.0
  %1084 = vmatmul.mubr.f32.gmra.mrb[0].mxu0 %v1017
  %v1085 = vpop.f32.mrb[0].mxu0
  %v1086 = vadd.f32 0.0, %v1085
  %v1087 = vpop.f32.mrb[0].mxu0
  %1088 = vdwg.mxu0
  %1089 = vrot.lane.b32.xlu0 %v289, 64
  %v1090 = vpop.permute.xlu0 %1089
  %v1093 = vsel %vm318, %v1006, 0
  %1095 = vmatprep.subr.mxu0 0.0
  %1096 = vmatpush1.msra.mxu0 %v1090
  %1097 = vmatprep.subr.mxu0 0.0
  %1098 = vmatpush1.msra.mxu0 0.0
  %1099 = vmatprep.subr.mxu0 0.0
  %1100 = vmatpush1.msra.mxu0 0.0
  %1101 = vmatprep.subr.mxu0 0.0
  %1102 = vmatpush1.msra.mxu0 0.0
  %1103 = vmatprep.subr.mxu0 0.0
  %1104 = vmatpush1.msra.mxu0 0.0
  %1105 = vmatprep.subr.mxu0 0.0
  %1106 = vmatpush1.msra.mxu0 0.0
  %1107 = vmatprep.subr.mxu0 0.0
  %1108 = vmatpush1.msra.mxu0 0.0
  %1109 = vmatprep.subr.mxu0 0.0
  %1110 = vmatpush1.msra.mxu0 0.0
  %1111 = vmatprep.subr.mxu0 0.0
  %1112 = vmatpush1.msra.mxu0 0.0
  %1113 = vmatprep.subr.mxu0 0.0
  %1114 = vmatpush1.msra.mxu0 0.0
  %1115 = vmatprep.subr.mxu0 0.0
  %1116 = vmatpush1.msra.mxu0 0.0
  %1117 = vmatprep.subr.mxu0 0.0
  %1118 = vmatpush1.msra.mxu0 0.0
  %1119 = vmatprep.subr.mxu0 0.0
  %1120 = vmatpush1.msra.mxu0 0.0
  %1121 = vmatprep.subr.mxu0 0.0
  %1122 = vmatpush1.msra.mxu0 0.0
  %1123 = vmatprep.subr.mxu0 0.0
  %1124 = vmatpush1.msra.mxu0 0.0
  %1125 = vmatprep.subr.mxu0 0.0
  %1126 = vmatpush1.msra.mxu0 0.0
  %1127 = vmatprep.subr.mxu0 0.0
  %1128 = vmatpush1.msra.mxu0 0.0
  %1129 = vmatprep.subr.mxu0 0.0
  %1130 = vmatpush1.msra.mxu0 0.0
  %1131 = vmatprep.subr.mxu0 0.0
  %1132 = vmatpush1.msra.mxu0 0.0
  %1133 = vmatprep.subr.mxu0 0.0
  %1134 = vmatpush1.msra.mxu0 0.0
  %1135 = vmatprep.subr.mxu0 0.0
  %1136 = vmatpush1.msra.mxu0 0.0
  %1137 = vmatprep.subr.mxu0 0.0
  %1138 = vmatpush1.msra.mxu0 0.0
  %1139 = vmatprep.subr.mxu0 0.0
  %1140 = vmatpush1.msra.mxu0 0.0
  %1141 = vmatprep.subr.mxu0 0.0
  %1142 = vmatpush1.msra.mxu0 0.0
  %1143 = vmatprep.subr.mxu0 0.0
  %1144 = vmatpush1.msra.mxu0 0.0
  %1145 = vmatprep.subr.mxu0 0.0
  %1146 = vmatpush1.msra.mxu0 0.0
  %1147 = vmatprep.subr.mxu0 0.0
  %1148 = vmatpush1.msra.mxu0 0.0
  %1149 = vmatprep.subr.mxu0 0.0
  %1150 = vmatpush1.msra.mxu0 0.0
  %1151 = vmatprep.subr.mxu0 0.0
  %1152 = vmatpush1.msra.mxu0 0.0
  %1153 = vmatprep.subr.mxu0 0.0
  %1154 = vmatpush1.msra.mxu0 0.0
  %1155 = vmatprep.subr.mxu0 0.0
  %1156 = vmatpush1.msra.mxu0 0.0
  %1157 = vmatprep.subr.mxu0 0.0
  %1158 = vmatpush1.msra.mxu0 0.0
  %1159 = vmatprep.mubr.f32.mxu0 0.0
  %1160 = vmatmul.mubr.f32.gmra.mrb[0].mxu0 %v1093
  %v1161 = vpop.f32.mrb[0].mxu0
  %v1162 = vadd.f32 0.0, %v1161
  %v1163 = vpop.f32.mrb[0].mxu0
  %1164 = vdwg.mxu0
  %1165 = vrot.lane.b32.xlu0 %v295, 64
  %v1166 = vpop.permute.xlu0 %1165
  %v1169 = vsel %vm318, %v1007, 0
  %1171 = vmatprep.subr.mxu0 0.0
  %1172 = vmatpush1.msra.mxu0 %v1166
  %1173 = vmatprep.subr.mxu0 0.0
  %1174 = vmatpush1.msra.mxu0 0.0
  %1175 = vmatprep.subr.mxu0 0.0
  %1176 = vmatpush1.msra.mxu0 0.0
  %1177 = vmatprep.subr.mxu0 0.0
  %1178 = vmatpush1.msra.mxu0 0.0
  %1179 = vmatprep.subr.mxu0 0.0
  %1180 = vmatpush1.msra.mxu0 0.0
  %1181 = vmatprep.subr.mxu0 0.0
  %1182 = vmatpush1.msra.mxu0 0.0
  %1183 = vmatprep.subr.mxu0 0.0
  %1184 = vmatpush1.msra.mxu0 0.0
  %1185 = vmatprep.subr.mxu0 0.0
  %1186 = vmatpush1.msra.mxu0 0.0
  %1187 = vmatprep.subr.mxu0 0.0
  %1188 = vmatpush1.msra.mxu0 0.0
  %1189 = vmatprep.subr.mxu0 0.0
  %1190 = vmatpush1.msra.mxu0 0.0
  %1191 = vmatprep.subr.mxu0 0.0
  %1192 = vmatpush1.msra.mxu0 0.0
  %1193 = vmatprep.subr.mxu0 0.0
  %1194 = vmatpush1.msra.mxu0 0.0
  %1195 = vmatprep.subr.mxu0 0.0
  %1196 = vmatpush1.msra.mxu0 0.0
  %1197 = vmatprep.subr.mxu0 0.0
  %1198 = vmatpush1.msra.mxu0 0.0
  %1199 = vmatprep.subr.mxu0 0.0
  %1200 = vmatpush1.msra.mxu0 0.0
  %1201 = vmatprep.subr.mxu0 0.0
  %1202 = vmatpush1.msra.mxu0 0.0
  %1203 = vmatprep.subr.mxu0 0.0
  %1204 = vmatpush1.msra.mxu0 0.0
  %1205 = vmatprep.subr.mxu0 0.0
  %1206 = vmatpush1.msra.mxu0 0.0
  %1207 = vmatprep.subr.mxu0 0.0
  %1208 = vmatpush1.msra.mxu0 0.0
  %1209 = vmatprep.subr.mxu0 0.0
  %1210 = vmatpush1.msra.mxu0 0.0
  %1211 = vmatprep.subr.mxu0 0.0
  %1212 = vmatpush1.msra.mxu0 0.0
  %1213 = vmatprep.subr.mxu0 0.0
  %1214 = vmatpush1.msra.mxu0 0.0
  %1215 = vmatprep.subr.mxu0 0.0
  %1216 = vmatpush1.msra.mxu0 0.0
  %1217 = vmatprep.subr.mxu0 0.0
  %1218 = vmatpush1.msra.mxu0 0.0
  %1219 = vmatprep.subr.mxu0 0.0
  %1220 = vmatpush1.msra.mxu0 0.0
  %1221 = vmatprep.subr.mxu0 0.0
  %1222 = vmatpush1.msra.mxu0 0.0
  %1223 = vmatprep.subr.mxu0 0.0
  %1224 = vmatpush1.msra.mxu0 0.0
  %1225 = vmatprep.subr.mxu0 0.0
  %1226 = vmatpush1.msra.mxu0 0.0
  %1227 = vmatprep.subr.mxu0 0.0
  %1228 = vmatpush1.msra.mxu0 0.0
  %1229 = vmatprep.subr.mxu0 0.0
  %1230 = vmatpush1.msra.mxu0 0.0
  %1231 = vmatprep.subr.mxu0 0.0
  %1232 = vmatpush1.msra.mxu0 0.0
  %1233 = vmatprep.subr.mxu0 0.0
  %1234 = vmatpush1.msra.mxu0 0.0
  %1235 = vmatprep.mubr.f32.mxu0 0.0
  %1236 = vmatmul.mubr.f32.gmra.mrb[0].mxu0 %v1169
  %v1237 = vpop.f32.mrb[0].mxu0
  %v1238 = vadd.f32 0.0, %v1237
  %v1239 = vpop.f32.mrb[0].mxu0
  %1240 = vdwg.mxu0
  %1241 = vrot.lane.b32.xlu0 %v297, 64
  %v1242 = vpop.permute.xlu0 %1241
  %v1245 = vsel %vm318, %v1008, 0
  %1247 = vmatprep.subr.mxu0 0.0
  %1248 = vmatpush1.msra.mxu0 %v1242
  %1249 = vmatprep.subr.mxu0 0.0
  %1250 = vmatpush1.msra.mxu0 0.0
  %1251 = vmatprep.subr.mxu0 0.0
  %1252 = vmatpush1.msra.mxu0 0.0
  %1253 = vmatprep.subr.mxu0 0.0
  %1254 = vmatpush1.msra.mxu0 0.0
  %1255 = vmatprep.subr.mxu0 0.0
  %1256 = vmatpush1.msra.mxu0 0.0
  %1257 = vmatprep.subr.mxu0 0.0
  %1258 = vmatpush1.msra.mxu0 0.0
  %1259 = vmatprep.subr.mxu0 0.0
  %1260 = vmatpush1.msra.mxu0 0.0
  %1261 = vmatprep.subr.mxu0 0.0
  %1262 = vmatpush1.msra.mxu0 0.0
  %1263 = vmatprep.subr.mxu0 0.0
  %1264 = vmatpush1.msra.mxu0 0.0
  %1265 = vmatprep.subr.mxu0 0.0
  %1266 = vmatpush1.msra.mxu0 0.0
  %1267 = vmatprep.subr.mxu0 0.0
  %1268 = vmatpush1.msra.mxu0 0.0
  %1269 = vmatprep.subr.mxu0 0.0
  %1270 = vmatpush1.msra.mxu0 0.0
  %1271 = vmatprep.subr.mxu0 0.0
  %1272 = vmatpush1.msra.mxu0 0.0
  %1273 = vmatprep.subr.mxu0 0.0
  %1274 = vmatpush1.msra.mxu0 0.0
  %1275 = vmatprep.subr.mxu0 0.0
  %1276 = vmatpush1.msra.mxu0 0.0
  %1277 = vmatprep.subr.mxu0 0.0
  %1278 = vmatpush1.msra.mxu0 0.0
  %1279 = vmatprep.subr.mxu0 0.0
  %1280 = vmatpush1.msra.mxu0 0.0
  %1281 = vmatprep.subr.mxu0 0.0
  %1282 = vmatpush1.msra.mxu0 0.0
  %1283 = vmatprep.subr.mxu0 0.0
  %1284 = vmatpush1.msra.mxu0 0.0
  %1285 = vmatprep.subr.mxu0 0.0
  %1286 = vmatpush1.msra.mxu0 0.0
  %1287 = vmatprep.subr.mxu0 0.0
  %1288 = vmatpush1.msra.mxu0 0.0
  %1289 = vmatprep.subr.mxu0 0.0
  %1290 = vmatpush1.msra.mxu0 0.0
  %1291 = vmatprep.subr.mxu0 0.0
  %1292 = vmatpush1.msra.mxu0 0.0
  %1293 = vmatprep.subr.mxu0 0.0
  %1294 = vmatpush1.msra.mxu0 0.0
  %1295 = vmatprep.subr.mxu0 0.0
  %1296 = vmatpush1.msra.mxu0 0.0
  %1297 = vmatprep.subr.mxu0 0.0
  %1298 = vmatpush1.msra.mxu0 0.0
  %1299 = vmatprep.subr.mxu0 0.0
  %1300 = vmatpush1.msra.mxu0 0.0
  %1301 = vmatprep.subr.mxu0 0.0
  %1302 = vmatpush1.msra.mxu0 0.0
  %1303 = vmatprep.subr.mxu0 0.0
  %1304 = vmatpush1.msra.mxu0 0.0
  %1305 = vmatprep.subr.mxu0 0.0
  %1306 = vmatpush1.msra.mxu0 0.0
  %1307 = vmatprep.subr.mxu0 0.0
  %1308 = vmatpush1.msra.mxu0 0.0
  %1309 = vmatprep.subr.mxu0 0.0
  %1310 = vmatpush1.msra.mxu0 0.0
  %1311 = vmatprep.mubr.f32.mxu0 0.0
  %1312 = vmatmul.mubr.f32.gmra.mrb[0].mxu0 %v1245
  %v1313 = vpop.f32.mrb[0].mxu0
  %v1314 = vadd.f32 0.0, %v1313
  %v1315 = vpop.f32.mrb[0].mxu0
  %1316 = vdwg.mxu0
  %1317 = vrot.lane.b32.xlu0 %v299, 64
  %v1318 = vpop.permute.xlu0 %1317
  %v1321 = vsel %vm318, %v1009, 0
  %1323 = vmatprep.subr.mxu0 0.0
  %1324 = vmatpush1.msra.mxu0 %v1318
  %1325 = vmatprep.subr.mxu0 0.0
  %1326 = vmatpush1.msra.mxu0 0.0
  %1327 = vmatprep.subr.mxu0 0.0
  %1328 = vmatpush1.msra.mxu0 0.0
  %1329 = vmatprep.subr.mxu0 0.0
  %1330 = vmatpush1.msra.mxu0 0.0
  %1331 = vmatprep.subr.mxu0 0.0
  %1332 = vmatpush1.msra.mxu0 0.0
  %1333 = vmatprep.subr.mxu0 0.0
  %1334 = vmatpush1.msra.mxu0 0.0
  %1335 = vmatprep.subr.mxu0 0.0
  %1336 = vmatpush1.msra.mxu0 0.0
  %1337 = vmatprep.subr.mxu0 0.0
  %1338 = vmatpush1.msra.mxu0 0.0
  %1339 = vmatprep.subr.mxu0 0.0
  %1340 = vmatpush1.msra.mxu0 0.0
  %1341 = vmatprep.subr.mxu0 0.0
  %1342 = vmatpush1.msra.mxu0 0.0
  %1343 = vmatprep.subr.mxu0 0.0
  %1344 = vmatpush1.msra.mxu0 0.0
  %1345 = vmatprep.subr.mxu0 0.0
  %1346 = vmatpush1.msra.mxu0 0.0
  %1347 = vmatprep.subr.mxu0 0.0
  %1348 = vmatpush1.msra.mxu0 0.0
  %1349 = vmatprep.subr.mxu0 0.0
  %1350 = vmatpush1.msra.mxu0 0.0
  %1351 = vmatprep.subr.mxu0 0.0
  %1352 = vmatpush1.msra.mxu0 0.0
  %1353 = vmatprep.subr.mxu0 0.0
  %1354 = vmatpush1.msra.mxu0 0.0
  %1355 = vmatprep.subr.mxu0 0.0
  %1356 = vmatpush1.msra.mxu0 0.0
  %1357 = vmatprep.subr.mxu0 0.0
  %1358 = vmatpush1.msra.mxu0 0.0
  %1359 = vmatprep.subr.mxu0 0.0
  %1360 = vmatpush1.msra.mxu0 0.0
  %1361 = vmatprep.subr.mxu0 0.0
  %1362 = vmatpush1.msra.mxu0 0.0
  %1363 = vmatprep.subr.mxu0 0.0
  %1364 = vmatpush1.msra.mxu0 0.0
  %1365 = vmatprep.subr.mxu0 0.0
  %1366 = vmatpush1.msra.mxu0 0.0
  %1367 = vmatprep.subr.mxu0 0.0
  %1368 = vmatpush1.msra.mxu0 0.0
  %1369 = vmatprep.subr.mxu0 0.0
  %1370 = vmatpush1.msra.mxu0 0.0
  %1371 = vmatprep.subr.mxu0 0.0
  %1372 = vmatpush1.msra.mxu0 0.0
  %1373 = vmatprep.subr.mxu0 0.0
  %1374 = vmatpush1.msra.mxu0 0.0
  %1375 = vmatprep.subr.mxu0 0.0
  %1376 = vmatpush1.msra.mxu0 0.0
  %1377 = vmatprep.subr.mxu0 0.0
  %1378 = vmatpush1.msra.mxu0 0.0
  %1379 = vmatprep.subr.mxu0 0.0
  %1380 = vmatpush1.msra.mxu0 0.0
  %1381 = vmatprep.subr.mxu0 0.0
  %1382 = vmatpush1.msra.mxu0 0.0
  %1383 = vmatprep.subr.mxu0 0.0
  %1384 = vmatpush1.msra.mxu0 0.0
  %1385 = vmatprep.subr.mxu0 0.0
  %1386 = vmatpush1.msra.mxu0 0.0
  %1387 = vmatprep.mubr.f32.mxu0 0.0
  %1388 = vmatmul.mubr.f32.gmra.mrb[0].mxu0 %v1321
  %v1389 = vpop.f32.mrb[0].mxu0
  %v1390 = vadd.f32 0.0, %v1389
  %v1391 = vpop.f32.mrb[0].mxu0
  %1392 = vdwg.mxu0
  %1393 = vrot.lane.b32.xlu0 %v301, 64
  %v1394 = vpop.permute.xlu0 %1393
  %v1397 = vsel %vm318, %v1010, 0
  %1399 = vmatprep.subr.mxu0 0.0
  %1400 = vmatpush1.msra.mxu0 %v1394
  %1401 = vmatprep.subr.mxu0 0.0
  %1402 = vmatpush1.msra.mxu0 0.0
  %1403 = vmatprep.subr.mxu0 0.0
  %1404 = vmatpush1.msra.mxu0 0.0
  %1405 = vmatprep.subr.mxu0 0.0
  %1406 = vmatpush1.msra.mxu0 0.0
  %1407 = vmatprep.subr.mxu0 0.0
  %1408 = vmatpush1.msra.mxu0 0.0
  %1409 = vmatprep.subr.mxu0 0.0
  %1410 = vmatpush1.msra.mxu0 0.0
  %1411 = vmatprep.subr.mxu0 0.0
  %1412 = vmatpush1.msra.mxu0 0.0
  %1413 = vmatprep.subr.mxu0 0.0
  %1414 = vmatpush1.msra.mxu0 0.0
  %1415 = vmatprep.subr.mxu0 0.0
  %1416 = vmatpush1.msra.mxu0 0.0
  %1417 = vmatprep.subr.mxu0 0.0
  %1418 = vmatpush1.msra.mxu0 0.0
  %1419 = vmatprep.subr.mxu0 0.0
  %1420 = vmatpush1.msra.mxu0 0.0
  %1421 = vmatprep.subr.mxu0 0.0
  %1422 = vmatpush1.msra.mxu0 0.0
  %1423 = vmatprep.subr.mxu0 0.0
  %1424 = vmatpush1.msra.mxu0 0.0
  %1425 = vmatprep.subr.mxu0 0.0
  %1426 = vmatpush1.msra.mxu0 0.0
  %1427 = vmatprep.subr.mxu0 0.0
  %1428 = vmatpush1.msra.mxu0 0.0
  %1429 = vmatprep.subr.mxu0 0.0
  %1430 = vmatpush1.msra.mxu0 0.0
  %1431 = vmatprep.subr.mxu0 0.0
  %1432 = vmatpush1.msra.mxu0 0.0
  %1433 = vmatprep.subr.mxu0 0.0
  %1434 = vmatpush1.msra.mxu0 0.0
  %1435 = vmatprep.subr.mxu0 0.0
  %1436 = vmatpush1.msra.mxu0 0.0
  %1437 = vmatprep.subr.mxu0 0.0
  %1438 = vmatpush1.msra.mxu0 0.0
  %1439 = vmatprep.subr.mxu0 0.0
  %1440 = vmatpush1.msra.mxu0 0.0
  %1441 = vmatprep.subr.mxu0 0.0
  %1442 = vmatpush1.msra.mxu0 0.0
  %1443 = vmatprep.subr.mxu0 0.0
  %1444 = vmatpush1.msra.mxu0 0.0
  %1445 = vmatprep.subr.mxu0 0.0
  %1446 = vmatpush1.msra.mxu0 0.0
  %1447 = vmatprep.subr.mxu0 0.0
  %1448 = vmatpush1.msra.mxu0 0.0
  %1449 = vmatprep.subr.mxu0 0.0
  %1450 = vmatpush1.msra.mxu0 0.0
  %1451 = vmatprep.subr.mxu0 0.0
  %1452 = vmatpush1.msra.mxu0 0.0
  %1453 = vmatprep.subr.mxu0 0.0
  %1454 = vmatpush1.msra.mxu0 0.0
  %1455 = vmatprep.subr.mxu0 0.0
  %1456 = vmatpush1.msra.mxu0 0.0
  %1457 = vmatprep.subr.mxu0 0.0
  %1458 = vmatpush1.msra.mxu0 0.0
  %1459 = vmatprep.subr.mxu0 0.0
  %1460 = vmatpush1.msra.mxu0 0.0
  %1461 = vmatprep.subr.mxu0 0.0
  %1462 = vmatpush1.msra.mxu0 0.0
  %1463 = vmatprep.mubr.f32.mxu0 0.0
  %1464 = vmatmul.mubr.f32.gmra.mrb[0].mxu0 %v1397
  %v1465 = vpop.f32.mrb[0].mxu0
  %v1466 = vadd.f32 0.0, %v1465
  %v1467 = vpop.f32.mrb[0].mxu0
  %1468 = vdwg.mxu0
  %1469 = vrot.lane.b32.xlu0 %v303, 64
  %v1470 = vpop.permute.xlu0 %1469
  %v1473 = vsel %vm318, %v1011, 0
  %1475 = vmatprep.subr.mxu0 0.0
  %1476 = vmatpush1.msra.mxu0 %v1470
  %1477 = vmatprep.subr.mxu0 0.0
  %1478 = vmatpush1.msra.mxu0 0.0
  %1479 = vmatprep.subr.mxu0 0.0
  %1480 = vmatpush1.msra.mxu0 0.0
  %1481 = vmatprep.subr.mxu0 0.0
  %1482 = vmatpush1.msra.mxu0 0.0
  %1483 = vmatprep.subr.mxu0 0.0
  %1484 = vmatpush1.msra.mxu0 0.0
  %1485 = vmatprep.subr.mxu0 0.0
  %1486 = vmatpush1.msra.mxu0 0.0
  %1487 = vmatprep.subr.mxu0 0.0
  %1488 = vmatpush1.msra.mxu0 0.0
  %1489 = vmatprep.subr.mxu0 0.0
  %1490 = vmatpush1.msra.mxu0 0.0
  %1491 = vmatprep.subr.mxu0 0.0
  %1492 = vmatpush1.msra.mxu0 0.0
  %1493 = vmatprep.subr.mxu0 0.0
  %1494 = vmatpush1.msra.mxu0 0.0
  %1495 = vmatprep.subr.mxu0 0.0
  %1496 = vmatpush1.msra.mxu0 0.0
  %1497 = vmatprep.subr.mxu0 0.0
  %1498 = vmatpush1.msra.mxu0 0.0
  %1499 = vmatprep.subr.mxu0 0.0
  %1500 = vmatpush1.msra.mxu0 0.0
  %1501 = vmatprep.subr.mxu0 0.0
  %1502 = vmatpush1.msra.mxu0 0.0
  %1503 = vmatprep.subr.mxu0 0.0
  %1504 = vmatpush1.msra.mxu0 0.0
  %1505 = vmatprep.subr.mxu0 0.0
  %1506 = vmatpush1.msra.mxu0 0.0
  %1507 = vmatprep.subr.mxu0 0.0
  %1508 = vmatpush1.msra.mxu0 0.0
  %1509 = vmatprep.subr.mxu0 0.0
  %1510 = vmatpush1.msra.mxu0 0.0
  %1511 = vmatprep.subr.mxu0 0.0
  %1512 = vmatpush1.msra.mxu0 0.0
  %1513 = vmatprep.subr.mxu0 0.0
  %1514 = vmatpush1.msra.mxu0 0.0
  %1515 = vmatprep.subr.mxu0 0.0
  %1516 = vmatpush1.msra.mxu0 0.0
  %1517 = vmatprep.subr.mxu0 0.0
  %1518 = vmatpush1.msra.mxu0 0.0
  %1519 = vmatprep.subr.mxu0 0.0
  %1520 = vmatpush1.msra.mxu0 0.0
  %1521 = vmatprep.subr.mxu0 0.0
  %1522 = vmatpush1.msra.mxu0 0.0
  %1523 = vmatprep.subr.mxu0 0.0
  %1524 = vmatpush1.msra.mxu0 0.0
  %1525 = vmatprep.subr.mxu0 0.0
  %1526 = vmatpush1.msra.mxu0 0.0
  %1527 = vmatprep.subr.mxu0 0.0
  %1528 = vmatpush1.msra.mxu0 0.0
  %1529 = vmatprep.subr.mxu0 0.0
  %1530 = vmatpush1.msra.mxu0 0.0
  %1531 = vmatprep.subr.mxu0 0.0
  %1532 = vmatpush1.msra.mxu0 0.0
  %1533 = vmatprep.subr.mxu0 0.0
  %1534 = vmatpush1.msra.mxu0 0.0
  %1535 = vmatprep.subr.mxu0 0.0
  %1536 = vmatpush1.msra.mxu0 0.0
  %1537 = vmatprep.subr.mxu0 0.0
  %1538 = vmatpush1.msra.mxu0 0.0
  %1539 = vmatprep.mubr.f32.mxu0 0.0
  %1540 = vmatmul.mubr.f32.gmra.mrb[0].mxu0 %v1473
  %v1541 = vpop.f32.mrb[0].mxu0
  %v1542 = vadd.f32 0.0, %v1541
  %v1543 = vpop.f32.mrb[0].mxu0
  %1544 = vdwg.mxu0
  %1545 = vrot.lane.b32.xlu0 %v305, 64
  %v1546 = vpop.permute.xlu0 %1545
  %v1549 = vsel %vm318, %v1012, 0
  %1551 = vmatprep.subr.mxu0 0.0
  %1552 = vmatpush1.msra.mxu0 %v1546
  %1553 = vmatprep.subr.mxu0 0.0
  %1554 = vmatpush1.msra.mxu0 0.0
  %1555 = vmatprep.subr.mxu0 0.0
  %1556 = vmatpush1.msra.mxu0 0.0
  %1557 = vmatprep.subr.mxu0 0.0
  %1558 = vmatpush1.msra.mxu0 0.0
  %1559 = vmatprep.subr.mxu0 0.0
  %1560 = vmatpush1.msra.mxu0 0.0
  %1561 = vmatprep.subr.mxu0 0.0
  %1562 = vmatpush1.msra.mxu0 0.0
  %1563 = vmatprep.subr.mxu0 0.0
  %1564 = vmatpush1.msra.mxu0 0.0
  %1565 = vmatprep.subr.mxu0 0.0
  %1566 = vmatpush1.msra.mxu0 0.0
  %1567 = vmatprep.subr.mxu0 0.0
  %1568 = vmatpush1.msra.mxu0 0.0
  %1569 = vmatprep.subr.mxu0 0.0
  %1570 = vmatpush1.msra.mxu0 0.0
  %1571 = vmatprep.subr.mxu0 0.0
  %1572 = vmatpush1.msra.mxu0 0.0
  %1573 = vmatprep.subr.mxu0 0.0
  %1574 = vmatpush1.msra.mxu0 0.0
  %1575 = vmatprep.subr.mxu0 0.0
  %1576 = vmatpush1.msra.mxu0 0.0
  %1577 = vmatprep.subr.mxu0 0.0
  %1578 = vmatpush1.msra.mxu0 0.0
  %1579 = vmatprep.subr.mxu0 0.0
  %1580 = vmatpush1.msra.mxu0 0.0
  %1581 = vmatprep.subr.mxu0 0.0
  %1582 = vmatpush1.msra.mxu0 0.0
  %1583 = vmatprep.subr.mxu0 0.0
  %1584 = vmatpush1.msra.mxu0 0.0
  %1585 = vmatprep.subr.mxu0 0.0
  %1586 = vmatpush1.msra.mxu0 0.0
  %1587 = vmatprep.subr.mxu0 0.0
  %1588 = vmatpush1.msra.mxu0 0.0
  %1589 = vmatprep.subr.mxu0 0.0
  %1590 = vmatpush1.msra.mxu0 0.0
  %1591 = vmatprep.subr.mxu0 0.0
  %1592 = vmatpush1.msra.mxu0 0.0
  %1593 = vmatprep.subr.mxu0 0.0
  %1594 = vmatpush1.msra.mxu0 0.0
  %1595 = vmatprep.subr.mxu0 0.0
  %1596 = vmatpush1.msra.mxu0 0.0
  %1597 = vmatprep.subr.mxu0 0.0
  %1598 = vmatpush1.msra.mxu0 0.0
  %1599 = vmatprep.subr.mxu0 0.0
  %1600 = vmatpush1.msra.mxu0 0.0
  %1601 = vmatprep.subr.mxu0 0.0
  %1602 = vmatpush1.msra.mxu0 0.0
  %1603 = vmatprep.subr.mxu0 0.0
  %1604 = vmatpush1.msra.mxu0 0.0
  %1605 = vmatprep.subr.mxu0 0.0
  %1606 = vmatpush1.msra.mxu0 0.0
  %1607 = vmatprep.subr.mxu0 0.0
  %1608 = vmatpush1.msra.mxu0 0.0
  %1609 = vmatprep.subr.mxu0 0.0
  %1610 = vmatpush1.msra.mxu0 0.0
  %1611 = vmatprep.subr.mxu0 0.0
  %1612 = vmatpush1.msra.mxu0 0.0
  %1613 = vmatprep.subr.mxu0 0.0
  %1614 = vmatpush1.msra.mxu0 0.0
  %1615 = vmatprep.mubr.f32.mxu0 0.0
  %1616 = vmatmul.mubr.f32.gmra.mrb[0].mxu0 %v1549
  %v1617 = vpop.f32.mrb[0].mxu0
  %v1618 = vadd.f32 0.0, %v1617
  %v1619 = vpop.f32.mrb[0].mxu0
  %1620 = vdwg.mxu0
  %1623 = vrot.lane.b32.xlu0 %v1238, 8
  %v1624 = vpop.permute.xlu0 %1623
  %1625 = vrot.lane.b32.xlu0 %v1314, 8
  %v1626 = vpop.permute.xlu0 %1625
  %1631 = vrot.lane.b32.xlu0 %v1390, 16
  %v1632 = vpop.permute.xlu0 %1631
  %1633 = vrot.lane.b32.xlu0 %v1466, 16
  %v1634 = vpop.permute.xlu0 %1633
  %1639 = vrot.lane.b32.xlu0 %v1542, 24
  %v1640 = vpop.permute.xlu0 %1639
  %1641 = vrot.lane.b32.xlu0 %v1618, 24
  %v1642 = vpop.permute.xlu0 %1641
  %v1645 = vsel %vm318, %v1086, %v1624
  %v1646 = vsel %vm318, %v1162, %v1626
  %vm1647 = vcmask 130048
  %v1648 = vsel %vm1647, %v1645, %v1632
  %v1649 = vsel %vm1647, %v1646, %v1634
  %vm1650 = vcmask 195584
  %v1651 = vsel %vm1650, %v1648, %v1640
  %v1652 = vsel %vm1650, %v1649, %v1642
  %v1653 = vld [vmem:[%s2 + $0x20] sm:$0xff]
  %v1654 = vld [vmem:[%s2 + $0x28] sm:$0xff]
  %v1655 = vld [vmem:[%s2 + $0x30] sm:$0xff]
  %v1656 = vld [vmem:[%s2 + $0x38] sm:$0xff]
  %v1657 = vlaneseq
  %v1658 = vshrl.u32 %v1657, 7
  %v1659 = vsub.s32 3, %v1658
  %v1660 = vrot.slane %v17, %v1659
  %v1662 = vsel %vm136, %v1651, 0
  %v1665 = vsel %vm136, %v1652, 0
  %1667 = vmatprep.subr.mxu0 0.0
  %1668 = vmatpush1.msra.mxu0 %v1653
  %1669 = vmatprep.subr.mxu0 0.0
  %1670 = vmatpush1.msra.mxu0 %v1654
  %1671 = vmatprep.subr.mxu0 0.0
  %1672 = vmatpush1.msra.mxu0 %v1655
  %1673 = vmatprep.subr.mxu0 0.0
  %1674 = vmatpush1.msra.mxu0 %v1656
  %1675 = vmatprep.subr.mxu0 0.0
  %1676 = vmatpush1.msra.mxu0 0.0
  %1677 = vmatprep.subr.mxu0 0.0
  %1678 = vmatpush1.msra.mxu0 0.0
  %1679 = vmatprep.subr.mxu0 0.0
  %1680 = vmatpush1.msra.mxu0 0.0
  %1681 = vmatprep.subr.mxu0 0.0
  %1682 = vmatpush1.msra.mxu0 0.0
  %1683 = vmatprep.subr.mxu0 0.0
  %1684 = vmatpush1.msra.mxu0 0.0
  %1685 = vmatprep.subr.mxu0 0.0
  %1686 = vmatpush1.msra.mxu0 0.0
  %1687 = vmatprep.subr.mxu0 0.0
  %1688 = vmatpush1.msra.mxu0 0.0
  %1689 = vmatprep.subr.mxu0 0.0
  %1690 = vmatpush1.msra.mxu0 0.0
  %1691 = vmatprep.subr.mxu0 0.0
  %1692 = vmatpush1.msra.mxu0 0.0
  %1693 = vmatprep.subr.mxu0 0.0
  %1694 = vmatpush1.msra.mxu0 0.0
  %1695 = vmatprep.subr.mxu0 0.0
  %1696 = vmatpush1.msra.mxu0 0.0
  %1697 = vmatprep.subr.mxu0 0.0
  %1698 = vmatpush1.msra.mxu0 0.0
  %1699 = vmatprep.subr.mxu0 0.0
  %1700 = vmatpush1.msra.mxu0 0.0
  %1701 = vmatprep.subr.mxu0 0.0
  %1702 = vmatpush1.msra.mxu0 0.0
  %1703 = vmatprep.subr.mxu0 0.0
  %1704 = vmatpush1.msra.mxu0 0.0
  %1705 = vmatprep.subr.mxu0 0.0
  %1706 = vmatpush1.msra.mxu0 0.0
  %1707 = vmatprep.subr.mxu0 0.0
  %1708 = vmatpush1.msra.mxu0 0.0
  %1709 = vmatprep.subr.mxu0 0.0
  %1710 = vmatpush1.msra.mxu0 0.0
  %1711 = vmatprep.subr.mxu0 0.0
  %1712 = vmatpush1.msra.mxu0 0.0
  %1713 = vmatprep.subr.mxu0 0.0
  %1714 = vmatpush1.msra.mxu0 0.0
  %1715 = vmatprep.subr.mxu0 0.0
  %1716 = vmatpush1.msra.mxu0 0.0
  %1717 = vmatprep.subr.mxu0 0.0
  %1718 = vmatpush1.msra.mxu0 0.0
  %1719 = vmatprep.subr.mxu0 0.0
  %1720 = vmatpush1.msra.mxu0 0.0
  %1721 = vmatprep.subr.mxu0 0.0
  %1722 = vmatpush1.msra.mxu0 0.0
  %1723 = vmatprep.subr.mxu0 0.0
  %1724 = vmatpush1.msra.mxu0 0.0
  %1725 = vmatprep.subr.mxu0 0.0
  %1726 = vmatpush1.msra.mxu0 0.0
  %1727 = vmatprep.subr.mxu0 0.0
  %1728 = vmatpush1.msra.mxu0 0.0
  %1729 = vmatprep.subr.mxu0 0.0
  %1730 = vmatpush1.msra.mxu0 0.0
  %1731 = vmatprep.mubr.f32.mxu0 0.0
  %1732 = vmatmul.mubr.f32.gmra.mrb[0].mxu0 %v1662
  %v1733 = vpop.f32.mrb[0].mxu0
  %v1734 = vadd.f32 %v1660, %v1733
  %v1735 = vpop.f32.mrb[0].mxu0
  %1736 = vmatprep.mubr.f32.mxu0 0.0
  %1737 = vmatmul.mubr.f32.gmra.mrb[0].mxu0 %v1665
  %v1738 = vpop.f32.mrb[0].mxu0
  %v1739 = vadd.f32 %v1660, %v1738
  %v1740 = vpop.f32.mrb[0].mxu0
  %1741 = vdwg.mxu0
  %v1742 = vadd.f32 %v1734, %v174
  %v1743 = vadd.f32 %v1739, %v175
  %v1744 = vsel %vm136, %v1742, 0.0
  %1745 = vadd.xlane.f32.xlu0 %v1744
  %v1746 = vpop.xlane.xlu0 %1745
  %v1747 = vsel %vm136, %v1743, 0.0
  %1748 = vadd.xlane.f32.xlu0 %v1747
  %v1749 = vpop.xlane.xlu0 %1748
  %v1750 = vmul.f32 %v1746, %v143
  %v1751 = vmul.f32 %v1749, %v143
  %v1752 = vsub.f32 %v1742, %v1750
  %v1753 = vsub.f32 %v1743, %v1751
  %v1754 = vmul.f32 %v1752, %v1752
  %v1755 = vmul.f32 %v1753, %v1753
  %v1756 = vsel %vm136, %v1754, 0.0
  %1757 = vadd.xlane.f32.xlu0 %v1756
  %v1758 = vpop.xlane.xlu0 %1757
  %v1759 = vsel %vm136, %v1755, 0.0
  %1760 = vadd.xlane.f32.xlu0 %v1759
  %v1761 = vpop.xlane.xlu0 %1760
  %v1762 = vmul.f32 %v1758, %v143
  %v1763 = vmul.f32 %v1761, %v143
  %v1764 = vadd.f32 %v1762, 1e-12
  %v1765 = vadd.f32 %v1763, 1e-12
  %v1766 = vrsqrt.pop %v1764
  %v1767 = vrsqrt.pop %v1765
  %v1768 = vmul.f32 %v1752, %v1766
  %v1769 = vmul.f32 %v1753, %v1767
  %v1770 = vlaneseq
  %v1771 = vshrl.u32 %v1770, 7
  %v1772 = vsub.s32 4, %v1771
  %v1773 = vrot.slane %v17, %v1772
  %v1774 = vmul.f32 %v1768, %v1773
  %v1775 = vmul.f32 %v1769, %v1773
  %v1776 = vlaneseq
  %v1777 = vshrl.u32 %v1776, 7
  %v1778 = vsub.s32 5, %v1777
  %v1779 = vrot.slane %v17, %v1778
  %v1780 = vadd.f32 %v1774, %v1779
  %v1781 = vadd.f32 %v1775, %v1779
  %v1782 = vld [vmem:[%s2 + $0x40] sm:$0xff]
  %v1783 = vld [vmem:[%s2 + $0x48] sm:$0xff]
  %v1784 = vld [vmem:[%s2 + $0x50] sm:$0xff]
  %v1785 = vld [vmem:[%s2 + $0x58] sm:$0xff]
  %v1786 = vlaneseq
  %v1787 = vshrl.u32 %v1786, 7
  %v1788 = vsub.s32 6, %v1787
  %v1789 = vrot.slane %v17, %v1788
  %v1791 = vsel %vm136, %v1780, 0
  %v1794 = vsel %vm136, %v1781, 0
  %1796 = vmatprep.subr.mxu0 0.0
  %1797 = vmatpush1.msra.mxu0 %v1782
  %1798 = vmatprep.subr.mxu0 0.0
  %1799 = vmatpush1.msra.mxu0 %v1783
  %1800 = vmatprep.subr.mxu0 0.0
  %1801 = vmatpush1.msra.mxu0 %v1784
  %1802 = vmatprep.subr.mxu0 0.0
  %1803 = vmatpush1.msra.mxu0 %v1785
  %1804 = vmatprep.subr.mxu0 0.0
  %1805 = vmatpush1.msra.mxu0 0.0
  %1806 = vmatprep.subr.mxu0 0.0
  %1807 = vmatpush1.msra.mxu0 0.0
  %1808 = vmatprep.subr.mxu0 0.0
  %1809 = vmatpush1.msra.mxu0 0.0
  %1810 = vmatprep.subr.mxu0 0.0
  %1811 = vmatpush1.msra.mxu0 0.0
  %1812 = vmatprep.subr.mxu0 0.0
  %1813 = vmatpush1.msra.mxu0 0.0
  %1814 = vmatprep.subr.mxu0 0.0
  %1815 = vmatpush1.msra.mxu0 0.0
  %1816 = vmatprep.subr.mxu0 0.0
  %1817 = vmatpush1.msra.mxu0 0.0
  %1818 = vmatprep.subr.mxu0 0.0
  %1819 = vmatpush1.msra.mxu0 0.0
  %1820 = vmatprep.subr.mxu0 0.0
  %1821 = vmatpush1.msra.mxu0 0.0
  %1822 = vmatprep.subr.mxu0 0.0
  %1823 = vmatpush1.msra.mxu0 0.0
  %1824 = vmatprep.subr.mxu0 0.0
  %1825 = vmatpush1.msra.mxu0 0.0
  %1826 = vmatprep.subr.mxu0 0.0
  %1827 = vmatpush1.msra.mxu0 0.0
  %1828 = vmatprep.subr.mxu0 0.0
  %1829 = vmatpush1.msra.mxu0 0.0
  %1830 = vmatprep.subr.mxu0 0.0
  %1831 = vmatpush1.msra.mxu0 0.0
  %1832 = vmatprep.subr.mxu0 0.0
  %1833 = vmatpush1.msra.mxu0 0.0
  %1834 = vmatprep.subr.mxu0 0.0
  %1835 = vmatpush1.msra.mxu0 0.0
  %1836 = vmatprep.subr.mxu0 0.0
  %1837 = vmatpush1.msra.mxu0 0.0
  %1838 = vmatprep.subr.mxu0 0.0
  %1839 = vmatpush1.msra.mxu0 0.0
  %1840 = vmatprep.subr.mxu0 0.0
  %1841 = vmatpush1.msra.mxu0 0.0
  %1842 = vmatprep.subr.mxu0 0.0
  %1843 = vmatpush1.msra.mxu0 0.0
  %1844 = vmatprep.subr.mxu0 0.0
  %1845 = vmatpush1.msra.mxu0 0.0
  %1846 = vmatprep.subr.mxu0 0.0
  %1847 = vmatpush1.msra.mxu0 0.0
  %1848 = vmatprep.subr.mxu0 0.0
  %1849 = vmatpush1.msra.mxu0 0.0
  %1850 = vmatprep.subr.mxu0 0.0
  %1851 = vmatpush1.msra.mxu0 0.0
  %1852 = vmatprep.subr.mxu0 0.0
  %1853 = vmatpush1.msra.mxu0 0.0
  %1854 = vmatprep.subr.mxu0 0.0
  %1855 = vmatpush1.msra.mxu0 0.0
  %1856 = vmatprep.subr.mxu0 0.0
  %1857 = vmatpush1.msra.mxu0 0.0
  %1858 = vmatprep.subr.mxu0 0.0
  %1859 = vmatpush1.msra.mxu0 0.0
  %1860 = vmatprep.mubr.f32.mxu0 0.0
  %1861 = vmatmul.mubr.f32.gmra.mrb[0].mxu0 %v1791
  %v1862 = vpop.f32.mrb[0].mxu0
  %v1863 = vadd.f32 %v1789, %v1862
  %v1864 = vpop.f32.mrb[0].mxu0
  %1865 = vmatprep.mubr.f32.mxu0 0.0
  %1866 = vmatmul.mubr.f32.gmra.mrb[0].mxu0 %v1794
  %v1867 = vpop.f32.mrb[0].mxu0
  %v1868 = vadd.f32 %v1789, %v1867
  %v1869 = vpop.f32.mrb[0].mxu0
  %1870 = vdwg.mxu0
  %v1871 = vmul.f32 %v1863, 0.5
  %v1872 = vmul.f32 %v1868, 0.5
  %v1873 = vmul.f32 %v1863, 0.70710677
  %v1874 = vmul.f32 %v1868, 0.70710677
  %v1875 = vand.u32 2147483647, %v1873
  %v1876 = vand.u32 2147483647, %v1874
  %v1877 = vmul.f32 %v1875, 0.3275911
  %v1878 = vmul.f32 %v1876, 0.3275911
  %v1879 = vadd.f32 %v1877, 1.0
  %v1880 = vadd.f32 %v1878, 1.0
  %v1881 = vrcp.pop %v1879
  %v1882 = vmul.f32 1.0, %v1881
  %v1883 = vrcp.pop %v1880
  %v1884 = vmul.f32 1.0, %v1883
  %v1885 = vmul.f32 %v1882, 1.0614054
  %v1886 = vmul.f32 %v1884, 1.0614054
  %v1887 = vadd.f32 %v1885, -1.4531521
  %v1888 = vadd.f32 %v1886, -1.4531521
  %v1889 = vmul.f32 %v1882, %v1887
  %v1890 = vmul.f32 %v1884, %v1888
  %v1891 = vadd.f32 %v1889, 1.4214138
  %v1892 = vadd.f32 %v1890, 1.4214138
  %v1893 = vmul.f32 %v1882, %v1891
  %v1894 = vmul.f32 %v1884, %v1892
  %v1895 = vadd.f32 %v1893, -0.28449672
  %v1896 = vadd.f32 %v1894, -0.28449672
  %v1897 = vmul.f32 %v1882, %v1895
  %v1898 = vmul.f32 %v1884, %v1896
  %v1899 = vadd.f32 %v1897, 0.2548296
  %v1900 = vadd.f32 %v1898, 0.2548296
  %v1901 = vmul.f32 %v1882, %v1899
  %v1902 = vmul.f32 %v1884, %v1900
  %v1903 = vsub.f32 0.0, %v1875
  %v1904 = vsub.f32 0.0, %v1876
  %v1905 = vmul.f32 %v1903, %v1875
  %v1906 = vmul.f32 %v1904, %v1876
  %v1907 = vmul.f32 %v1905, 1.442695
  %v1908 = vpow.pop %v1907
  %v1909 = vmul.f32 %v1906, 1.442695
  %v1910 = vpow.pop %v1909
  %v1911 = vmul.f32 %v1901, %v1908
  %v1912 = vmul.f32 %v1902, %v1910
  %v1913 = vsub.f32 1.0, %v1911
  %v1914 = vsub.f32 1.0, %v1912
  %vm1915 = vcmp.ge.f32.partialorder %v1873, 0.0
  %vm1916 = vcmp.ge.f32.partialorder %v1874, 0.0
  %v1917 = vsub.f32 0.0, %v1913
  %v1918 = vsub.f32 0.0, %v1914
  %v1919 = vsel %vm1915, %v1913, %v1917
  %v1920 = vsel %vm1916, %v1914, %v1918
  %v1921 = vadd.f32 %v1919, 1.0
  %v1922 = vadd.f32 %v1920, 1.0
  %v1923 = vmul.f32 %v1871, %v1921
  %v1924 = vmul.f32 %v1872, %v1922
  %v1925 = vld [vmem:[%s2 + $0x60] sm:$0xff]
  %v1926 = vld [vmem:[%s2 + $0x68] sm:$0xff]
  %v1927 = vld [vmem:[%s2 + $0x70] sm:$0xff]
  %v1928 = vld [vmem:[%s2 + $0x78] sm:$0xff]
  %v1929 = vld [vmem:[%s2 + $0x80] sm:$0xff]
  %v1930 = vld [vmem:[%s2 + $0x88] sm:$0xff]
  %v1931 = vld [vmem:[%s2 + $0x90] sm:$0xff]
  %v1932 = vld [vmem:[%s2 + $0x98] sm:$0xff]
  %v1933 = vlaneseq
  %v1934 = vshrl.u32 %v1933, 7
  %v1935 = vsub.s32 7, %v1934
  %v1936 = vrot.slane %v17, %v1935
  %v1938 = vsel %vm44, %v1923, 0
  %v1941 = vsel %vm44, %v1924, 0
  %1943 = vmatprep.subr.mxu0 0.0
  %1944 = vmatpush1.msra.mxu0 %v1925
  %1945 = vmatprep.subr.mxu0 0.0
  %1946 = vmatpush1.msra.mxu0 %v1926
  %1947 = vmatprep.subr.mxu0 0.0
  %1948 = vmatpush1.msra.mxu0 %v1927
  %1949 = vmatprep.subr.mxu0 0.0
  %1950 = vmatpush1.msra.mxu0 %v1928
  %1951 = vmatprep.subr.mxu0 0.0
  %1952 = vmatpush1.msra.mxu0 %v1929
  %1953 = vmatprep.subr.mxu0 0.0
  %1954 = vmatpush1.msra.mxu0 %v1930
  %1955 = vmatprep.subr.mxu0 0.0
  %1956 = vmatpush1.msra.mxu0 %v1931
  %1957 = vmatprep.subr.mxu0 0.0
  %1958 = vmatpush1.msra.mxu0 %v1932
  %1959 = vmatprep.subr.mxu0 0.0
  %1960 = vmatpush1.msra.mxu0 0.0
  %1961 = vmatprep.subr.mxu0 0.0
  %1962 = vmatpush1.msra.mxu0 0.0
  %1963 = vmatprep.subr.mxu0 0.0
  %1964 = vmatpush1.msra.mxu0 0.0
  %1965 = vmatprep.subr.mxu0 0.0
  %1966 = vmatpush1.msra.mxu0 0.0
  %1967 = vmatprep.subr.mxu0 0.0
  %1968 = vmatpush1.msra.mxu0 0.0
  %1969 = vmatprep.subr.mxu0 0.0
  %1970 = vmatpush1.msra.mxu0 0.0
  %1971 = vmatprep.subr.mxu0 0.0
  %1972 = vmatpush1.msra.mxu0 0.0
  %1973 = vmatprep.subr.mxu0 0.0
  %1974 = vmatpush1.msra.mxu0 0.0
  %1975 = vmatprep.subr.mxu0 0.0
  %1976 = vmatpush1.msra.mxu0 0.0
  %1977 = vmatprep.subr.mxu0 0.0
  %1978 = vmatpush1.msra.mxu0 0.0
  %1979 = vmatprep.subr.mxu0 0.0
  %1980 = vmatpush1.msra.mxu0 0.0
  %1981 = vmatprep.subr.mxu0 0.0
  %1982 = vmatpush1.msra.mxu0 0.0
  %1983 = vmatprep.subr.mxu0 0.0
  %1984 = vmatpush1.msra.mxu0 0.0
  %1985 = vmatprep.subr.mxu0 0.0
  %1986 = vmatpush1.msra.mxu0 0.0
  %1987 = vmatprep.subr.mxu0 0.0
  %1988 = vmatpush1.msra.mxu0 0.0
  %1989 = vmatprep.subr.mxu0 0.0
  %1990 = vmatpush1.msra.mxu0 0.0
  %1991 = vmatprep.subr.mxu0 0.0
  %1992 = vmatpush1.msra.mxu0 0.0
  %1993 = vmatprep.subr.mxu0 0.0
  %1994 = vmatpush1.msra.mxu0 0.0
  %1995 = vmatprep.subr.mxu0 0.0
  %1996 = vmatpush1.msra.mxu0 0.0
  %1997 = vmatprep.subr.mxu0 0.0
  %1998 = vmatpush1.msra.mxu0 0.0
  %1999 = vmatprep.subr.mxu0 0.0
  %2000 = vmatpush1.msra.mxu0 0.0
  %2001 = vmatprep.subr.mxu0 0.0
  %2002 = vmatpush1.msra.mxu0 0.0
  %2003 = vmatprep.subr.mxu0 0.0
  %2004 = vmatpush1.msra.mxu0 0.0
  %2005 = vmatprep.subr.mxu0 0.0
  %2006 = vmatpush1.msra.mxu0 0.0
  %2007 = vmatprep.mubr.f32.mxu0 0.0
  %2008 = vmatmul.mubr.f32.gmra.mrb[0].mxu0 %v1938
  %v2009 = vpop.f32.mrb[0].mxu0
  %v2010 = vadd.f32 %v1936, %v2009
  %v2011 = vpop.f32.mrb[0].mxu0
  %2012 = vmatprep.mubr.f32.mxu0 0.0
  %2013 = vmatmul.mubr.f32.gmra.mrb[0].mxu0 %v1941
  %v2014 = vpop.f32.mrb[0].mxu0
  %v2015 = vadd.f32 %v1936, %v2014
  %v2016 = vpop.f32.mrb[0].mxu0
  %2017 = vdwg.mxu0
  %v2018 = vadd.f32 %v2010, %v1780
  %v2019 = vadd.f32 %v2015, %v1781
  %v2020 = vsel %vm136, %v2018, 0.0
  %2021 = vadd.xlane.f32.xlu0 %v2020
  %v2022 = vpop.xlane.xlu0 %2021
  %v2023 = vsel %vm136, %v2019, 0.0
  %2024 = vadd.xlane.f32.xlu0 %v2023
  %v2025 = vpop.xlane.xlu0 %2024
  %v2026 = vmul.f32 %v2022, %v143
  %v2027 = vmul.f32 %v2025, %v143
  %v2028 = vsub.f32 %v2018, %v2026
  %v2029 = vsub.f32 %v2019, %v2027
  %v2030 = vmul.f32 %v2028, %v2028
  %v2031 = vmul.f32 %v2029, %v2029
  %v2032 = vsel %vm136, %v2030, 0.0
  %2033 = vadd.xlane.f32.xlu0 %v2032
  %v2034 = vpop.xlane.xlu0 %2033
  %v2035 = vsel %vm136, %v2031, 0.0
  %2036 = vadd.xlane.f32.xlu0 %v2035
  %v2037 = vpop.xlane.xlu0 %2036
  %v2038 = vmul.f32 %v2034, %v143
  %v2039 = vmul.f32 %v2037, %v143
  %v2040 = vadd.f32 %v2038, 1e-12
  %v2041 = vadd.f32 %v2039, 1e-12
  %v2042 = vrsqrt.pop %v2040
  %v2043 = vrsqrt.pop %v2041
  %v2044 = vmul.f32 %v2028, %v2042
  %v2045 = vmul.f32 %v2029, %v2043
  %v2046 = vlaneseq
  %v2047 = vshrl.u32 %v2046, 7
  %v2048 = vsub.s32 0, %v2047
  %v2049 = vrot.slane %v18, %v2048
  %v2050 = vmul.f32 %v2044, %v2049
  %v2051 = vmul.f32 %v2045, %v2049
  %v2052 = vlaneseq
  %v2053 = vshrl.u32 %v2052, 7
  %v2054 = vsub.s32 1, %v2053
  %v2055 = vrot.slane %v18, %v2054
  %v2056 = vadd.f32 %v2050, %v2055
  %v2057 = vadd.f32 %v2051, %v2055
  %v2058 = vld [vmem:[%s2 + $0xa0] sm:$0xff]
  %v2059 = vld [vmem:[%s2 + $0xa8] sm:$0xff]
  %v2060 = vld [vmem:[%s2 + $0xb0] sm:$0xff]
  %v2061 = vld [vmem:[%s2 + $0xb8] sm:$0xff]
  %v2062 = vlaneseq
  %v2063 = vshrl.u32 %v2062, 7
  %v2064 = vsub.s32 2, %v2063
  %v2065 = vrot.slane %v18, %v2064
  %v2067 = vsel %vm136, %v2056, 0
  %v2070 = vsel %vm136, %v2057, 0
  %2072 = vmatprep.subr.mxu0 0.0
  %2073 = vmatpush1.msra.mxu0 %v2058
  %2074 = vmatprep.subr.mxu0 0.0
  %2075 = vmatpush1.msra.mxu0 %v2059
  %2076 = vmatprep.subr.mxu0 0.0
  %2077 = vmatpush1.msra.mxu0 %v2060
  %2078 = vmatprep.subr.mxu0 0.0
  %2079 = vmatpush1.msra.mxu0 %v2061
  %2080 = vmatprep.subr.mxu0 0.0
  %2081 = vmatpush1.msra.mxu0 0.0
  %2082 = vmatprep.subr.mxu0 0.0
  %2083 = vmatpush1.msra.mxu0 0.0
  %2084 = vmatprep.subr.mxu0 0.0
  %2085 = vmatpush1.msra.mxu0 0.0
  %2086 = vmatprep.subr.mxu0 0.0
  %2087 = vmatpush1.msra.mxu0 0.0
  %2088 = vmatprep.subr.mxu0 0.0
  %2089 = vmatpush1.msra.mxu0 0.0
  %2090 = vmatprep.subr.mxu0 0.0
  %2091 = vmatpush1.msra.mxu0 0.0
  %2092 = vmatprep.subr.mxu0 0.0
  %2093 = vmatpush1.msra.mxu0 0.0
  %2094 = vmatprep.subr.mxu0 0.0
  %2095 = vmatpush1.msra.mxu0 0.0
  %2096 = vmatprep.subr.mxu0 0.0
  %2097 = vmatpush1.msra.mxu0 0.0
  %2098 = vmatprep.subr.mxu0 0.0
  %2099 = vmatpush1.msra.mxu0 0.0
  %2100 = vmatprep.subr.mxu0 0.0
  %2101 = vmatpush1.msra.mxu0 0.0
  %2102 = vmatprep.subr.mxu0 0.0
  %2103 = vmatpush1.msra.mxu0 0.0
  %2104 = vmatprep.subr.mxu0 0.0
  %2105 = vmatpush1.msra.mxu0 0.0
  %2106 = vmatprep.subr.mxu0 0.0
  %2107 = vmatpush1.msra.mxu0 0.0
  %2108 = vmatprep.subr.mxu0 0.0
  %2109 = vmatpush1.msra.mxu0 0.0
  %2110 = vmatprep.subr.mxu0 0.0
  %2111 = vmatpush1.msra.mxu0 0.0
  %2112 = vmatprep.subr.mxu0 0.0
  %2113 = vmatpush1.msra.mxu0 0.0
  %2114 = vmatprep.subr.mxu0 0.0
  %2115 = vmatpush1.msra.mxu0 0.0
  %2116 = vmatprep.subr.mxu0 0.0
  %2117 = vmatpush1.msra.mxu0 0.0
  %2118 = vmatprep.subr.mxu0 0.0
  %2119 = vmatpush1.msra.mxu0 0.0
  %2120 = vmatprep.subr.mxu0 0.0
  %2121 = vmatpush1.msra.mxu0 0.0
  %2122 = vmatprep.subr.mxu0 0.0
  %2123 = vmatpush1.msra.mxu0 0.0
  %2124 = vmatprep.subr.mxu0 0.0
  %2125 = vmatpush1.msra.mxu0 0.0
  %2126 = vmatprep.subr.mxu0 0.0
  %2127 = vmatpush1.msra.mxu0 0.0
  %2128 = vmatprep.subr.mxu0 0.0
  %2129 = vmatpush1.msra.mxu0 0.0
  %2130 = vmatprep.subr.mxu0 0.0
  %2131 = vmatpush1.msra.mxu0 0.0
  %2132 = vmatprep.subr.mxu0 0.0
  %2133 = vmatpush1.msra.mxu0 0.0
  %2134 = vmatprep.subr.mxu0 0.0
  %2135 = vmatpush1.msra.mxu0 0.0
  %2136 = vmatprep.mubr.f32.mxu0 0.0
  %2137 = vmatmul.mubr.f32.gmra.mrb[0].mxu0 %v2067
  %v2138 = vpop.f32.mrb[0].mxu0
  %v2139 = vadd.f32 %v2065, %v2138
  %v2140 = vpop.f32.mrb[0].mxu0
  %2141 = vmatprep.mubr.f32.mxu0 0.0
  %2142 = vmatmul.mubr.f32.gmra.mrb[0].mxu0 %v2070
  %v2143 = vpop.f32.mrb[0].mxu0
  %v2144 = vadd.f32 %v2065, %v2143
  %v2145 = vpop.f32.mrb[0].mxu0
  %2146 = vdwg.mxu0
  %2149 = vrot.lane.b32.xlu0 %v2139, 120
  %v2150 = vpop.permute.xlu0 %2149
  %2151 = vrot.lane.b32.xlu0 %v2144, 120
  %v2152 = vpop.permute.xlu0 %2151
  %2153 = vrot.lane.b32.xlu0 %v2139, 112
  %v2154 = vpop.permute.xlu0 %2153
  %2155 = vrot.lane.b32.xlu0 %v2144, 112
  %v2156 = vpop.permute.xlu0 %2155
  %2157 = vrot.lane.b32.xlu0 %v2139, 104
  %v2158 = vpop.permute.xlu0 %2157
  %2159 = vrot.lane.b32.xlu0 %v2144, 104
  %v2160 = vpop.permute.xlu0 %2159
  %2161 = vrot.lane.b32.xlu0 %v2139, 96
  %v2162 = vpop.permute.xlu0 %2161
  %v2163 = vsel %vm318, %v2139, 0
  %v2165 = vsel %vm318, %v2162, 0
  %2167 = vmatprep.subr.mxu0 0.0
  %2168 = vmatpush1.xpose.msra.mxu0 %v2165
  %2169 = vmatprep.subr.mxu0 0.0
  %2170 = vmatpush1.xpose.msra.mxu0 0.0
  %2171 = vmatprep.subr.mxu0 0.0
  %2172 = vmatpush1.xpose.msra.mxu0 0.0
  %2173 = vmatprep.subr.mxu0 0.0
  %2174 = vmatpush1.xpose.msra.mxu0 0.0
  %2175 = vmatprep.subr.mxu0 0.0
  %2176 = vmatpush1.xpose.msra.mxu0 0.0
  %2177 = vmatprep.subr.mxu0 0.0
  %2178 = vmatpush1.xpose.msra.mxu0 0.0
  %2179 = vmatprep.subr.mxu0 0.0
  %2180 = vmatpush1.xpose.msra.mxu0 0.0
  %2181 = vmatprep.subr.mxu0 0.0
  %2182 = vmatpush1.xpose.msra.mxu0 0.0
  %2183 = vmatprep.subr.mxu0 0.0
  %2184 = vmatpush1.xpose.msra.mxu0 0.0
  %2185 = vmatprep.subr.mxu0 0.0
  %2186 = vmatpush1.xpose.msra.mxu0 0.0
  %2187 = vmatprep.subr.mxu0 0.0
  %2188 = vmatpush1.xpose.msra.mxu0 0.0
  %2189 = vmatprep.subr.mxu0 0.0
  %2190 = vmatpush1.xpose.msra.mxu0 0.0
  %2191 = vmatprep.subr.mxu0 0.0
  %2192 = vmatpush1.xpose.msra.mxu0 0.0
  %2193 = vmatprep.subr.mxu0 0.0
  %2194 = vmatpush1.xpose.msra.mxu0 0.0
  %2195 = vmatprep.subr.mxu0 0.0
  %2196 = vmatpush1.xpose.msra.mxu0 0.0
  %2197 = vmatprep.subr.mxu0 0.0
  %2198 = vmatpush1.xpose.msra.mxu0 0.0
  %2199 = vmatprep.subr.mxu0 0.0
  %2200 = vmatpush1.xpose.msra.mxu0 0.0
  %2201 = vmatprep.subr.mxu0 0.0
  %2202 = vmatpush1.xpose.msra.mxu0 0.0
  %2203 = vmatprep.subr.mxu0 0.0
  %2204 = vmatpush1.xpose.msra.mxu0 0.0
  %2205 = vmatprep.subr.mxu0 0.0
  %2206 = vmatpush1.xpose.msra.mxu0 0.0
  %2207 = vmatprep.subr.mxu0 0.0
  %2208 = vmatpush1.xpose.msra.mxu0 0.0
  %2209 = vmatprep.subr.mxu0 0.0
  %2210 = vmatpush1.xpose.msra.mxu0 0.0
  %2211 = vmatprep.subr.mxu0 0.0
  %2212 = vmatpush1.xpose.msra.mxu0 0.0
  %2213 = vmatprep.subr.mxu0 0.0
  %2214 = vmatpush1.xpose.msra.mxu0 0.0
  %2215 = vmatprep.subr.mxu0 0.0
  %2216 = vmatpush1.xpose.msra.mxu0 0.0
  %2217 = vmatprep.subr.mxu0 0.0
  %2218 = vmatpush1.xpose.msra.mxu0 0.0
  %2219 = vmatprep.subr.mxu0 0.0
  %2220 = vmatpush1.xpose.msra.mxu0 0.0
  %2221 = vmatprep.subr.mxu0 0.0
  %2222 = vmatpush1.xpose.msra.mxu0 0.0
  %2223 = vmatprep.subr.mxu0 0.0
  %2224 = vmatpush1.xpose.msra.mxu0 0.0
  %2225 = vmatprep.subr.mxu0 0.0
  %2226 = vmatpush1.xpose.msra.mxu0 0.0
  %2227 = vmatprep.subr.mxu0 0.0
  %2228 = vmatpush1.xpose.msra.mxu0 0.0
  %2229 = vmatprep.subr.mxu0 0.0
  %2230 = vmatpush1.xpose.msra.mxu0 0.0
  %2231 = vmatprep.mubr.f32.mxu0 0.0
  %2232 = vmatmul.mubr.f32.gmra.mrb[0].mxu0 %v2163
  %v2233 = vpop.f32.mrb[0].mxu0
  %v2234 = vadd.f32 %v309, %v2233
  %v2235 = vpop.f32.mrb[0].mxu0
  %2236 = vdwg.mxu0
  %2237 = vrot.lane.b32.xlu0 %v2144, 96
  %v2238 = vpop.permute.xlu0 %2237
  %v2239 = vsel %vm318, %v2144, 0
  %v2241 = vsel %vm318, %v2238, 0
  %2243 = vmatprep.subr.mxu0 0.0
  %2244 = vmatpush1.xpose.msra.mxu0 %v2241
  %2245 = vmatprep.subr.mxu0 0.0
  %2246 = vmatpush1.xpose.msra.mxu0 0.0
  %2247 = vmatprep.subr.mxu0 0.0
  %2248 = vmatpush1.xpose.msra.mxu0 0.0
  %2249 = vmatprep.subr.mxu0 0.0
  %2250 = vmatpush1.xpose.msra.mxu0 0.0
  %2251 = vmatprep.subr.mxu0 0.0
  %2252 = vmatpush1.xpose.msra.mxu0 0.0
  %2253 = vmatprep.subr.mxu0 0.0
  %2254 = vmatpush1.xpose.msra.mxu0 0.0
  %2255 = vmatprep.subr.mxu0 0.0
  %2256 = vmatpush1.xpose.msra.mxu0 0.0
  %2257 = vmatprep.subr.mxu0 0.0
  %2258 = vmatpush1.xpose.msra.mxu0 0.0
  %2259 = vmatprep.subr.mxu0 0.0
  %2260 = vmatpush1.xpose.msra.mxu0 0.0
  %2261 = vmatprep.subr.mxu0 0.0
  %2262 = vmatpush1.xpose.msra.mxu0 0.0
  %2263 = vmatprep.subr.mxu0 0.0
  %2264 = vmatpush1.xpose.msra.mxu0 0.0
  %2265 = vmatprep.subr.mxu0 0.0
  %2266 = vmatpush1.xpose.msra.mxu0 0.0
  %2267 = vmatprep.subr.mxu0 0.0
  %2268 = vmatpush1.xpose.msra.mxu0 0.0
  %2269 = vmatprep.subr.mxu0 0.0
  %2270 = vmatpush1.xpose.msra.mxu0 0.0
  %2271 = vmatprep.subr.mxu0 0.0
  %2272 = vmatpush1.xpose.msra.mxu0 0.0
  %2273 = vmatprep.subr.mxu0 0.0
  %2274 = vmatpush1.xpose.msra.mxu0 0.0
  %2275 = vmatprep.subr.mxu0 0.0
  %2276 = vmatpush1.xpose.msra.mxu0 0.0
  %2277 = vmatprep.subr.mxu0 0.0
  %2278 = vmatpush1.xpose.msra.mxu0 0.0
  %2279 = vmatprep.subr.mxu0 0.0
  %2280 = vmatpush1.xpose.msra.mxu0 0.0
  %2281 = vmatprep.subr.mxu0 0.0
  %2282 = vmatpush1.xpose.msra.mxu0 0.0
  %2283 = vmatprep.subr.mxu0 0.0
  %2284 = vmatpush1.xpose.msra.mxu0 0.0
  %2285 = vmatprep.subr.mxu0 0.0
  %2286 = vmatpush1.xpose.msra.mxu0 0.0
  %2287 = vmatprep.subr.mxu0 0.0
  %2288 = vmatpush1.xpose.msra.mxu0 0.0
  %2289 = vmatprep.subr.mxu0 0.0
  %2290 = vmatpush1.xpose.msra.mxu0 0.0
  %2291 = vmatprep.subr.mxu0 0.0
  %2292 = vmatpush1.xpose.msra.mxu0 0.0
  %2293 = vmatprep.subr.mxu0 0.0
  %2294 = vmatpush1.xpose.msra.mxu0 0.0
  %2295 = vmatprep.subr.mxu0 0.0
  %2296 = vmatpush1.xpose.msra.mxu0 0.0
  %2297 = vmatprep.subr.mxu0 0.0
  %2298 = vmatpush1.xpose.msra.mxu0 0.0
  %2299 = vmatprep.subr.mxu0 0.0
  %2300 = vmatpush1.xpose.msra.mxu0 0.0
  %2301 = vmatprep.subr.mxu0 0.0
  %2302 = vmatpush1.xpose.msra.mxu0 0.0
  %2303 = vmatprep.subr.mxu0 0.0
  %2304 = vmatpush1.xpose.msra.mxu0 0.0
  %2305 = vmatprep.subr.mxu0 0.0
  %2306 = vmatpush1.xpose.msra.mxu0 0.0
  %2307 = vmatprep.mubr.f32.mxu0 0.0
  %2308 = vmatmul.mubr.f32.gmra.mrb[0].mxu0 %v2239
  %v2309 = vpop.f32.mrb[0].mxu0
  %v2310 = vadd.f32 %v313, %v2309
  %v2311 = vpop.f32.mrb[0].mxu0
  %2312 = vdwg.mxu0
  %2313 = vrot.lane.b32.xlu0 %v2150, 96
  %v2314 = vpop.permute.xlu0 %2313
  %v2315 = vsel %vm318, %v2150, 0
  %v2317 = vsel %vm318, %v2314, 0
  %2319 = vmatprep.subr.mxu0 0.0
  %2320 = vmatpush1.xpose.msra.mxu0 %v2317
  %2321 = vmatprep.subr.mxu0 0.0
  %2322 = vmatpush1.xpose.msra.mxu0 0.0
  %2323 = vmatprep.subr.mxu0 0.0
  %2324 = vmatpush1.xpose.msra.mxu0 0.0
  %2325 = vmatprep.subr.mxu0 0.0
  %2326 = vmatpush1.xpose.msra.mxu0 0.0
  %2327 = vmatprep.subr.mxu0 0.0
  %2328 = vmatpush1.xpose.msra.mxu0 0.0
  %2329 = vmatprep.subr.mxu0 0.0
  %2330 = vmatpush1.xpose.msra.mxu0 0.0
  %2331 = vmatprep.subr.mxu0 0.0
  %2332 = vmatpush1.xpose.msra.mxu0 0.0
  %2333 = vmatprep.subr.mxu0 0.0
  %2334 = vmatpush1.xpose.msra.mxu0 0.0
  %2335 = vmatprep.subr.mxu0 0.0
  %2336 = vmatpush1.xpose.msra.mxu0 0.0
  %2337 = vmatprep.subr.mxu0 0.0
  %2338 = vmatpush1.xpose.msra.mxu0 0.0
  %2339 = vmatprep.subr.mxu0 0.0
  %2340 = vmatpush1.xpose.msra.mxu0 0.0
  %2341 = vmatprep.subr.mxu0 0.0
  %2342 = vmatpush1.xpose.msra.mxu0 0.0
  %2343 = vmatprep.subr.mxu0 0.0
  %2344 = vmatpush1.xpose.msra.mxu0 0.0
  %2345 = vmatprep.subr.mxu0 0.0
  %2346 = vmatpush1.xpose.msra.mxu0 0.0
  %2347 = vmatprep.subr.mxu0 0.0
  %2348 = vmatpush1.xpose.msra.mxu0 0.0
  %2349 = vmatprep.subr.mxu0 0.0
  %2350 = vmatpush1.xpose.msra.mxu0 0.0
  %2351 = vmatprep.subr.mxu0 0.0
  %2352 = vmatpush1.xpose.msra.mxu0 0.0
  %2353 = vmatprep.subr.mxu0 0.0
  %2354 = vmatpush1.xpose.msra.mxu0 0.0
  %2355 = vmatprep.subr.mxu0 0.0
  %2356 = vmatpush1.xpose.msra.mxu0 0.0
  %2357 = vmatprep.subr.mxu0 0.0
  %2358 = vmatpush1.xpose.msra.mxu0 0.0
  %2359 = vmatprep.subr.mxu0 0.0
  %2360 = vmatpush1.xpose.msra.mxu0 0.0
  %2361 = vmatprep.subr.mxu0 0.0
  %2362 = vmatpush1.xpose.msra.mxu0 0.0
  %2363 = vmatprep.subr.mxu0 0.0
  %2364 = vmatpush1.xpose.msra.mxu0 0.0
  %2365 = vmatprep.subr.mxu0 0.0
  %2366 = vmatpush1.xpose.msra.mxu0 0.0
  %2367 = vmatprep.subr.mxu0 0.0
  %2368 = vmatpush1.xpose.msra.mxu0 0.0
  %2369 = vmatprep.subr.mxu0 0.0
  %2370 = vmatpush1.xpose.msra.mxu0 0.0
  %2371 = vmatprep.subr.mxu0 0.0
  %2372 = vmatpush1.xpose.msra.mxu0 0.0
  %2373 = vmatprep.subr.mxu0 0.0
  %2374 = vmatpush1.xpose.msra.mxu0 0.0
  %2375 = vmatprep.subr.mxu0 0.0
  %2376 = vmatpush1.xpose.msra.mxu0 0.0
  %2377 = vmatprep.subr.mxu0 0.0
  %2378 = vmatpush1.xpose.msra.mxu0 0.0
  %2379 = vmatprep.subr.mxu0 0.0
  %2380 = vmatpush1.xpose.msra.mxu0 0.0
  %2381 = vmatprep.subr.mxu0 0.0
  %2382 = vmatpush1.xpose.msra.mxu0 0.0
  %2383 = vmatprep.mubr.f32.mxu0 0.0
  %2384 = vmatmul.mubr.f32.gmra.mrb[0].mxu0 %v2315
  %v2385 = vpop.f32.mrb[0].mxu0
  %v2386 = vadd.f32 %v309, %v2385
  %v2387 = vpop.f32.mrb[0].mxu0
  %2388 = vdwg.mxu0
  %2389 = vrot.lane.b32.xlu0 %v2152, 96
  %v2390 = vpop.permute.xlu0 %2389
  %v2391 = vsel %vm318, %v2152, 0
  %v2393 = vsel %vm318, %v2390, 0
  %2395 = vmatprep.subr.mxu0 0.0
  %2396 = vmatpush1.xpose.msra.mxu0 %v2393
  %2397 = vmatprep.subr.mxu0 0.0
  %2398 = vmatpush1.xpose.msra.mxu0 0.0
  %2399 = vmatprep.subr.mxu0 0.0
  %2400 = vmatpush1.xpose.msra.mxu0 0.0
  %2401 = vmatprep.subr.mxu0 0.0
  %2402 = vmatpush1.xpose.msra.mxu0 0.0
  %2403 = vmatprep.subr.mxu0 0.0
  %2404 = vmatpush1.xpose.msra.mxu0 0.0
  %2405 = vmatprep.subr.mxu0 0.0
  %2406 = vmatpush1.xpose.msra.mxu0 0.0
  %2407 = vmatprep.subr.mxu0 0.0
  %2408 = vmatpush1.xpose.msra.mxu0 0.0
  %2409 = vmatprep.subr.mxu0 0.0
  %2410 = vmatpush1.xpose.msra.mxu0 0.0
  %2411 = vmatprep.subr.mxu0 0.0
  %2412 = vmatpush1.xpose.msra.mxu0 0.0
  %2413 = vmatprep.subr.mxu0 0.0
  %2414 = vmatpush1.xpose.msra.mxu0 0.0
  %2415 = vmatprep.subr.mxu0 0.0
  %2416 = vmatpush1.xpose.msra.mxu0 0.0
  %2417 = vmatprep.subr.mxu0 0.0
  %2418 = vmatpush1.xpose.msra.mxu0 0.0
  %2419 = vmatprep.subr.mxu0 0.0
  %2420 = vmatpush1.xpose.msra.mxu0 0.0
  %2421 = vmatprep.subr.mxu0 0.0
  %2422 = vmatpush1.xpose.msra.mxu0 0.0
  %2423 = vmatprep.subr.mxu0 0.0
  %2424 = vmatpush1.xpose.msra.mxu0 0.0
  %2425 = vmatprep.subr.mxu0 0.0
  %2426 = vmatpush1.xpose.msra.mxu0 0.0
  %2427 = vmatprep.subr.mxu0 0.0
  %2428 = vmatpush1.xpose.msra.mxu0 0.0
  %2429 = vmatprep.subr.mxu0 0.0
  %2430 = vmatpush1.xpose.msra.mxu0 0.0
  %2431 = vmatprep.subr.mxu0 0.0
  %2432 = vmatpush1.xpose.msra.mxu0 0.0
  %2433 = vmatprep.subr.mxu0 0.0
  %2434 = vmatpush1.xpose.msra.mxu0 0.0
  %2435 = vmatprep.subr.mxu0 0.0
  %2436 = vmatpush1.xpose.msra.mxu0 0.0
  %2437 = vmatprep.subr.mxu0 0.0
  %2438 = vmatpush1.xpose.msra.mxu0 0.0
  %2439 = vmatprep.subr.mxu0 0.0
  %2440 = vmatpush1.xpose.msra.mxu0 0.0
  %2441 = vmatprep.subr.mxu0 0.0
  %2442 = vmatpush1.xpose.msra.mxu0 0.0
  %2443 = vmatprep.subr.mxu0 0.0
  %2444 = vmatpush1.xpose.msra.mxu0 0.0
  %2445 = vmatprep.subr.mxu0 0.0
  %2446 = vmatpush1.xpose.msra.mxu0 0.0
  %2447 = vmatprep.subr.mxu0 0.0
  %2448 = vmatpush1.xpose.msra.mxu0 0.0
  %2449 = vmatprep.subr.mxu0 0.0
  %2450 = vmatpush1.xpose.msra.mxu0 0.0
  %2451 = vmatprep.subr.mxu0 0.0
  %2452 = vmatpush1.xpose.msra.mxu0 0.0
  %2453 = vmatprep.subr.mxu0 0.0
  %2454 = vmatpush1.xpose.msra.mxu0 0.0
  %2455 = vmatprep.subr.mxu0 0.0
  %2456 = vmatpush1.xpose.msra.mxu0 0.0
  %2457 = vmatprep.subr.mxu0 0.0
  %2458 = vmatpush1.xpose.msra.mxu0 0.0
  %2459 = vmatprep.mubr.f32.mxu0 0.0
  %2460 = vmatmul.mubr.f32.gmra.mrb[0].mxu0 %v2391
  %v2461 = vpop.f32.mrb[0].mxu0
  %v2462 = vadd.f32 %v313, %v2461
  %v2463 = vpop.f32.mrb[0].mxu0
  %2464 = vdwg.mxu0
  %2465 = vrot.lane.b32.xlu0 %v2154, 96
  %v2466 = vpop.permute.xlu0 %2465
  %v2467 = vsel %vm318, %v2154, 0
  %v2469 = vsel %vm318, %v2466, 0
  %2471 = vmatprep.subr.mxu0 0.0
  %2472 = vmatpush1.xpose.msra.mxu0 %v2469
  %2473 = vmatprep.subr.mxu0 0.0
  %2474 = vmatpush1.xpose.msra.mxu0 0.0
  %2475 = vmatprep.subr.mxu0 0.0
  %2476 = vmatpush1.xpose.msra.mxu0 0.0
  %2477 = vmatprep.subr.mxu0 0.0
  %2478 = vmatpush1.xpose.msra.mxu0 0.0
  %2479 = vmatprep.subr.mxu0 0.0
  %2480 = vmatpush1.xpose.msra.mxu0 0.0
  %2481 = vmatprep.subr.mxu0 0.0
  %2482 = vmatpush1.xpose.msra.mxu0 0.0
  %2483 = vmatprep.subr.mxu0 0.0
  %2484 = vmatpush1.xpose.msra.mxu0 0.0
  %2485 = vmatprep.subr.mxu0 0.0
  %2486 = vmatpush1.xpose.msra.mxu0 0.0
  %2487 = vmatprep.subr.mxu0 0.0
  %2488 = vmatpush1.xpose.msra.mxu0 0.0
  %2489 = vmatprep.subr.mxu0 0.0
  %2490 = vmatpush1.xpose.msra.mxu0 0.0
  %2491 = vmatprep.subr.mxu0 0.0
  %2492 = vmatpush1.xpose.msra.mxu0 0.0
  %2493 = vmatprep.subr.mxu0 0.0
  %2494 = vmatpush1.xpose.msra.mxu0 0.0
  %2495 = vmatprep.subr.mxu0 0.0
  %2496 = vmatpush1.xpose.msra.mxu0 0.0
  %2497 = vmatprep.subr.mxu0 0.0
  %2498 = vmatpush1.xpose.msra.mxu0 0.0
  %2499 = vmatprep.subr.mxu0 0.0
  %2500 = vmatpush1.xpose.msra.mxu0 0.0
  %2501 = vmatprep.subr.mxu0 0.0
  %2502 = vmatpush1.xpose.msra.mxu0 0.0
  %2503 = vmatprep.subr.mxu0 0.0
  %2504 = vmatpush1.xpose.msra.mxu0 0.0
  %2505 = vmatprep.subr.mxu0 0.0
  %2506 = vmatpush1.xpose.msra.mxu0 0.0
  %2507 = vmatprep.subr.mxu0 0.0
  %2508 = vmatpush1.xpose.msra.mxu0 0.0
  %2509 = vmatprep.subr.mxu0 0.0
  %2510 = vmatpush1.xpose.msra.mxu0 0.0
  %2511 = vmatprep.subr.mxu0 0.0
  %2512 = vmatpush1.xpose.msra.mxu0 0.0
  %2513 = vmatprep.subr.mxu0 0.0
  %2514 = vmatpush1.xpose.msra.mxu0 0.0
  %2515 = vmatprep.subr.mxu0 0.0
  %2516 = vmatpush1.xpose.msra.mxu0 0.0
  %2517 = vmatprep.subr.mxu0 0.0
  %2518 = vmatpush1.xpose.msra.mxu0 0.0
  %2519 = vmatprep.subr.mxu0 0.0
  %2520 = vmatpush1.xpose.msra.mxu0 0.0
  %2521 = vmatprep.subr.mxu0 0.0
  %2522 = vmatpush1.xpose.msra.mxu0 0.0
  %2523 = vmatprep.subr.mxu0 0.0
  %2524 = vmatpush1.xpose.msra.mxu0 0.0
  %2525 = vmatprep.subr.mxu0 0.0
  %2526 = vmatpush1.xpose.msra.mxu0 0.0
  %2527 = vmatprep.subr.mxu0 0.0
  %2528 = vmatpush1.xpose.msra.mxu0 0.0
  %2529 = vmatprep.subr.mxu0 0.0
  %2530 = vmatpush1.xpose.msra.mxu0 0.0
  %2531 = vmatprep.subr.mxu0 0.0
  %2532 = vmatpush1.xpose.msra.mxu0 0.0
  %2533 = vmatprep.subr.mxu0 0.0
  %2534 = vmatpush1.xpose.msra.mxu0 0.0
  %2535 = vmatprep.mubr.f32.mxu0 0.0
  %2536 = vmatmul.mubr.f32.gmra.mrb[0].mxu0 %v2467
  %v2537 = vpop.f32.mrb[0].mxu0
  %v2538 = vadd.f32 %v309, %v2537
  %v2539 = vpop.f32.mrb[0].mxu0
  %2540 = vdwg.mxu0
  %2541 = vrot.lane.b32.xlu0 %v2156, 96
  %v2542 = vpop.permute.xlu0 %2541
  %v2543 = vsel %vm318, %v2156, 0
  %v2545 = vsel %vm318, %v2542, 0
  %2547 = vmatprep.subr.mxu0 0.0
  %2548 = vmatpush1.xpose.msra.mxu0 %v2545
  %2549 = vmatprep.subr.mxu0 0.0
  %2550 = vmatpush1.xpose.msra.mxu0 0.0
  %2551 = vmatprep.subr.mxu0 0.0
  %2552 = vmatpush1.xpose.msra.mxu0 0.0
  %2553 = vmatprep.subr.mxu0 0.0
  %2554 = vmatpush1.xpose.msra.mxu0 0.0
  %2555 = vmatprep.subr.mxu0 0.0
  %2556 = vmatpush1.xpose.msra.mxu0 0.0
  %2557 = vmatprep.subr.mxu0 0.0
  %2558 = vmatpush1.xpose.msra.mxu0 0.0
  %2559 = vmatprep.subr.mxu0 0.0
  %2560 = vmatpush1.xpose.msra.mxu0 0.0
  %2561 = vmatprep.subr.mxu0 0.0
  %2562 = vmatpush1.xpose.msra.mxu0 0.0
  %2563 = vmatprep.subr.mxu0 0.0
  %2564 = vmatpush1.xpose.msra.mxu0 0.0
  %2565 = vmatprep.subr.mxu0 0.0
  %2566 = vmatpush1.xpose.msra.mxu0 0.0
  %2567 = vmatprep.subr.mxu0 0.0
  %2568 = vmatpush1.xpose.msra.mxu0 0.0
  %2569 = vmatprep.subr.mxu0 0.0
  %2570 = vmatpush1.xpose.msra.mxu0 0.0
  %2571 = vmatprep.subr.mxu0 0.0
  %2572 = vmatpush1.xpose.msra.mxu0 0.0
  %2573 = vmatprep.subr.mxu0 0.0
  %2574 = vmatpush1.xpose.msra.mxu0 0.0
  %2575 = vmatprep.subr.mxu0 0.0
  %2576 = vmatpush1.xpose.msra.mxu0 0.0
  %2577 = vmatprep.subr.mxu0 0.0
  %2578 = vmatpush1.xpose.msra.mxu0 0.0
  %2579 = vmatprep.subr.mxu0 0.0
  %2580 = vmatpush1.xpose.msra.mxu0 0.0
  %2581 = vmatprep.subr.mxu0 0.0
  %2582 = vmatpush1.xpose.msra.mxu0 0.0
  %2583 = vmatprep.subr.mxu0 0.0
  %2584 = vmatpush1.xpose.msra.mxu0 0.0
  %2585 = vmatprep.subr.mxu0 0.0
  %2586 = vmatpush1.xpose.msra.mxu0 0.0
  %2587 = vmatprep.subr.mxu0 0.0
  %2588 = vmatpush1.xpose.msra.mxu0 0.0
  %2589 = vmatprep.subr.mxu0 0.0
  %2590 = vmatpush1.xpose.msra.mxu0 0.0
  %2591 = vmatprep.subr.mxu0 0.0
  %2592 = vmatpush1.xpose.msra.mxu0 0.0
  %2593 = vmatprep.subr.mxu0 0.0
  %2594 = vmatpush1.xpose.msra.mxu0 0.0
  %2595 = vmatprep.subr.mxu0 0.0
  %2596 = vmatpush1.xpose.msra.mxu0 0.0
  %2597 = vmatprep.subr.mxu0 0.0
  %2598 = vmatpush1.xpose.msra.mxu0 0.0
  %2599 = vmatprep.subr.mxu0 0.0
  %2600 = vmatpush1.xpose.msra.mxu0 0.0
  %2601 = vmatprep.subr.mxu0 0.0
  %2602 = vmatpush1.xpose.msra.mxu0 0.0
  %2603 = vmatprep.subr.mxu0 0.0
  %2604 = vmatpush1.xpose.msra.mxu0 0.0
  %2605 = vmatprep.subr.mxu0 0.0
  %2606 = vmatpush1.xpose.msra.mxu0 0.0
  %2607 = vmatprep.subr.mxu0 0.0
  %2608 = vmatpush1.xpose.msra.mxu0 0.0
  %2609 = vmatprep.subr.mxu0 0.0
  %2610 = vmatpush1.xpose.msra.mxu0 0.0
  %2611 = vmatprep.mubr.f32.mxu0 0.0
  %2612 = vmatmul.mubr.f32.gmra.mrb[0].mxu0 %v2543
  %v2613 = vpop.f32.mrb[0].mxu0
  %v2614 = vadd.f32 %v313, %v2613
  %v2615 = vpop.f32.mrb[0].mxu0
  %2616 = vdwg.mxu0
  %2617 = vrot.lane.b32.xlu0 %v2158, 96
  %v2618 = vpop.permute.xlu0 %2617
  %v2619 = vsel %vm318, %v2158, 0
  %v2621 = vsel %vm318, %v2618, 0
  %2623 = vmatprep.subr.mxu0 0.0
  %2624 = vmatpush1.xpose.msra.mxu0 %v2621
  %2625 = vmatprep.subr.mxu0 0.0
  %2626 = vmatpush1.xpose.msra.mxu0 0.0
  %2627 = vmatprep.subr.mxu0 0.0
  %2628 = vmatpush1.xpose.msra.mxu0 0.0
  %2629 = vmatprep.subr.mxu0 0.0
  %2630 = vmatpush1.xpose.msra.mxu0 0.0
  %2631 = vmatprep.subr.mxu0 0.0
  %2632 = vmatpush1.xpose.msra.mxu0 0.0
  %2633 = vmatprep.subr.mxu0 0.0
  %2634 = vmatpush1.xpose.msra.mxu0 0.0
  %2635 = vmatprep.subr.mxu0 0.0
  %2636 = vmatpush1.xpose.msra.mxu0 0.0
  %2637 = vmatprep.subr.mxu0 0.0
  %2638 = vmatpush1.xpose.msra.mxu0 0.0
  %2639 = vmatprep.subr.mxu0 0.0
  %2640 = vmatpush1.xpose.msra.mxu0 0.0
  %2641 = vmatprep.subr.mxu0 0.0
  %2642 = vmatpush1.xpose.msra.mxu0 0.0
  %2643 = vmatprep.subr.mxu0 0.0
  %2644 = vmatpush1.xpose.msra.mxu0 0.0
  %2645 = vmatprep.subr.mxu0 0.0
  %2646 = vmatpush1.xpose.msra.mxu0 0.0
  %2647 = vmatprep.subr.mxu0 0.0
  %2648 = vmatpush1.xpose.msra.mxu0 0.0
  %2649 = vmatprep.subr.mxu0 0.0
  %2650 = vmatpush1.xpose.msra.mxu0 0.0
  %2651 = vmatprep.subr.mxu0 0.0
  %2652 = vmatpush1.xpose.msra.mxu0 0.0
  %2653 = vmatprep.subr.mxu0 0.0
  %2654 = vmatpush1.xpose.msra.mxu0 0.0
  %2655 = vmatprep.subr.mxu0 0.0
  %2656 = vmatpush1.xpose.msra.mxu0 0.0
  %2657 = vmatprep.subr.mxu0 0.0
  %2658 = vmatpush1.xpose.msra.mxu0 0.0
  %2659 = vmatprep.subr.mxu0 0.0
  %2660 = vmatpush1.xpose.msra.mxu0 0.0
  %2661 = vmatprep.subr.mxu0 0.0
  %2662 = vmatpush1.xpose.msra.mxu0 0.0
  %2663 = vmatprep.subr.mxu0 0.0
  %2664 = vmatpush1.xpose.msra.mxu0 0.0
  %2665 = vmatprep.subr.mxu0 0.0
  %2666 = vmatpush1.xpose.msra.mxu0 0.0
  %2667 = vmatprep.subr.mxu0 0.0
  %2668 = vmatpush1.xpose.msra.mxu0 0.0
  %2669 = vmatprep.subr.mxu0 0.0
  %2670 = vmatpush1.xpose.msra.mxu0 0.0
  %2671 = vmatprep.subr.mxu0 0.0
  %2672 = vmatpush1.xpose.msra.mxu0 0.0
  %2673 = vmatprep.subr.mxu0 0.0
  %2674 = vmatpush1.xpose.msra.mxu0 0.0
  %2675 = vmatprep.subr.mxu0 0.0
  %2676 = vmatpush1.xpose.msra.mxu0 0.0
  %2677 = vmatprep.subr.mxu0 0.0
  %2678 = vmatpush1.xpose.msra.mxu0 0.0
  %2679 = vmatprep.subr.mxu0 0.0
  %2680 = vmatpush1.xpose.msra.mxu0 0.0
  %2681 = vmatprep.subr.mxu0 0.0
  %2682 = vmatpush1.xpose.msra.mxu0 0.0
  %2683 = vmatprep.subr.mxu0 0.0
  %2684 = vmatpush1.xpose.msra.mxu0 0.0
  %2685 = vmatprep.subr.mxu0 0.0
  %2686 = vmatpush1.xpose.msra.mxu0 0.0
  %2687 = vmatprep.mubr.f32.mxu0 0.0
  %2688 = vmatmul.mubr.f32.gmra.mrb[0].mxu0 %v2619
  %v2689 = vpop.f32.mrb[0].mxu0
  %v2690 = vadd.f32 %v309, %v2689
  %v2691 = vpop.f32.mrb[0].mxu0
  %2692 = vdwg.mxu0
  %2693 = vrot.lane.b32.xlu0 %v2160, 96
  %v2694 = vpop.permute.xlu0 %2693
  %v2695 = vsel %vm318, %v2160, 0
  %v2697 = vsel %vm318, %v2694, 0
  %2699 = vmatprep.subr.mxu0 0.0
  %2700 = vmatpush1.xpose.msra.mxu0 %v2697
  %2701 = vmatprep.subr.mxu0 0.0
  %2702 = vmatpush1.xpose.msra.mxu0 0.0
  %2703 = vmatprep.subr.mxu0 0.0
  %2704 = vmatpush1.xpose.msra.mxu0 0.0
  %2705 = vmatprep.subr.mxu0 0.0
  %2706 = vmatpush1.xpose.msra.mxu0 0.0
  %2707 = vmatprep.subr.mxu0 0.0
  %2708 = vmatpush1.xpose.msra.mxu0 0.0
  %2709 = vmatprep.subr.mxu0 0.0
  %2710 = vmatpush1.xpose.msra.mxu0 0.0
  %2711 = vmatprep.subr.mxu0 0.0
  %2712 = vmatpush1.xpose.msra.mxu0 0.0
  %2713 = vmatprep.subr.mxu0 0.0
  %2714 = vmatpush1.xpose.msra.mxu0 0.0
  %2715 = vmatprep.subr.mxu0 0.0
  %2716 = vmatpush1.xpose.msra.mxu0 0.0
  %2717 = vmatprep.subr.mxu0 0.0
  %2718 = vmatpush1.xpose.msra.mxu0 0.0
  %2719 = vmatprep.subr.mxu0 0.0
  %2720 = vmatpush1.xpose.msra.mxu0 0.0
  %2721 = vmatprep.subr.mxu0 0.0
  %2722 = vmatpush1.xpose.msra.mxu0 0.0
  %2723 = vmatprep.subr.mxu0 0.0
  %2724 = vmatpush1.xpose.msra.mxu0 0.0
  %2725 = vmatprep.subr.mxu0 0.0
  %2726 = vmatpush1.xpose.msra.mxu0 0.0
  %2727 = vmatprep.subr.mxu0 0.0
  %2728 = vmatpush1.xpose.msra.mxu0 0.0
  %2729 = vmatprep.subr.mxu0 0.0
  %2730 = vmatpush1.xpose.msra.mxu0 0.0
  %2731 = vmatprep.subr.mxu0 0.0
  %2732 = vmatpush1.xpose.msra.mxu0 0.0
  %2733 = vmatprep.subr.mxu0 0.0
  %2734 = vmatpush1.xpose.msra.mxu0 0.0
  %2735 = vmatprep.subr.mxu0 0.0
  %2736 = vmatpush1.xpose.msra.mxu0 0.0
  %2737 = vmatprep.subr.mxu0 0.0
  %2738 = vmatpush1.xpose.msra.mxu0 0.0
  %2739 = vmatprep.subr.mxu0 0.0
  %2740 = vmatpush1.xpose.msra.mxu0 0.0
  %2741 = vmatprep.subr.mxu0 0.0
  %2742 = vmatpush1.xpose.msra.mxu0 0.0
  %2743 = vmatprep.subr.mxu0 0.0
  %2744 = vmatpush1.xpose.msra.mxu0 0.0
  %2745 = vmatprep.subr.mxu0 0.0
  %2746 = vmatpush1.xpose.msra.mxu0 0.0
  %2747 = vmatprep.subr.mxu0 0.0
  %2748 = vmatpush1.xpose.msra.mxu0 0.0
  %2749 = vmatprep.subr.mxu0 0.0
  %2750 = vmatpush1.xpose.msra.mxu0 0.0
  %2751 = vmatprep.subr.mxu0 0.0
  %2752 = vmatpush1.xpose.msra.mxu0 0.0
  %2753 = vmatprep.subr.mxu0 0.0
  %2754 = vmatpush1.xpose.msra.mxu0 0.0
  %2755 = vmatprep.subr.mxu0 0.0
  %2756 = vmatpush1.xpose.msra.mxu0 0.0
  %2757 = vmatprep.subr.mxu0 0.0
  %2758 = vmatpush1.xpose.msra.mxu0 0.0
  %2759 = vmatprep.subr.mxu0 0.0
  %2760 = vmatpush1.xpose.msra.mxu0 0.0
  %2761 = vmatprep.subr.mxu0 0.0
  %2762 = vmatpush1.xpose.msra.mxu0 0.0
  %2763 = vmatprep.mubr.f32.mxu0 0.0
  %2764 = vmatmul.mubr.f32.gmra.mrb[0].mxu0 %v2695
  %v2765 = vpop.f32.mrb[0].mxu0
  %v2766 = vadd.f32 %v313, %v2765
  %v2767 = vpop.f32.mrb[0].mxu0
  %2768 = vdwg.mxu0
  %v2769 = vsel %vm318, %v2234, -inf
  %2770 = vmax.xlane.f32.xlu0 %v2769
  %v2771 = vpop.xlane.xlu0 %2770
  %v2772 = vsel %vm318, %v2310, -inf
  %2773 = vmax.xlane.f32.xlu0 %v2772
  %v2774 = vpop.xlane.xlu0 %2773
  %v2775 = vsel %vm318, %v2386, -inf
  %2776 = vmax.xlane.f32.xlu0 %v2775
  %v2777 = vpop.xlane.xlu0 %2776
  %v2778 = vsel %vm318, %v2462, -inf
  %2779 = vmax.xlane.f32.xlu0 %v2778
  %v2780 = vpop.xlane.xlu0 %2779
  %v2781 = vsel %vm318, %v2538, -inf
  %2782 = vmax.xlane.f32.xlu0 %v2781
  %v2783 = vpop.xlane.xlu0 %2782
  %v2784 = vsel %vm318, %v2614, -inf
  %2785 = vmax.xlane.f32.xlu0 %v2784
  %v2786 = vpop.xlane.xlu0 %2785
  %v2787 = vsel %vm318, %v2690, -inf
  %2788 = vmax.xlane.f32.xlu0 %v2787
  %v2789 = vpop.xlane.xlu0 %2788
  %v2790 = vsel %vm318, %v2766, -inf
  %2791 = vmax.xlane.f32.xlu0 %v2790
  %v2792 = vpop.xlane.xlu0 %2791
  %v2793 = vsub.f32 %v2234, %v2771
  %v2794 = vsub.f32 %v2310, %v2774
  %v2795 = vsub.f32 %v2386, %v2777
  %v2796 = vsub.f32 %v2462, %v2780
  %v2797 = vsub.f32 %v2538, %v2783
  %v2798 = vsub.f32 %v2614, %v2786
  %v2799 = vsub.f32 %v2690, %v2789
  %v2800 = vsub.f32 %v2766, %v2792
  %v2801 = vmul.f32 %v2793, 1.442695
  %v2802 = vpow.pop %v2801
  %v2803 = vmul.f32 %v2794, 1.442695
  %v2804 = vpow.pop %v2803
  %v2805 = vmul.f32 %v2795, 1.442695
  %v2806 = vpow.pop %v2805
  %v2807 = vmul.f32 %v2796, 1.442695
  %v2808 = vpow.pop %v2807
  %v2809 = vmul.f32 %v2797, 1.442695
  %v2810 = vpow.pop %v2809
  %v2811 = vmul.f32 %v2798, 1.442695
  %v2812 = vpow.pop %v2811
  %v2813 = vmul.f32 %v2799, 1.442695
  %v2814 = vpow.pop %v2813
  %v2815 = vmul.f32 %v2800, 1.442695
  %v2816 = vpow.pop %v2815
  %v2817 = vsel %vm318, %v2802, 0.0
  %2818 = vadd.xlane.f32.xlu0 %v2817
  %v2819 = vpop.xlane.xlu0 %2818
  %v2820 = vsel %vm318, %v2804, 0.0
  %2821 = vadd.xlane.f32.xlu0 %v2820
  %v2822 = vpop.xlane.xlu0 %2821
  %v2823 = vsel %vm318, %v2806, 0.0
  %2824 = vadd.xlane.f32.xlu0 %v2823
  %v2825 = vpop.xlane.xlu0 %2824
  %v2826 = vsel %vm318, %v2808, 0.0
  %2827 = vadd.xlane.f32.xlu0 %v2826
  %v2828 = vpop.xlane.xlu0 %2827
  %v2829 = vsel %vm318, %v2810, 0.0
  %2830 = vadd.xlane.f32.xlu0 %v2829
  %v2831 = vpop.xlane.xlu0 %2830
  %v2832 = vsel %vm318, %v2812, 0.0
  %2833 = vadd.xlane.f32.xlu0 %v2832
  %v2834 = vpop.xlane.xlu0 %2833
  %v2835 = vsel %vm318, %v2814, 0.0
  %2836 = vadd.xlane.f32.xlu0 %v2835
  %v2837 = vpop.xlane.xlu0 %2836
  %v2838 = vsel %vm318, %v2816, 0.0
  %2839 = vadd.xlane.f32.xlu0 %v2838
  %v2840 = vpop.xlane.xlu0 %2839
  %v2841 = vrcp.pop %v2819
  %v2842 = vrcp.pop %v2822
  %v2843 = vrcp.pop %v2825
  %v2844 = vrcp.pop %v2828
  %v2845 = vrcp.pop %v2831
  %v2846 = vrcp.pop %v2834
  %v2847 = vrcp.pop %v2837
  %v2848 = vrcp.pop %v2840
  %v2849 = vmul.f32 %v2802, %v2841
  %v2850 = vmul.f32 %v2804, %v2842
  %v2851 = vmul.f32 %v2806, %v2843
  %v2852 = vmul.f32 %v2808, %v2844
  %v2853 = vmul.f32 %v2810, %v2845
  %v2854 = vmul.f32 %v2812, %v2846
  %v2855 = vmul.f32 %v2814, %v2847
  %v2856 = vmul.f32 %v2816, %v2848
  %2857 = vrot.lane.b32.xlu0 %v2139, 64
  %v2858 = vpop.permute.xlu0 %2857
  %v2861 = vsel %vm318, %v2849, 0
  %2863 = vmatprep.subr.mxu0 0.0
  %2864 = vmatpush1.msra.mxu0 %v2858
  %2865 = vmatprep.subr.mxu0 0.0
  %2866 = vmatpush1.msra.mxu0 0.0
  %2867 = vmatprep.subr.mxu0 0.0
  %2868 = vmatpush1.msra.mxu0 0.0
  %2869 = vmatprep.subr.mxu0 0.0
  %2870 = vmatpush1.msra.mxu0 0.0
  %2871 = vmatprep.subr.mxu0 0.0
  %2872 = vmatpush1.msra.mxu0 0.0
  %2873 = vmatprep.subr.mxu0 0.0
  %2874 = vmatpush1.msra.mxu0 0.0
  %2875 = vmatprep.subr.mxu0 0.0
  %2876 = vmatpush1.msra.mxu0 0.0
  %2877 = vmatprep.subr.mxu0 0.0
  %2878 = vmatpush1.msra.mxu0 0.0
  %2879 = vmatprep.subr.mxu0 0.0
  %2880 = vmatpush1.msra.mxu0 0.0
  %2881 = vmatprep.subr.mxu0 0.0
  %2882 = vmatpush1.msra.mxu0 0.0
  %2883 = vmatprep.subr.mxu0 0.0
  %2884 = vmatpush1.msra.mxu0 0.0
  %2885 = vmatprep.subr.mxu0 0.0
  %2886 = vmatpush1.msra.mxu0 0.0
  %2887 = vmatprep.subr.mxu0 0.0
  %2888 = vmatpush1.msra.mxu0 0.0
  %2889 = vmatprep.subr.mxu0 0.0
  %2890 = vmatpush1.msra.mxu0 0.0
  %2891 = vmatprep.subr.mxu0 0.0
  %2892 = vmatpush1.msra.mxu0 0.0
  %2893 = vmatprep.subr.mxu0 0.0
  %2894 = vmatpush1.msra.mxu0 0.0
  %2895 = vmatprep.subr.mxu0 0.0
  %2896 = vmatpush1.msra.mxu0 0.0
  %2897 = vmatprep.subr.mxu0 0.0
  %2898 = vmatpush1.msra.mxu0 0.0
  %2899 = vmatprep.subr.mxu0 0.0
  %2900 = vmatpush1.msra.mxu0 0.0
  %2901 = vmatprep.subr.mxu0 0.0
  %2902 = vmatpush1.msra.mxu0 0.0
  %2903 = vmatprep.subr.mxu0 0.0
  %2904 = vmatpush1.msra.mxu0 0.0
  %2905 = vmatprep.subr.mxu0 0.0
  %2906 = vmatpush1.msra.mxu0 0.0
  %2907 = vmatprep.subr.mxu0 0.0
  %2908 = vmatpush1.msra.mxu0 0.0
  %2909 = vmatprep.subr.mxu0 0.0
  %2910 = vmatpush1.msra.mxu0 0.0
  %2911 = vmatprep.subr.mxu0 0.0
  %2912 = vmatpush1.msra.mxu0 0.0
  %2913 = vmatprep.subr.mxu0 0.0
  %2914 = vmatpush1.msra.mxu0 0.0
  %2915 = vmatprep.subr.mxu0 0.0
  %2916 = vmatpush1.msra.mxu0 0.0
  %2917 = vmatprep.subr.mxu0 0.0
  %2918 = vmatpush1.msra.mxu0 0.0
  %2919 = vmatprep.subr.mxu0 0.0
  %2920 = vmatpush1.msra.mxu0 0.0
  %2921 = vmatprep.subr.mxu0 0.0
  %2922 = vmatpush1.msra.mxu0 0.0
  %2923 = vmatprep.subr.mxu0 0.0
  %2924 = vmatpush1.msra.mxu0 0.0
  %2925 = vmatprep.subr.mxu0 0.0
  %2926 = vmatpush1.msra.mxu0 0.0
  %2927 = vmatprep.mubr.f32.mxu0 0.0
  %2928 = vmatmul.mubr.f32.gmra.mrb[0].mxu0 %v2861
  %v2929 = vpop.f32.mrb[0].mxu0
  %v2930 = vadd.f32 0.0, %v2929
  %v2931 = vpop.f32.mrb[0].mxu0
  %2932 = vdwg.mxu0
  %2933 = vrot.lane.b32.xlu0 %v2144, 64
  %v2934 = vpop.permute.xlu0 %2933
  %v2937 = vsel %vm318, %v2850, 0
  %2939 = vmatprep.subr.mxu0 0.0
  %2940 = vmatpush1.msra.mxu0 %v2934
  %2941 = vmatprep.subr.mxu0 0.0
  %2942 = vmatpush1.msra.mxu0 0.0
  %2943 = vmatprep.subr.mxu0 0.0
  %2944 = vmatpush1.msra.mxu0 0.0
  %2945 = vmatprep.subr.mxu0 0.0
  %2946 = vmatpush1.msra.mxu0 0.0
  %2947 = vmatprep.subr.mxu0 0.0
  %2948 = vmatpush1.msra.mxu0 0.0
  %2949 = vmatprep.subr.mxu0 0.0
  %2950 = vmatpush1.msra.mxu0 0.0
  %2951 = vmatprep.subr.mxu0 0.0
  %2952 = vmatpush1.msra.mxu0 0.0
  %2953 = vmatprep.subr.mxu0 0.0
  %2954 = vmatpush1.msra.mxu0 0.0
  %2955 = vmatprep.subr.mxu0 0.0
  %2956 = vmatpush1.msra.mxu0 0.0
  %2957 = vmatprep.subr.mxu0 0.0
  %2958 = vmatpush1.msra.mxu0 0.0
  %2959 = vmatprep.subr.mxu0 0.0
  %2960 = vmatpush1.msra.mxu0 0.0
  %2961 = vmatprep.subr.mxu0 0.0
  %2962 = vmatpush1.msra.mxu0 0.0
  %2963 = vmatprep.subr.mxu0 0.0
  %2964 = vmatpush1.msra.mxu0 0.0
  %2965 = vmatprep.subr.mxu0 0.0
  %2966 = vmatpush1.msra.mxu0 0.0
  %2967 = vmatprep.subr.mxu0 0.0
  %2968 = vmatpush1.msra.mxu0 0.0
  %2969 = vmatprep.subr.mxu0 0.0
  %2970 = vmatpush1.msra.mxu0 0.0
  %2971 = vmatprep.subr.mxu0 0.0
  %2972 = vmatpush1.msra.mxu0 0.0
  %2973 = vmatprep.subr.mxu0 0.0
  %2974 = vmatpush1.msra.mxu0 0.0
  %2975 = vmatprep.subr.mxu0 0.0
  %2976 = vmatpush1.msra.mxu0 0.0
  %2977 = vmatprep.subr.mxu0 0.0
  %2978 = vmatpush1.msra.mxu0 0.0
  %2979 = vmatprep.subr.mxu0 0.0
  %2980 = vmatpush1.msra.mxu0 0.0
  %2981 = vmatprep.subr.mxu0 0.0
  %2982 = vmatpush1.msra.mxu0 0.0
  %2983 = vmatprep.subr.mxu0 0.0
  %2984 = vmatpush1.msra.mxu0 0.0
  %2985 = vmatprep.subr.mxu0 0.0
  %2986 = vmatpush1.msra.mxu0 0.0
  %2987 = vmatprep.subr.mxu0 0.0
  %2988 = vmatpush1.msra.mxu0 0.0
  %2989 = vmatprep.subr.mxu0 0.0
  %2990 = vmatpush1.msra.mxu0 0.0
  %2991 = vmatprep.subr.mxu0 0.0
  %2992 = vmatpush1.msra.mxu0 0.0
  %2993 = vmatprep.subr.mxu0 0.0
  %2994 = vmatpush1.msra.mxu0 0.0
  %2995 = vmatprep.subr.mxu0 0.0
  %2996 = vmatpush1.msra.mxu0 0.0
  %2997 = vmatprep.subr.mxu0 0.0
  %2998 = vmatpush1.msra.mxu0 0.0
  %2999 = vmatprep.subr.mxu0 0.0
  %3000 = vmatpush1.msra.mxu0 0.0
  %3001 = vmatprep.subr.mxu0 0.0
  %3002 = vmatpush1.msra.mxu0 0.0
  %3003 = vmatprep.mubr.f32.mxu0 0.0
  %3004 = vmatmul.mubr.f32.gmra.mrb[0].mxu0 %v2937
  %v3005 = vpop.f32.mrb[0].mxu0
  %v3006 = vadd.f32 0.0, %v3005
  %v3007 = vpop.f32.mrb[0].mxu0
  %3008 = vdwg.mxu0
  %3009 = vrot.lane.b32.xlu0 %v2150, 64
  %v3010 = vpop.permute.xlu0 %3009
  %v3013 = vsel %vm318, %v2851, 0
  %3015 = vmatprep.subr.mxu0 0.0
  %3016 = vmatpush1.msra.mxu0 %v3010
  %3017 = vmatprep.subr.mxu0 0.0
  %3018 = vmatpush1.msra.mxu0 0.0
  %3019 = vmatprep.subr.mxu0 0.0
  %3020 = vmatpush1.msra.mxu0 0.0
  %3021 = vmatprep.subr.mxu0 0.0
  %3022 = vmatpush1.msra.mxu0 0.0
  %3023 = vmatprep.subr.mxu0 0.0
  %3024 = vmatpush1.msra.mxu0 0.0
  %3025 = vmatprep.subr.mxu0 0.0
  %3026 = vmatpush1.msra.mxu0 0.0
  %3027 = vmatprep.subr.mxu0 0.0
  %3028 = vmatpush1.msra.mxu0 0.0
  %3029 = vmatprep.subr.mxu0 0.0
  %3030 = vmatpush1.msra.mxu0 0.0
  %3031 = vmatprep.subr.mxu0 0.0
  %3032 = vmatpush1.msra.mxu0 0.0
  %3033 = vmatprep.subr.mxu0 0.0
  %3034 = vmatpush1.msra.mxu0 0.0
  %3035 = vmatprep.subr.mxu0 0.0
  %3036 = vmatpush1.msra.mxu0 0.0
  %3037 = vmatprep.subr.mxu0 0.0
  %3038 = vmatpush1.msra.mxu0 0.0
  %3039 = vmatprep.subr.mxu0 0.0
  %3040 = vmatpush1.msra.mxu0 0.0
  %3041 = vmatprep.subr.mxu0 0.0
  %3042 = vmatpush1.msra.mxu0 0.0
  %3043 = vmatprep.subr.mxu0 0.0
  %3044 = vmatpush1.msra.mxu0 0.0
  %3045 = vmatprep.subr.mxu0 0.0
  %3046 = vmatpush1.msra.mxu0 0.0
  %3047 = vmatprep.subr.mxu0 0.0
  %3048 = vmatpush1.msra.mxu0 0.0
  %3049 = vmatprep.subr.mxu0 0.0
  %3050 = vmatpush1.msra.mxu0 0.0
  %3051 = vmatprep.subr.mxu0 0.0
  %3052 = vmatpush1.msra.mxu0 0.0
  %3053 = vmatprep.subr.mxu0 0.0
  %3054 = vmatpush1.msra.mxu0 0.0
  %3055 = vmatprep.subr.mxu0 0.0
  %3056 = vmatpush1.msra.mxu0 0.0
  %3057 = vmatprep.subr.mxu0 0.0
  %3058 = vmatpush1.msra.mxu0 0.0
  %3059 = vmatprep.subr.mxu0 0.0
  %3060 = vmatpush1.msra.mxu0 0.0
  %3061 = vmatprep.subr.mxu0 0.0
  %3062 = vmatpush1.msra.mxu0 0.0
  %3063 = vmatprep.subr.mxu0 0.0
  %3064 = vmatpush1.msra.mxu0 0.0
  %3065 = vmatprep.subr.mxu0 0.0
  %3066 = vmatpush1.msra.mxu0 0.0
  %3067 = vmatprep.subr.mxu0 0.0
  %3068 = vmatpush1.msra.mxu0 0.0
  %3069 = vmatprep.subr.mxu0 0.0
  %3070 = vmatpush1.msra.mxu0 0.0
  %3071 = vmatprep.subr.mxu0 0.0
  %3072 = vmatpush1.msra.mxu0 0.0
  %3073 = vmatprep.subr.mxu0 0.0
  %3074 = vmatpush1.msra.mxu0 0.0
  %3075 = vmatprep.subr.mxu0 0.0
  %3076 = vmatpush1.msra.mxu0 0.0
  %3077 = vmatprep.subr.mxu0 0.0
  %3078 = vmatpush1.msra.mxu0 0.0
  %3079 = vmatprep.mubr.f32.mxu0 0.0
  %3080 = vmatmul.mubr.f32.gmra.mrb[0].mxu0 %v3013
  %v3081 = vpop.f32.mrb[0].mxu0
  %v3082 = vadd.f32 0.0, %v3081
  %v3083 = vpop.f32.mrb[0].mxu0
  %3084 = vdwg.mxu0
  %3085 = vrot.lane.b32.xlu0 %v2152, 64
  %v3086 = vpop.permute.xlu0 %3085
  %v3089 = vsel %vm318, %v2852, 0
  %3091 = vmatprep.subr.mxu0 0.0
  %3092 = vmatpush1.msra.mxu0 %v3086
  %3093 = vmatprep.subr.mxu0 0.0
  %3094 = vmatpush1.msra.mxu0 0.0
  %3095 = vmatprep.subr.mxu0 0.0
  %3096 = vmatpush1.msra.mxu0 0.0
  %3097 = vmatprep.subr.mxu0 0.0
  %3098 = vmatpush1.msra.mxu0 0.0
  %3099 = vmatprep.subr.mxu0 0.0
  %3100 = vmatpush1.msra.mxu0 0.0
  %3101 = vmatprep.subr.mxu0 0.0
  %3102 = vmatpush1.msra.mxu0 0.0
  %3103 = vmatprep.subr.mxu0 0.0
  %3104 = vmatpush1.msra.mxu0 0.0
  %3105 = vmatprep.subr.mxu0 0.0
  %3106 = vmatpush1.msra.mxu0 0.0
  %3107 = vmatprep.subr.mxu0 0.0
  %3108 = vmatpush1.msra.mxu0 0.0
  %3109 = vmatprep.subr.mxu0 0.0
  %3110 = vmatpush1.msra.mxu0 0.0
  %3111 = vmatprep.subr.mxu0 0.0
  %3112 = vmatpush1.msra.mxu0 0.0
  %3113 = vmatprep.subr.mxu0 0.0
  %3114 = vmatpush1.msra.mxu0 0.0
  %3115 = vmatprep.subr.mxu0 0.0
  %3116 = vmatpush1.msra.mxu0 0.0
  %3117 = vmatprep.subr.mxu0 0.0
  %3118 = vmatpush1.msra.mxu0 0.0
  %3119 = vmatprep.subr.mxu0 0.0
  %3120 = vmatpush1.msra.mxu0 0.0
  %3121 = vmatprep.subr.mxu0 0.0
  %3122 = vmatpush1.msra.mxu0 0.0
  %3123 = vmatprep.subr.mxu0 0.0
  %3124 = vmatpush1.msra.mxu0 0.0
  %3125 = vmatprep.subr.mxu0 0.0
  %3126 = vmatpush1.msra.mxu0 0.0
  %3127 = vmatprep.subr.mxu0 0.0
  %3128 = vmatpush1.msra.mxu0 0.0
  %3129 = vmatprep.subr.mxu0 0.0
  %3130 = vmatpush1.msra.mxu0 0.0
  %3131 = vmatprep.subr.mxu0 0.0
  %3132 = vmatpush1.msra.mxu0 0.0
  %3133 = vmatprep.subr.mxu0 0.0
  %3134 = vmatpush1.msra.mxu0 0.0
  %3135 = vmatprep.subr.mxu0 0.0
  %3136 = vmatpush1.msra.mxu0 0.0
  %3137 = vmatprep.subr.mxu0 0.0
  %3138 = vmatpush1.msra.mxu0 0.0
  %3139 = vmatprep.subr.mxu0 0.0
  %3140 = vmatpush1.msra.mxu0 0.0
  %3141 = vmatprep.subr.mxu0 0.0
  %3142 = vmatpush1.msra.mxu0 0.0
  %3143 = vmatprep.subr.mxu0 0.0
  %3144 = vmatpush1.msra.mxu0 0.0
  %3145 = vmatprep.subr.mxu0 0.0
  %3146 = vmatpush1.msra.mxu0 0.0
  %3147 = vmatprep.subr.mxu0 0.0
  %3148 = vmatpush1.msra.mxu0 0.0
  %3149 = vmatprep.subr.mxu0 0.0
  %3150 = vmatpush1.msra.mxu0 0.0
  %3151 = vmatprep.subr.mxu0 0.0
  %3152 = vmatpush1.msra.mxu0 0.0
  %3153 = vmatprep.subr.mxu0 0.0
  %3154 = vmatpush1.msra.mxu0 0.0
  %3155 = vmatprep.mubr.f32.mxu0 0.0
  %3156 = vmatmul.mubr.f32.gmra.mrb[0].mxu0 %v3089
  %v3157 = vpop.f32.mrb[0].mxu0
  %v3158 = vadd.f32 0.0, %v3157
  %v3159 = vpop.f32.mrb[0].mxu0
  %3160 = vdwg.mxu0
  %3161 = vrot.lane.b32.xlu0 %v2154, 64
  %v3162 = vpop.permute.xlu0 %3161
  %v3165 = vsel %vm318, %v2853, 0
  %3167 = vmatprep.subr.mxu0 0.0
  %3168 = vmatpush1.msra.mxu0 %v3162
  %3169 = vmatprep.subr.mxu0 0.0
  %3170 = vmatpush1.msra.mxu0 0.0
  %3171 = vmatprep.subr.mxu0 0.0
  %3172 = vmatpush1.msra.mxu0 0.0
  %3173 = vmatprep.subr.mxu0 0.0
  %3174 = vmatpush1.msra.mxu0 0.0
  %3175 = vmatprep.subr.mxu0 0.0
  %3176 = vmatpush1.msra.mxu0 0.0
  %3177 = vmatprep.subr.mxu0 0.0
  %3178 = vmatpush1.msra.mxu0 0.0
  %3179 = vmatprep.subr.mxu0 0.0
  %3180 = vmatpush1.msra.mxu0 0.0
  %3181 = vmatprep.subr.mxu0 0.0
  %3182 = vmatpush1.msra.mxu0 0.0
  %3183 = vmatprep.subr.mxu0 0.0
  %3184 = vmatpush1.msra.mxu0 0.0
  %3185 = vmatprep.subr.mxu0 0.0
  %3186 = vmatpush1.msra.mxu0 0.0
  %3187 = vmatprep.subr.mxu0 0.0
  %3188 = vmatpush1.msra.mxu0 0.0
  %3189 = vmatprep.subr.mxu0 0.0
  %3190 = vmatpush1.msra.mxu0 0.0
  %3191 = vmatprep.subr.mxu0 0.0
  %3192 = vmatpush1.msra.mxu0 0.0
  %3193 = vmatprep.subr.mxu0 0.0
  %3194 = vmatpush1.msra.mxu0 0.0
  %3195 = vmatprep.subr.mxu0 0.0
  %3196 = vmatpush1.msra.mxu0 0.0
  %3197 = vmatprep.subr.mxu0 0.0
  %3198 = vmatpush1.msra.mxu0 0.0
  %3199 = vmatprep.subr.mxu0 0.0
  %3200 = vmatpush1.msra.mxu0 0.0
  %3201 = vmatprep.subr.mxu0 0.0
  %3202 = vmatpush1.msra.mxu0 0.0
  %3203 = vmatprep.subr.mxu0 0.0
  %3204 = vmatpush1.msra.mxu0 0.0
  %3205 = vmatprep.subr.mxu0 0.0
  %3206 = vmatpush1.msra.mxu0 0.0
  %3207 = vmatprep.subr.mxu0 0.0
  %3208 = vmatpush1.msra.mxu0 0.0
  %3209 = vmatprep.subr.mxu0 0.0
  %3210 = vmatpush1.msra.mxu0 0.0
  %3211 = vmatprep.subr.mxu0 0.0
  %3212 = vmatpush1.msra.mxu0 0.0
  %3213 = vmatprep.subr.mxu0 0.0
  %3214 = vmatpush1.msra.mxu0 0.0
  %3215 = vmatprep.subr.mxu0 0.0
  %3216 = vmatpush1.msra.mxu0 0.0
  %3217 = vmatprep.subr.mxu0 0.0
  %3218 = vmatpush1.msra.mxu0 0.0
  %3219 = vmatprep.subr.mxu0 0.0
  %3220 = vmatpush1.msra.mxu0 0.0
  %3221 = vmatprep.subr.mxu0 0.0
  %3222 = vmatpush1.msra.mxu0 0.0
  %3223 = vmatprep.subr.mxu0 0.0
  %3224 = vmatpush1.msra.mxu0 0.0
  %3225 = vmatprep.subr.mxu0 0.0
  %3226 = vmatpush1.msra.mxu0 0.0
  %3227 = vmatprep.subr.mxu0 0.0
  %3228 = vmatpush1.msra.mxu0 0.0
  %3229 = vmatprep.subr.mxu0 0.0
  %3230 = vmatpush1.msra.mxu0 0.0
  %3231 = vmatprep.mubr.f32.mxu0 0.0
  %3232 = vmatmul.mubr.f32.gmra.mrb[0].mxu0 %v3165
  %v3233 = vpop.f32.mrb[0].mxu0
  %v3234 = vadd.f32 0.0, %v3233
  %v3235 = vpop.f32.mrb[0].mxu0
  %3236 = vdwg.mxu0
  %3237 = vrot.lane.b32.xlu0 %v2156, 64
  %v3238 = vpop.permute.xlu0 %3237
  %v3241 = vsel %vm318, %v2854, 0
  %3243 = vmatprep.subr.mxu0 0.0
  %3244 = vmatpush1.msra.mxu0 %v3238
  %3245 = vmatprep.subr.mxu0 0.0
  %3246 = vmatpush1.msra.mxu0 0.0
  %3247 = vmatprep.subr.mxu0 0.0
  %3248 = vmatpush1.msra.mxu0 0.0
  %3249 = vmatprep.subr.mxu0 0.0
  %3250 = vmatpush1.msra.mxu0 0.0
  %3251 = vmatprep.subr.mxu0 0.0
  %3252 = vmatpush1.msra.mxu0 0.0
  %3253 = vmatprep.subr.mxu0 0.0
  %3254 = vmatpush1.msra.mxu0 0.0
  %3255 = vmatprep.subr.mxu0 0.0
  %3256 = vmatpush1.msra.mxu0 0.0
  %3257 = vmatprep.subr.mxu0 0.0
  %3258 = vmatpush1.msra.mxu0 0.0
  %3259 = vmatprep.subr.mxu0 0.0
  %3260 = vmatpush1.msra.mxu0 0.0
  %3261 = vmatprep.subr.mxu0 0.0
  %3262 = vmatpush1.msra.mxu0 0.0
  %3263 = vmatprep.subr.mxu0 0.0
  %3264 = vmatpush1.msra.mxu0 0.0
  %3265 = vmatprep.subr.mxu0 0.0
  %3266 = vmatpush1.msra.mxu0 0.0
  %3267 = vmatprep.subr.mxu0 0.0
  %3268 = vmatpush1.msra.mxu0 0.0
  %3269 = vmatprep.subr.mxu0 0.0
  %3270 = vmatpush1.msra.mxu0 0.0
  %3271 = vmatprep.subr.mxu0 0.0
  %3272 = vmatpush1.msra.mxu0 0.0
  %3273 = vmatprep.subr.mxu0 0.0
  %3274 = vmatpush1.msra.mxu0 0.0
  %3275 = vmatprep.subr.mxu0 0.0
  %3276 = vmatpush1.msra.mxu0 0.0
  %3277 = vmatprep.subr.mxu0 0.0
  %3278 = vmatpush1.msra.mxu0 0.0
  %3279 = vmatprep.subr.mxu0 0.0
  %3280 = vmatpush1.msra.mxu0 0.0
  %3281 = vmatprep.subr.mxu0 0.0
  %3282 = vmatpush1.msra.mxu0 0.0
  %3283 = vmatprep.subr.mxu0 0.0
  %3284 = vmatpush1.msra.mxu0 0.0
  %3285 = vmatprep.subr.mxu0 0.0
  %3286 = vmatpush1.msra.mxu0 0.0
  %3287 = vmatprep.subr.mxu0 0.0
  %3288 = vmatpush1.msra.mxu0 0.0
  %3289 = vmatprep.subr.mxu0 0.0
  %3290 = vmatpush1.msra.mxu0 0.0
  %3291 = vmatprep.subr.mxu0 0.0
  %3292 = vmatpush1.msra.mxu0 0.0
  %3293 = vmatprep.subr.mxu0 0.0
  %3294 = vmatpush1.msra.mxu0 0.0
  %3295 = vmatprep.subr.mxu0 0.0
  %3296 = vmatpush1.msra.mxu0 0.0
  %3297 = vmatprep.subr.mxu0 0.0
  %3298 = vmatpush1.msra.mxu0 0.0
  %3299 = vmatprep.subr.mxu0 0.0
  %3300 = vmatpush1.msra.mxu0 0.0
  %3301 = vmatprep.subr.mxu0 0.0
  %3302 = vmatpush1.msra.mxu0 0.0
  %3303 = vmatprep.subr.mxu0 0.0
  %3304 = vmatpush1.msra.mxu0 0.0
  %3305 = vmatprep.subr.mxu0 0.0
  %3306 = vmatpush1.msra.mxu0 0.0
  %3307 = vmatprep.mubr.f32.mxu0 0.0
  %3308 = vmatmul.mubr.f32.gmra.mrb[0].mxu0 %v3241
  %v3309 = vpop.f32.mrb[0].mxu0
  %v3310 = vadd.f32 0.0, %v3309
  %v3311 = vpop.f32.mrb[0].mxu0
  %3312 = vdwg.mxu0
  %3313 = vrot.lane.b32.xlu0 %v2158, 64
  %v3314 = vpop.permute.xlu0 %3313
  %v3317 = vsel %vm318, %v2855, 0
  %3319 = vmatprep.subr.mxu0 0.0
  %3320 = vmatpush1.msra.mxu0 %v3314
  %3321 = vmatprep.subr.mxu0 0.0
  %3322 = vmatpush1.msra.mxu0 0.0
  %3323 = vmatprep.subr.mxu0 0.0
  %3324 = vmatpush1.msra.mxu0 0.0
  %3325 = vmatprep.subr.mxu0 0.0
  %3326 = vmatpush1.msra.mxu0 0.0
  %3327 = vmatprep.subr.mxu0 0.0
  %3328 = vmatpush1.msra.mxu0 0.0
  %3329 = vmatprep.subr.mxu0 0.0
  %3330 = vmatpush1.msra.mxu0 0.0
  %3331 = vmatprep.subr.mxu0 0.0
  %3332 = vmatpush1.msra.mxu0 0.0
  %3333 = vmatprep.subr.mxu0 0.0
  %3334 = vmatpush1.msra.mxu0 0.0
  %3335 = vmatprep.subr.mxu0 0.0
  %3336 = vmatpush1.msra.mxu0 0.0
  %3337 = vmatprep.subr.mxu0 0.0
  %3338 = vmatpush1.msra.mxu0 0.0
  %3339 = vmatprep.subr.mxu0 0.0
  %3340 = vmatpush1.msra.mxu0 0.0
  %3341 = vmatprep.subr.mxu0 0.0
  %3342 = vmatpush1.msra.mxu0 0.0
  %3343 = vmatprep.subr.mxu0 0.0
  %3344 = vmatpush1.msra.mxu0 0.0
  %3345 = vmatprep.subr.mxu0 0.0
  %3346 = vmatpush1.msra.mxu0 0.0
  %3347 = vmatprep.subr.mxu0 0.0
  %3348 = vmatpush1.msra.mxu0 0.0
  %3349 = vmatprep.subr.mxu0 0.0
  %3350 = vmatpush1.msra.mxu0 0.0
  %3351 = vmatprep.subr.mxu0 0.0
  %3352 = vmatpush1.msra.mxu0 0.0
  %3353 = vmatprep.subr.mxu0 0.0
  %3354 = vmatpush1.msra.mxu0 0.0
  %3355 = vmatprep.subr.mxu0 0.0
  %3356 = vmatpush1.msra.mxu0 0.0
  %3357 = vmatprep.subr.mxu0 0.0
  %3358 = vmatpush1.msra.mxu0 0.0
  %3359 = vmatprep.subr.mxu0 0.0
  %3360 = vmatpush1.msra.mxu0 0.0
  %3361 = vmatprep.subr.mxu0 0.0
  %3362 = vmatpush1.msra.mxu0 0.0
  %3363 = vmatprep.subr.mxu0 0.0
  %3364 = vmatpush1.msra.mxu0 0.0
  %3365 = vmatprep.subr.mxu0 0.0
  %3366 = vmatpush1.msra.mxu0 0.0
  %3367 = vmatprep.subr.mxu0 0.0
  %3368 = vmatpush1.msra.mxu0 0.0
  %3369 = vmatprep.subr.mxu0 0.0
  %3370 = vmatpush1.msra.mxu0 0.0
  %3371 = vmatprep.subr.mxu0 0.0
  %3372 = vmatpush1.msra.mxu0 0.0
  %3373 = vmatprep.subr.mxu0 0.0
  %3374 = vmatpush1.msra.mxu0 0.0
  %3375 = vmatprep.subr.mxu0 0.0
  %3376 = vmatpush1.msra.mxu0 0.0
  %3377 = vmatprep.subr.mxu0 0.0
  %3378 = vmatpush1.msra.mxu0 0.0
  %3379 = vmatprep.subr.mxu0 0.0
  %3380 = vmatpush1.msra.mxu0 0.0
  %3381 = vmatprep.subr.mxu0 0.0
  %3382 = vmatpush1.msra.mxu0 0.0
  %3383 = vmatprep.mubr.f32.mxu0 0.0
  %3384 = vmatmul.mubr.f32.gmra.mrb[0].mxu0 %v3317
  %v3385 = vpop.f32.mrb[0].mxu0
  %v3386 = vadd.f32 0.0, %v3385
  %v3387 = vpop.f32.mrb[0].mxu0
  %3388 = vdwg.mxu0
  %3389 = vrot.lane.b32.xlu0 %v2160, 64
  %v3390 = vpop.permute.xlu0 %3389
  %v3393 = vsel %vm318, %v2856, 0
  %3395 = vmatprep.subr.mxu0 0.0
  %3396 = vmatpush1.msra.mxu0 %v3390
  %3397 = vmatprep.subr.mxu0 0.0
  %3398 = vmatpush1.msra.mxu0 0.0
  %3399 = vmatprep.subr.mxu0 0.0
  %3400 = vmatpush1.msra.mxu0 0.0
  %3401 = vmatprep.subr.mxu0 0.0
  %3402 = vmatpush1.msra.mxu0 0.0
  %3403 = vmatprep.subr.mxu0 0.0
  %3404 = vmatpush1.msra.mxu0 0.0
  %3405 = vmatprep.subr.mxu0 0.0
  %3406 = vmatpush1.msra.mxu0 0.0
  %3407 = vmatprep.subr.mxu0 0.0
  %3408 = vmatpush1.msra.mxu0 0.0
  %3409 = vmatprep.subr.mxu0 0.0
  %3410 = vmatpush1.msra.mxu0 0.0
  %3411 = vmatprep.subr.mxu0 0.0
  %3412 = vmatpush1.msra.mxu0 0.0
  %3413 = vmatprep.subr.mxu0 0.0
  %3414 = vmatpush1.msra.mxu0 0.0
  %3415 = vmatprep.subr.mxu0 0.0
  %3416 = vmatpush1.msra.mxu0 0.0
  %3417 = vmatprep.subr.mxu0 0.0
  %3418 = vmatpush1.msra.mxu0 0.0
  %3419 = vmatprep.subr.mxu0 0.0
  %3420 = vmatpush1.msra.mxu0 0.0
  %3421 = vmatprep.subr.mxu0 0.0
  %3422 = vmatpush1.msra.mxu0 0.0
  %3423 = vmatprep.subr.mxu0 0.0
  %3424 = vmatpush1.msra.mxu0 0.0
  %3425 = vmatprep.subr.mxu0 0.0
  %3426 = vmatpush1.msra.mxu0 0.0
  %3427 = vmatprep.subr.mxu0 0.0
  %3428 = vmatpush1.msra.mxu0 0.0
  %3429 = vmatprep.subr.mxu0 0.0
  %3430 = vmatpush1.msra.mxu0 0.0
  %3431 = vmatprep.subr.mxu0 0.0
  %3432 = vmatpush1.msra.mxu0 0.0
  %3433 = vmatprep.subr.mxu0 0.0
  %3434 = vmatpush1.msra.mxu0 0.0
  %3435 = vmatprep.subr.mxu0 0.0
  %3436 = vmatpush1.msra.mxu0 0.0
  %3437 = vmatprep.subr.mxu0 0.0
  %3438 = vmatpush1.msra.mxu0 0.0
  %3439 = vmatprep.subr.mxu0 0.0
  %3440 = vmatpush1.msra.mxu0 0.0
  %3441 = vmatprep.subr.mxu0 0.0
  %3442 = vmatpush1.msra.mxu0 0.0
  %3443 = vmatprep.subr.mxu0 0.0
  %3444 = vmatpush1.msra.mxu0 0.0
  %3445 = vmatprep.subr.mxu0 0.0
  %3446 = vmatpush1.msra.mxu0 0.0
  %3447 = vmatprep.subr.mxu0 0.0
  %3448 = vmatpush1.msra.mxu0 0.0
  %3449 = vmatprep.subr.mxu0 0.0
  %3450 = vmatpush1.msra.mxu0 0.0
  %3451 = vmatprep.subr.mxu0 0.0
  %3452 = vmatpush1.msra.mxu0 0.0
  %3453 = vmatprep.subr.mxu0 0.0
  %3454 = vmatpush1.msra.mxu0 0.0
  %3455 = vmatprep.subr.mxu0 0.0
  %3456 = vmatpush1.msra.mxu0 0.0
  %3457 = vmatprep.subr.mxu0 0.0
  %3458 = vmatpush1.msra.mxu0 0.0
  %3459 = vmatprep.mubr.f32.mxu0 0.0
  %3460 = vmatmul.mubr.f32.gmra.mrb[0].mxu0 %v3393
  %v3461 = vpop.f32.mrb[0].mxu0
  %v3462 = vadd.f32 0.0, %v3461
  %v3463 = vpop.f32.mrb[0].mxu0
  %3464 = vdwg.mxu0
  %3467 = vrot.lane.b32.xlu0 %v3082, 8
  %v3468 = vpop.permute.xlu0 %3467
  %3469 = vrot.lane.b32.xlu0 %v3158, 8
  %v3470 = vpop.permute.xlu0 %3469
  %3475 = vrot.lane.b32.xlu0 %v3234, 16
  %v3476 = vpop.permute.xlu0 %3475
  %3477 = vrot.lane.b32.xlu0 %v3310, 16
  %v3478 = vpop.permute.xlu0 %3477
  %3483 = vrot.lane.b32.xlu0 %v3386, 24
  %v3484 = vpop.permute.xlu0 %3483
  %3485 = vrot.lane.b32.xlu0 %v3462, 24
  %v3486 = vpop.permute.xlu0 %3485
  %v3489 = vsel %vm318, %v2930, %v3468
  %v3490 = vsel %vm318, %v3006, %v3470
  %v3491 = vsel %vm1647, %v3489, %v3476
  %v3492 = vsel %vm1647, %v3490, %v3478
  %v3493 = vsel %vm1650, %v3491, %v3484
  %v3494 = vsel %vm1650, %v3492, %v3486
  %v3495 = vld [vmem:[%s2 + $0xc0] sm:$0xff]
  %v3496 = vld [vmem:[%s2 + $0xc8] sm:$0xff]
  %v3497 = vld [vmem:[%s2 + $0xd0] sm:$0xff]
  %v3498 = vld [vmem:[%s2 + $0xd8] sm:$0xff]
  %v3499 = vlaneseq
  %v3500 = vshrl.u32 %v3499, 7
  %v3501 = vsub.s32 3, %v3500
  %v3502 = vrot.slane %v18, %v3501
  %v3504 = vsel %vm136, %v3493, 0
  %v3507 = vsel %vm136, %v3494, 0
  %3509 = vmatprep.subr.mxu0 0.0
  %3510 = vmatpush1.msra.mxu0 %v3495
  %3511 = vmatprep.subr.mxu0 0.0
  %3512 = vmatpush1.msra.mxu0 %v3496
  %3513 = vmatprep.subr.mxu0 0.0
  %3514 = vmatpush1.msra.mxu0 %v3497
  %3515 = vmatprep.subr.mxu0 0.0
  %3516 = vmatpush1.msra.mxu0 %v3498
  %3517 = vmatprep.subr.mxu0 0.0
  %3518 = vmatpush1.msra.mxu0 0.0
  %3519 = vmatprep.subr.mxu0 0.0
  %3520 = vmatpush1.msra.mxu0 0.0
  %3521 = vmatprep.subr.mxu0 0.0
  %3522 = vmatpush1.msra.mxu0 0.0
  %3523 = vmatprep.subr.mxu0 0.0
  %3524 = vmatpush1.msra.mxu0 0.0
  %3525 = vmatprep.subr.mxu0 0.0
  %3526 = vmatpush1.msra.mxu0 0.0
  %3527 = vmatprep.subr.mxu0 0.0
  %3528 = vmatpush1.msra.mxu0 0.0
  %3529 = vmatprep.subr.mxu0 0.0
  %3530 = vmatpush1.msra.mxu0 0.0
  %3531 = vmatprep.subr.mxu0 0.0
  %3532 = vmatpush1.msra.mxu0 0.0
  %3533 = vmatprep.subr.mxu0 0.0
  %3534 = vmatpush1.msra.mxu0 0.0
  %3535 = vmatprep.subr.mxu0 0.0
  %3536 = vmatpush1.msra.mxu0 0.0
  %3537 = vmatprep.subr.mxu0 0.0
  %3538 = vmatpush1.msra.mxu0 0.0
  %3539 = vmatprep.subr.mxu0 0.0
  %3540 = vmatpush1.msra.mxu0 0.0
  %3541 = vmatprep.subr.mxu0 0.0
  %3542 = vmatpush1.msra.mxu0 0.0
  %3543 = vmatprep.subr.mxu0 0.0
  %3544 = vmatpush1.msra.mxu0 0.0
  %3545 = vmatprep.subr.mxu0 0.0
  %3546 = vmatpush1.msra.mxu0 0.0
  %3547 = vmatprep.subr.mxu0 0.0
  %3548 = vmatpush1.msra.mxu0 0.0
  %3549 = vmatprep.subr.mxu0 0.0
  %3550 = vmatpush1.msra.mxu0 0.0
  %3551 = vmatprep.subr.mxu0 0.0
  %3552 = vmatpush1.msra.mxu0 0.0
  %3553 = vmatprep.subr.mxu0 0.0
  %3554 = vmatpush1.msra.mxu0 0.0
  %3555 = vmatprep.subr.mxu0 0.0
  %3556 = vmatpush1.msra.mxu0 0.0
  %3557 = vmatprep.subr.mxu0 0.0
  %3558 = vmatpush1.msra.mxu0 0.0
  %3559 = vmatprep.subr.mxu0 0.0
  %3560 = vmatpush1.msra.mxu0 0.0
  %3561 = vmatprep.subr.mxu0 0.0
  %3562 = vmatpush1.msra.mxu0 0.0
  %3563 = vmatprep.subr.mxu0 0.0
  %3564 = vmatpush1.msra.mxu0 0.0
  %3565 = vmatprep.subr.mxu0 0.0
  %3566 = vmatpush1.msra.mxu0 0.0
  %3567 = vmatprep.subr.mxu0 0.0
  %3568 = vmatpush1.msra.mxu0 0.0
  %3569 = vmatprep.subr.mxu0 0.0
  %3570 = vmatpush1.msra.mxu0 0.0
  %3571 = vmatprep.subr.mxu0 0.0
  %3572 = vmatpush1.msra.mxu0 0.0
  %3573 = vmatprep.mubr.f32.mxu0 0.0
  %3574 = vmatmul.mubr.f32.gmra.mrb[0].mxu0 %v3504
  %v3575 = vpop.f32.mrb[0].mxu0
  %v3576 = vadd.f32 %v3502, %v3575
  %v3577 = vpop.f32.mrb[0].mxu0
  %3578 = vmatprep.mubr.f32.mxu0 0.0
  %3579 = vmatmul.mubr.f32.gmra.mrb[0].mxu0 %v3507
  %v3580 = vpop.f32.mrb[0].mxu0
  %v3581 = vadd.f32 %v3502, %v3580
  %v3582 = vpop.f32.mrb[0].mxu0
  %3583 = vdwg.mxu0
  %v3584 = vadd.f32 %v3576, %v2056
  %v3585 = vadd.f32 %v3581, %v2057
  %v3586 = vsel %vm136, %v3584, 0.0
  %3587 = vadd.xlane.f32.xlu0 %v3586
  %v3588 = vpop.xlane.xlu0 %3587
  %v3589 = vsel %vm136, %v3585, 0.0
  %3590 = vadd.xlane.f32.xlu0 %v3589
  %v3591 = vpop.xlane.xlu0 %3590
  %v3592 = vmul.f32 %v3588, %v143
  %v3593 = vmul.f32 %v3591, %v143
  %v3594 = vsub.f32 %v3584, %v3592
  %v3595 = vsub.f32 %v3585, %v3593
  %v3596 = vmul.f32 %v3594, %v3594
  %v3597 = vmul.f32 %v3595, %v3595
  %v3598 = vsel %vm136, %v3596, 0.0
  %3599 = vadd.xlane.f32.xlu0 %v3598
  %v3600 = vpop.xlane.xlu0 %3599
  %v3601 = vsel %vm136, %v3597, 0.0
  %3602 = vadd.xlane.f32.xlu0 %v3601
  %v3603 = vpop.xlane.xlu0 %3602
  %v3604 = vmul.f32 %v3600, %v143
  %v3605 = vmul.f32 %v3603, %v143
  %v3606 = vadd.f32 %v3604, 1e-12
  %v3607 = vadd.f32 %v3605, 1e-12
  %v3608 = vrsqrt.pop %v3606
  %v3609 = vrsqrt.pop %v3607
  %v3610 = vmul.f32 %v3594, %v3608
  %v3611 = vmul.f32 %v3595, %v3609
  %v3612 = vlaneseq
  %v3613 = vshrl.u32 %v3612, 7
  %v3614 = vsub.s32 4, %v3613
  %v3615 = vrot.slane %v18, %v3614
  %v3616 = vmul.f32 %v3610, %v3615
  %v3617 = vmul.f32 %v3611, %v3615
  %v3618 = vlaneseq
  %v3619 = vshrl.u32 %v3618, 7
  %v3620 = vsub.s32 5, %v3619
  %v3621 = vrot.slane %v18, %v3620
  %v3622 = vadd.f32 %v3616, %v3621
  %v3623 = vadd.f32 %v3617, %v3621
  %v3624 = vld [vmem:[%s2 + $0xe0] sm:$0xff]
  %v3625 = vld [vmem:[%s2 + $0xe8] sm:$0xff]
  %v3626 = vld [vmem:[%s2 + $0xf0] sm:$0xff]
  %v3627 = vld [vmem:[%s2 + $0xf8] sm:$0xff]
  %v3628 = vlaneseq
  %v3629 = vshrl.u32 %v3628, 7
  %v3630 = vsub.s32 6, %v3629
  %v3631 = vrot.slane %v18, %v3630
  %v3633 = vsel %vm136, %v3622, 0
  %v3636 = vsel %vm136, %v3623, 0
  %3638 = vmatprep.subr.mxu0 0.0
  %3639 = vmatpush1.msra.mxu0 %v3624
  %3640 = vmatprep.subr.mxu0 0.0
  %3641 = vmatpush1.msra.mxu0 %v3625
  %3642 = vmatprep.subr.mxu0 0.0
  %3643 = vmatpush1.msra.mxu0 %v3626
  %3644 = vmatprep.subr.mxu0 0.0
  %3645 = vmatpush1.msra.mxu0 %v3627
  %3646 = vmatprep.subr.mxu0 0.0
  %3647 = vmatpush1.msra.mxu0 0.0
  %3648 = vmatprep.subr.mxu0 0.0
  %3649 = vmatpush1.msra.mxu0 0.0
  %3650 = vmatprep.subr.mxu0 0.0
  %3651 = vmatpush1.msra.mxu0 0.0
  %3652 = vmatprep.subr.mxu0 0.0
  %3653 = vmatpush1.msra.mxu0 0.0
  %3654 = vmatprep.subr.mxu0 0.0
  %3655 = vmatpush1.msra.mxu0 0.0
  %3656 = vmatprep.subr.mxu0 0.0
  %3657 = vmatpush1.msra.mxu0 0.0
  %3658 = vmatprep.subr.mxu0 0.0
  %3659 = vmatpush1.msra.mxu0 0.0
  %3660 = vmatprep.subr.mxu0 0.0
  %3661 = vmatpush1.msra.mxu0 0.0
  %3662 = vmatprep.subr.mxu0 0.0
  %3663 = vmatpush1.msra.mxu0 0.0
  %3664 = vmatprep.subr.mxu0 0.0
  %3665 = vmatpush1.msra.mxu0 0.0
  %3666 = vmatprep.subr.mxu0 0.0
  %3667 = vmatpush1.msra.mxu0 0.0
  %3668 = vmatprep.subr.mxu0 0.0
  %3669 = vmatpush1.msra.mxu0 0.0
  %3670 = vmatprep.subr.mxu0 0.0
  %3671 = vmatpush1.msra.mxu0 0.0
  %3672 = vmatprep.subr.mxu0 0.0
  %3673 = vmatpush1.msra.mxu0 0.0
  %3674 = vmatprep.subr.mxu0 0.0
  %3675 = vmatpush1.msra.mxu0 0.0
  %3676 = vmatprep.subr.mxu0 0.0
  %3677 = vmatpush1.msra.mxu0 0.0
  %3678 = vmatprep.subr.mxu0 0.0
  %3679 = vmatpush1.msra.mxu0 0.0
  %3680 = vmatprep.subr.mxu0 0.0
  %3681 = vmatpush1.msra.mxu0 0.0
  %3682 = vmatprep.subr.mxu0 0.0
  %3683 = vmatpush1.msra.mxu0 0.0
  %3684 = vmatprep.subr.mxu0 0.0
  %3685 = vmatpush1.msra.mxu0 0.0
  %3686 = vmatprep.subr.mxu0 0.0
  %3687 = vmatpush1.msra.mxu0 0.0
  %3688 = vmatprep.subr.mxu0 0.0
  %3689 = vmatpush1.msra.mxu0 0.0
  %3690 = vmatprep.subr.mxu0 0.0
  %3691 = vmatpush1.msra.mxu0 0.0
  %3692 = vmatprep.subr.mxu0 0.0
  %3693 = vmatpush1.msra.mxu0 0.0
  %3694 = vmatprep.subr.mxu0 0.0
  %3695 = vmatpush1.msra.mxu0 0.0
  %3696 = vmatprep.subr.mxu0 0.0
  %3697 = vmatpush1.msra.mxu0 0.0
  %3698 = vmatprep.subr.mxu0 0.0
  %3699 = vmatpush1.msra.mxu0 0.0
  %3700 = vmatprep.subr.mxu0 0.0
  %3701 = vmatpush1.msra.mxu0 0.0
  %3702 = vmatprep.mubr.f32.mxu0 0.0
  %3703 = vmatmul.mubr.f32.gmra.mrb[0].mxu0 %v3633
  %v3704 = vpop.f32.mrb[0].mxu0
  %v3705 = vadd.f32 %v3631, %v3704
  %v3706 = vpop.f32.mrb[0].mxu0
  %3707 = vmatprep.mubr.f32.mxu0 0.0
  %3708 = vmatmul.mubr.f32.gmra.mrb[0].mxu0 %v3636
  %v3709 = vpop.f32.mrb[0].mxu0
  %v3710 = vadd.f32 %v3631, %v3709
  %v3711 = vpop.f32.mrb[0].mxu0
  %3712 = vdwg.mxu0
  %v3713 = vmul.f32 %v3705, 0.5
  %v3714 = vmul.f32 %v3710, 0.5
  %v3715 = vmul.f32 %v3705, 0.70710677
  %v3716 = vmul.f32 %v3710, 0.70710677
  %v3717 = vand.u32 2147483647, %v3715
  %v3718 = vand.u32 2147483647, %v3716
  %v3719 = vmul.f32 %v3717, 0.3275911
  %v3720 = vmul.f32 %v3718, 0.3275911
  %v3721 = vadd.f32 %v3719, 1.0
  %v3722 = vadd.f32 %v3720, 1.0
  %v3723 = vrcp.pop %v3721
  %v3724 = vmul.f32 1.0, %v3723
  %v3725 = vrcp.pop %v3722
  %v3726 = vmul.f32 1.0, %v3725
  %v3727 = vmul.f32 %v3724, 1.0614054
  %v3728 = vmul.f32 %v3726, 1.0614054
  %v3729 = vadd.f32 %v3727, -1.4531521
  %v3730 = vadd.f32 %v3728, -1.4531521
  %v3731 = vmul.f32 %v3724, %v3729
  %v3732 = vmul.f32 %v3726, %v3730
  %v3733 = vadd.f32 %v3731, 1.4214138
  %v3734 = vadd.f32 %v3732, 1.4214138
  %v3735 = vmul.f32 %v3724, %v3733
  %v3736 = vmul.f32 %v3726, %v3734
  %v3737 = vadd.f32 %v3735, -0.28449672
  %v3738 = vadd.f32 %v3736, -0.28449672
  %v3739 = vmul.f32 %v3724, %v3737
  %v3740 = vmul.f32 %v3726, %v3738
  %v3741 = vadd.f32 %v3739, 0.2548296
  %v3742 = vadd.f32 %v3740, 0.2548296
  %v3743 = vmul.f32 %v3724, %v3741
  %v3744 = vmul.f32 %v3726, %v3742
  %v3745 = vsub.f32 0.0, %v3717
  %v3746 = vsub.f32 0.0, %v3718
  %v3747 = vmul.f32 %v3745, %v3717
  %v3748 = vmul.f32 %v3746, %v3718
  %v3749 = vmul.f32 %v3747, 1.442695
  %v3750 = vpow.pop %v3749
  %v3751 = vmul.f32 %v3748, 1.442695
  %v3752 = vpow.pop %v3751
  %v3753 = vmul.f32 %v3743, %v3750
  %v3754 = vmul.f32 %v3744, %v3752
  %v3755 = vsub.f32 1.0, %v3753
  %v3756 = vsub.f32 1.0, %v3754
  %vm3757 = vcmp.ge.f32.partialorder %v3715, 0.0
  %vm3758 = vcmp.ge.f32.partialorder %v3716, 0.0
  %v3759 = vsub.f32 0.0, %v3755
  %v3760 = vsub.f32 0.0, %v3756
  %v3761 = vsel %vm3757, %v3755, %v3759
  %v3762 = vsel %vm3758, %v3756, %v3760
  %v3763 = vadd.f32 %v3761, 1.0
  %v3764 = vadd.f32 %v3762, 1.0
  %v3765 = vmul.f32 %v3713, %v3763
  %v3766 = vmul.f32 %v3714, %v3764
  %v3767 = vld [vmem:[%s2 + $0x100] sm:$0xff]
  %v3768 = vld [vmem:[%s2 + $0x108] sm:$0xff]
  %v3769 = vld [vmem:[%s2 + $0x110] sm:$0xff]
  %v3770 = vld [vmem:[%s2 + $0x118] sm:$0xff]
  %v3771 = vld [vmem:[%s2 + $0x120] sm:$0xff]
  %v3772 = vld [vmem:[%s2 + $0x128] sm:$0xff]
  %v3773 = vld [vmem:[%s2 + $0x130] sm:$0xff]
  %v3774 = vld [vmem:[%s2 + $0x138] sm:$0xff]
  %v3775 = vlaneseq
  %v3776 = vshrl.u32 %v3775, 7
  %v3777 = vsub.s32 7, %v3776
  %v3778 = vrot.slane %v18, %v3777
  %v3780 = vsel %vm44, %v3765, 0
  %v3783 = vsel %vm44, %v3766, 0
  %3785 = vmatprep.subr.mxu0 0.0
  %3786 = vmatpush1.msra.mxu0 %v3767
  %3787 = vmatprep.subr.mxu0 0.0
  %3788 = vmatpush1.msra.mxu0 %v3768
  %3789 = vmatprep.subr.mxu0 0.0
  %3790 = vmatpush1.msra.mxu0 %v3769
  %3791 = vmatprep.subr.mxu0 0.0
  %3792 = vmatpush1.msra.mxu0 %v3770
  %3793 = vmatprep.subr.mxu0 0.0
  %3794 = vmatpush1.msra.mxu0 %v3771
  %3795 = vmatprep.subr.mxu0 0.0
  %3796 = vmatpush1.msra.mxu0 %v3772
  %3797 = vmatprep.subr.mxu0 0.0
  %3798 = vmatpush1.msra.mxu0 %v3773
  %3799 = vmatprep.subr.mxu0 0.0
  %3800 = vmatpush1.msra.mxu0 %v3774
  %3801 = vmatprep.subr.mxu0 0.0
  %3802 = vmatpush1.msra.mxu0 0.0
  %3803 = vmatprep.subr.mxu0 0.0
  %3804 = vmatpush1.msra.mxu0 0.0
  %3805 = vmatprep.subr.mxu0 0.0
  %3806 = vmatpush1.msra.mxu0 0.0
  %3807 = vmatprep.subr.mxu0 0.0
  %3808 = vmatpush1.msra.mxu0 0.0
  %3809 = vmatprep.subr.mxu0 0.0
  %3810 = vmatpush1.msra.mxu0 0.0
  %3811 = vmatprep.subr.mxu0 0.0
  %3812 = vmatpush1.msra.mxu0 0.0
  %3813 = vmatprep.subr.mxu0 0.0
  %3814 = vmatpush1.msra.mxu0 0.0
  %3815 = vmatprep.subr.mxu0 0.0
  %3816 = vmatpush1.msra.mxu0 0.0
  %3817 = vmatprep.subr.mxu0 0.0
  %3818 = vmatpush1.msra.mxu0 0.0
  %3819 = vmatprep.subr.mxu0 0.0
  %3820 = vmatpush1.msra.mxu0 0.0
  %3821 = vmatprep.subr.mxu0 0.0
  %3822 = vmatpush1.msra.mxu0 0.0
  %3823 = vmatprep.subr.mxu0 0.0
  %3824 = vmatpush1.msra.mxu0 0.0
  %3825 = vmatprep.subr.mxu0 0.0
  %3826 = vmatpush1.msra.mxu0 0.0
  %3827 = vmatprep.subr.mxu0 0.0
  %3828 = vmatpush1.msra.mxu0 0.0
  %3829 = vmatprep.subr.mxu0 0.0
  %3830 = vmatpush1.msra.mxu0 0.0
  %3831 = vmatprep.subr.mxu0 0.0
  %3832 = vmatpush1.msra.mxu0 0.0
  %3833 = vmatprep.subr.mxu0 0.0
  %3834 = vmatpush1.msra.mxu0 0.0
  %3835 = vmatprep.subr.mxu0 0.0
  %3836 = vmatpush1.msra.mxu0 0.0
  %3837 = vmatprep.subr.mxu0 0.0
  %3838 = vmatpush1.msra.mxu0 0.0
  %3839 = vmatprep.subr.mxu0 0.0
  %3840 = vmatpush1.msra.mxu0 0.0
  %3841 = vmatprep.subr.mxu0 0.0
  %3842 = vmatpush1.msra.mxu0 0.0
  %3843 = vmatprep.subr.mxu0 0.0
  %3844 = vmatpush1.msra.mxu0 0.0
  %3845 = vmatprep.subr.mxu0 0.0
  %3846 = vmatpush1.msra.mxu0 0.0
  %3847 = vmatprep.subr.mxu0 0.0
  %3848 = vmatpush1.msra.mxu0 0.0
  %3849 = vmatprep.mubr.f32.mxu0 0.0
  %3850 = vmatmul.mubr.f32.gmra.mrb[0].mxu0 %v3780
  %v3851 = vpop.f32.mrb[0].mxu0
  %v3852 = vadd.f32 %v3778, %v3851
  %v3853 = vpop.f32.mrb[0].mxu0
  %3854 = vmatprep.mubr.f32.mxu0 0.0
  %3855 = vmatmul.mubr.f32.gmra.mrb[0].mxu0 %v3783
  %v3856 = vpop.f32.mrb[0].mxu0
  %v3857 = vadd.f32 %v3778, %v3856
  %v3858 = vpop.f32.mrb[0].mxu0
  %3859 = vdwg.mxu0
  %v3860 = vadd.f32 %v3852, %v3622
  %v3861 = vadd.f32 %v3857, %v3623
  %v3862 = vsel %vm136, %v3860, 0.0
  %3863 = vadd.xlane.f32.xlu0 %v3862
  %v3864 = vpop.xlane.xlu0 %3863
  %v3865 = vsel %vm136, %v3861, 0.0
  %3866 = vadd.xlane.f32.xlu0 %v3865
  %v3867 = vpop.xlane.xlu0 %3866
  %v3868 = vmul.f32 %v3864, %v143
  %v3869 = vmul.f32 %v3867, %v143
  %v3870 = vsub.f32 %v3860, %v3868
  %v3871 = vsub.f32 %v3861, %v3869
  %v3872 = vmul.f32 %v3870, %v3870
  %v3873 = vmul.f32 %v3871, %v3871
  %v3874 = vsel %vm136, %v3872, 0.0
  %3875 = vadd.xlane.f32.xlu0 %v3874
  %v3876 = vpop.xlane.xlu0 %3875
  %v3877 = vsel %vm136, %v3873, 0.0
  %3878 = vadd.xlane.f32.xlu0 %v3877
  %v3879 = vpop.xlane.xlu0 %3878
  %v3880 = vmul.f32 %v3876, %v143
  %v3881 = vmul.f32 %v3879, %v143
  %v3882 = vadd.f32 %v3880, 1e-12
  %v3883 = vadd.f32 %v3881, 1e-12
  %v3884 = vrsqrt.pop %v3882
  %v3885 = vrsqrt.pop %v3883
  %v3886 = vmul.f32 %v3870, %v3884
  %v3887 = vmul.f32 %v3871, %v3885
  %v3888 = vlaneseq
  %v3889 = vshrl.u32 %v3888, 7
  %v3890 = vsub.s32 0, %v3889
  %v3891 = vrot.slane %v19, %v3890
  %v3892 = vmul.f32 %v3886, %v3891
  %v3893 = vmul.f32 %v3887, %v3891
  %v3894 = vlaneseq
  %v3895 = vshrl.u32 %v3894, 7
  %v3896 = vsub.s32 1, %v3895
  %v3897 = vrot.slane %v19, %v3896
  %v3898 = vadd.f32 %v3892, %v3897
  %v3899 = vadd.f32 %v3893, %v3897
  %v3900 = vld [vmem:[%s2 + $0x140] sm:$0xff]
  %v3901 = vld [vmem:[%s2 + $0x148] sm:$0xff]
  %v3902 = vld [vmem:[%s2 + $0x150] sm:$0xff]
  %v3903 = vld [vmem:[%s2 + $0x158] sm:$0xff]
  %v3904 = vlaneseq
  %v3905 = vshrl.u32 %v3904, 7
  %v3906 = vsub.s32 2, %v3905
  %v3907 = vrot.slane %v19, %v3906
  %v3910 = vrot.slane %v3899, 7
  %vm3911 = vcmask 1041409
  %v3912 = vsel %vm3911, %v3910, %v3898
  %v3913 = vsel %vm136, %v3912, 0
  %3915 = vmatprep.subr.mxu0 0.0
  %3916 = vmatpush1.msra.mxu0 %v3900
  %3917 = vmatprep.subr.mxu0 0.0
  %3918 = vmatpush1.msra.mxu0 %v3901
  %3919 = vmatprep.subr.mxu0 0.0
  %3920 = vmatpush1.msra.mxu0 %v3902
  %3921 = vmatprep.subr.mxu0 0.0
  %3922 = vmatpush1.msra.mxu0 %v3903
  %3923 = vmatprep.subr.mxu0 0.0
  %3924 = vmatpush1.msra.mxu0 0.0
  %3925 = vmatprep.subr.mxu0 0.0
  %3926 = vmatpush1.msra.mxu0 0.0
  %3927 = vmatprep.subr.mxu0 0.0
  %3928 = vmatpush1.msra.mxu0 0.0
  %3929 = vmatprep.subr.mxu0 0.0
  %3930 = vmatpush1.msra.mxu0 0.0
  %3931 = vmatprep.subr.mxu0 0.0
  %3932 = vmatpush1.msra.mxu0 0.0
  %3933 = vmatprep.subr.mxu0 0.0
  %3934 = vmatpush1.msra.mxu0 0.0
  %3935 = vmatprep.subr.mxu0 0.0
  %3936 = vmatpush1.msra.mxu0 0.0
  %3937 = vmatprep.subr.mxu0 0.0
  %3938 = vmatpush1.msra.mxu0 0.0
  %3939 = vmatprep.subr.mxu0 0.0
  %3940 = vmatpush1.msra.mxu0 0.0
  %3941 = vmatprep.subr.mxu0 0.0
  %3942 = vmatpush1.msra.mxu0 0.0
  %3943 = vmatprep.subr.mxu0 0.0
  %3944 = vmatpush1.msra.mxu0 0.0
  %3945 = vmatprep.subr.mxu0 0.0
  %3946 = vmatpush1.msra.mxu0 0.0
  %3947 = vmatprep.subr.mxu0 0.0
  %3948 = vmatpush1.msra.mxu0 0.0
  %3949 = vmatprep.subr.mxu0 0.0
  %3950 = vmatpush1.msra.mxu0 0.0
  %3951 = vmatprep.subr.mxu0 0.0
  %3952 = vmatpush1.msra.mxu0 0.0
  %3953 = vmatprep.subr.mxu0 0.0
  %3954 = vmatpush1.msra.mxu0 0.0
  %3955 = vmatprep.subr.mxu0 0.0
  %3956 = vmatpush1.msra.mxu0 0.0
  %3957 = vmatprep.subr.mxu0 0.0
  %3958 = vmatpush1.msra.mxu0 0.0
  %3959 = vmatprep.subr.mxu0 0.0
  %3960 = vmatpush1.msra.mxu0 0.0
  %3961 = vmatprep.subr.mxu0 0.0
  %3962 = vmatpush1.msra.mxu0 0.0
  %3963 = vmatprep.subr.mxu0 0.0
  %3964 = vmatpush1.msra.mxu0 0.0
  %3965 = vmatprep.subr.mxu0 0.0
  %3966 = vmatpush1.msra.mxu0 0.0
  %3967 = vmatprep.subr.mxu0 0.0
  %3968 = vmatpush1.msra.mxu0 0.0
  %3969 = vmatprep.subr.mxu0 0.0
  %3970 = vmatpush1.msra.mxu0 0.0
  %3971 = vmatprep.subr.mxu0 0.0
  %3972 = vmatpush1.msra.mxu0 0.0
  %3973 = vmatprep.subr.mxu0 0.0
  %3974 = vmatpush1.msra.mxu0 0.0
  %3975 = vmatprep.subr.mxu0 0.0
  %3976 = vmatpush1.msra.mxu0 0.0
  %3977 = vmatprep.subr.mxu0 0.0
  %3978 = vmatpush1.msra.mxu0 0.0
  %3979 = vmatprep.mubr.f32.mxu0 0.0
  %3980 = vmatmul.mubr.f32.gmra.mrb[0].mxu0 %v3913
  %v3981 = vpop.f32.mrb[0].mxu0
  %v3982 = vadd.f32 %v3907, %v3981
  %v3983 = vpop.f32.mrb[0].mxu0
  %3984 = vdwg.mxu0
  %v3985 = vtanh.pop %v3982
  %v3986 = vlaneseq
  %v3987 = vshrl.u32 %v3986, 7
  %v3988 = vsub.s32 3, %v3987
  %v3989 = vrot.slane %v19, %v3988
  %v3990 = vmul.f32 %v3985, %v3989
  %vm3991 = vcmask 254976
  %v3992 = vsel %vm3991, %v3990, 0.0
  %3993 = vadd.xlane.f32.xlu0 %v3992
  %v3994 = vpop.xlane.xlu0 %3993
  %v3995 = vlaneseq
  %v3996 = vshrl.u32 %v3995, 7
  %v3997 = vsub.s32 4, %v3996
  %v3998 = vrot.slane %v19, %v3997
  %v3999 = vadd.f32 %v3994, %v3998
  %v4000 = vmul.f32 %v3999, 0.5
  %v4001 = vtanh.pop %v4000
  %v4002 = vadd.f32 %v4001, 1.0
  %v4003 = vmul.f32 %v4002, 0.5
  %v4004 = vmul.f32 %v4003, 10.0
  %vm4005 = vcmask 1024
  %4006 = vst.msk [vmem:[%s4] sm:$0x3] %vm4005, %v4004
  // Predicated region
  $region18: #{bert_regressor_forward.1} parent=0 // pred_check
    _
  $region19: #{bert_regressor_forward.1} parent=0 // pred_check_branch
    %4008 = sbr.rel (0) target = $region21
  $region20: #{bert_regressor_forward.1} parent=0 // pred_region
    _
  $region21: #{bert_regressor_forward.1} parent=0 // pred_fallthru
    _
  // Predicated region
  $region22: #{bert_regressor_forward.1} parent=0 // pred_check
    _
  $region23: #{bert_regressor_forward.1} parent=0 // pred_check_branch
    %4010 = sbr.rel (0) target = $region25
  $region24: #{bert_regressor_forward.1} parent=0 // pred_region
    _
  $region25: #{bert_regressor_forward.1} parent=0 // pred_fallthru
    _

</llo_original>
